<compile_context>
chip_gen: v6e
topology: v6e:2x2x1
jax: 0.10.0
libtpu: 0.0.40
codegen_flags: <defaults>
</compile_context>

<pallas_src>
from functools import partial

import jax
import jax.numpy as jnp
from jax.experimental import pallas as pl
from jax.experimental.pallas import tpu as pltpu


def _round_up(x, m):
    return ((x + m - 1) // m) * m


# ---------------------------------------------------------------------------
# Pallas kernel: one lane-dense batch tile (TB lanes) per grid step
# ---------------------------------------------------------------------------
def node_cell_kernel(delta, S, N, synapse_dtype,
                     x_ref, v_ref,                       # (S, TB), (N, TB)
                     s_scale_ref, s_off_ref, s_em_ref,   # (N, S) each
                     r_scale_ref, r_off_ref, r_em_ref,   # (N, N) each
                     b_ref,                              # (N, 1)
                     next_ref):                          # (N, TB)
    TB = next_ref.shape[1]
    f32 = jnp.float32

    v = v_ref[...]                                       # (N, TB)

    # Accumulator starts at the (lane-broadcast) bias b.
    acc = jnp.broadcast_to(b_ref[...], (N, TB))

    def synapse(acc, pre_row, scale_col, off_col, em_col):
        # pre_row: (1, TB); *_col: (N, 1); broadcast to a full (N, TB) slab.
        arg = pre_row * scale_col + off_col
        # sigmoid(z) == 0.5 * tanh(0.5 * z) + 0.5  -> one EUP op per element
        t = jnp.tanh((0.5 * arg).astype(synapse_dtype)).astype(f32)
        g = 0.5 * t + 0.5
        return acc + g * em_col

    # Sensory synapses: unrolled loop over the S pre-synaptic sensory inputs.
    for s in range(S):
        acc = synapse(acc,
                      x_ref[pl.ds(s, 1), :],
                      s_scale_ref[:, pl.ds(s, 1)],
                      s_off_ref[:, pl.ds(s, 1)],
                      s_em_ref[:, pl.ds(s, 1)])

    # Recurrent synapses: unrolled loop over the N pre-synaptic state neurons.
    # (Single evaluation is exact: the PyTorch unfold loop is a no-op repeat.)
    for p in range(N):
        acc = synapse(acc,
                      v_ref[pl.ds(p, 1), :],
                      r_scale_ref[:, pl.ds(p, 1)],
                      r_off_ref[:, pl.ds(p, 1)],
                      r_em_ref[:, pl.ds(p, 1)])

    next_ref[...] = v + delta * acc


# ---------------------------------------------------------------------------
# Wrapper: parameter folding, lane-dense batch tiling, pallas_call
# ---------------------------------------------------------------------------
def node_cell_forward(inputs, states, params, ode_unfolds=6,
                      batch_tile=None, synapse_dtype=jnp.float32):
    f32 = jnp.float32
    B, S = inputs.shape
    _, N = states.shape
    M = params["output_w"].shape[0]
    delta = 1.0 / float(ode_unfolds)

    # ---- lane-dense batch tiling -------------------------------------------
    if batch_tile is None:
        # Multiple of the 128-lane vreg width. 128 keeps the unrolled synapse
        # loop comfortably inside 64 vregs; 256 for big batches (still leaves
        # >= 2 "parallel" grid steps so v7x can use both TensorCores).
        batch_tile = 128 if B <= 512 else 256
    TB = batch_tile
    B_pad = _round_up(B, TB)

    x_t = jnp.pad(inputs.astype(f32), ((0, B_pad - B), (0, 0))).T      # (S, B_pad)
    v_t = jnp.pad(states.astype(f32), ((0, B_pad - B), (0, 0))).T      # (N, B_pad)

    # ---- one-time parameter folding (wrapper-side, free vs. the kernel) ----
    iw = params["input_w"].astype(f32)
    ib = params["input_b"].astype(f32)
    s_sigma = params["sensory_sigma"].astype(f32)
    s_mu = params["sensory_mu"].astype(f32)
    # ((x*iw + ib) - s_mu) * s_sigma == x * (iw*s_sigma) + (ib - s_mu)*s_sigma
    s_scale_t = (iw[:, None] * s_sigma).T                               # (N, S)
    s_off_t = ((ib[:, None] - s_mu) * s_sigma).T                        # (N, S)
    s_em_t = (params["sensory_erev"]
              * params["sensory_sparsity_mask"]).astype(f32).T          # (N, S)

    sigma = params["sigma"].astype(f32)
    mu = params["mu"].astype(f32)
    # (v - mu) * sigma == v * sigma + (-mu*sigma)
    r_scale_t = sigma.T                                                 # (N, N)
    r_off_t = (-(mu * sigma)).T                                         # (N, N)
    r_em_t = (params["erev"] * params["sparsity_mask"]).astype(f32).T   # (N, N)

    b_col = params["b"].astype(f32).reshape(N, 1)

    batch_spec = lambda rows: pl.BlockSpec((rows, TB), lambda i: (0, i))
    const_spec = lambda shape: pl.BlockSpec(shape, lambda i: (0, 0))

    next_t = pl.pallas_call(
        partial(node_cell_kernel, delta, S, N, synapse_dtype),
        out_shape=jax.ShapeDtypeStruct((N, B_pad), f32),
        grid=(B_pad // TB,),
        in_specs=[
            batch_spec(S),          # x, lane-dense batch
            batch_spec(N),          # v, lane-dense batch
            const_spec((N, S)),     # sensory scale  (input_w folded)
            const_spec((N, S)),     # sensory offset (input_b, sensory_mu folded)
            const_spec((N, S)),     # sensory erev * sparsity mask (fused)
            const_spec((N, N)),     # recurrent scale (sigma)
            const_spec((N, N)),     # recurrent offset (-mu*sigma)
            const_spec((N, N)),     # erev * sparsity mask (fused)
            const_spec((N, 1)),     # bias b
        ],
        out_specs=batch_spec(N),
        compiler_params=pltpu.CompilerParams(
            dimension_semantics=("parallel",)),   # v7x: shard batch over 2 TCs
    )(x_t, v_t, s_scale_t, s_off_t, s_em_t, r_scale_t, r_off_t, r_em_t, b_col)

    next_state = next_t.T[:B]                                           # (B, N)
    # Output mapping in the wrapper: avoids an M(=4)-of-128-lane masked store.
    out = (next_state[:, :M] * params["output_w"].astype(f32)
           + params["output_b"].astype(f32))
    return out, next_state


# ---------------------------------------------------------------------------
# Deterministic synthetic "wiring" + parameter init (mirrors _allocate_parameters)
# ---------------------------------------------------------------------------
def init_params(key, S, N, M):
    ks = jax.random.split(key, 8)
    uni = lambda k, shape, lo, hi: jax.random.uniform(k, shape, jnp.float32, lo, hi)
    polar = jnp.array([-1.0, 0.0, 1.0], jnp.float32)
    probs = jnp.array([0.25, 0.40, 0.35], jnp.float32)
    adj = jax.random.choice(ks[0], polar, (N, N), p=probs)       # adjacency polarity
    s_adj = jax.random.choice(ks[1], polar, (S, N), p=probs)     # sensory adjacency
    return {
        "b": uni(ks[2], (N,), -0.2, 0.2),
        "sigma": uni(ks[3], (N, N), 3.0, 8.0),
        "mu": uni(ks[4], (N, N), 0.3, 0.8),
        "erev": adj,
        "sensory_sigma": uni(ks[5], (S, N), 3.0, 8.0),
        "sensory_mu": uni(ks[6], (S, N), 0.3, 0.8),
        "sensory_erev": s_adj,
        "sparsity_mask": jnp.abs(adj),
        "sensory_sparsity_mask": jnp.abs(s_adj),
        "input_w": jnp.ones((S,), jnp.float32),
        "input_b": jnp.zeros((S,), jnp.float32),
        "output_w": jnp.ones((M,), jnp.float32),
        "output_b": jnp.zeros((M,), jnp.float32),
    }


# Pure-JAX reference of NODECell.forward (follows the PyTorch math; the unfold
# loop in the original overwrites sum_input without feeding v_pre back, so a
# single evaluation is exact).
def reference_forward(inputs, states, params, ode_unfolds=6):
    x = inputs * params["input_w"] + params["input_b"]
    delta = 1.0 / ode_unfolds
    sens = jax.nn.sigmoid((x[:, :, None] - params["sensory_mu"]) * params["sensory_sigma"])
    w_sens = jnp.sum(sens * params["sensory_erev"] * params["sensory_sparsity_mask"], axis=1)
    smx = jax.nn.sigmoid((states[:, :, None] - params["mu"]) * params["sigma"])
    w_st = jnp.sum(smx * params["erev"] * params["sparsity_mask"], axis=1)
    next_state = states + delta * (w_st + w_sens + params["b"])
    M = params["output_w"].shape[0]
    out = next_state[:, :M] * params["output_w"] + params["output_b"]
    return out, next_state


if __name__ == "__main__":
    S, N, M = 8, 32, 4   # sensory_size, state_size (units), motor_size
    key = jax.random.PRNGKey(0)
    k_p, k1, k2, k3, k4 = jax.random.split(key, 5)
    params = init_params(k_p, S, N, M)

    # Case 1: tiny batch (single padded 128-lane tile).
    B = 2
    inputs = jax.random.normal(k1, (B, S), jnp.float32)
    states = jax.random.normal(k2, (B, N), jnp.float32)
    out, next_state = node_cell_forward(inputs, states, params, ode_unfolds=6)
    out = jax.block_until_ready(out)
    next_state = jax.block_until_ready(next_state)
    ref_out, ref_next = reference_forward(inputs, states, params, ode_unfolds=6)
    assert out.shape == (B, M) and next_state.shape == (B, N)
    assert jnp.allclose(out, ref_out, atol=1e-4, rtol=1e-4)
    assert jnp.allclose(next_state, ref_next, atol=1e-4, rtol=1e-4)

    # Case 2: larger batch -> padding + a 2-step "parallel" grid.
    B2 = 200
    inputs2 = jax.random.normal(k3, (B2, S), jnp.float32)
    states2 = jax.random.normal(k4, (B2, N), jnp.float32)
    out2, next2 = node_cell_forward(inputs2, states2, params, ode_unfolds=6)
    out2 = jax.block_until_ready(out2)
    next2 = jax.block_until_ready(next2)
    ref_out2, ref_next2 = reference_forward(inputs2, states2, params, ode_unfolds=6)
    assert out2.shape == (B2, M) and next2.shape == (B2, N)
    assert jnp.allclose(out2, ref_out2, atol=1e-4, rtol=1e-4)
    assert jnp.allclose(next2, ref_next2, atol=1e-4, rtol=1e-4)

    print("KERNEL_OK")
</pallas_src>

<mosaic_0001>
module attributes {stable_mosaic.version = 11 : i64} {
  func.func @node_cell_kernel(%arg0: i32, %arg1: memref<8x128xf32, #tpu.memory_space<vmem>>, %arg2: memref<32x128xf32, #tpu.memory_space<vmem>>, %arg3: memref<32x8xf32, #tpu.memory_space<vmem>>, %arg4: memref<32x8xf32, #tpu.memory_space<vmem>>, %arg5: memref<32x8xf32, #tpu.memory_space<vmem>>, %arg6: memref<32x32xf32, #tpu.memory_space<vmem>>, %arg7: memref<32x32xf32, #tpu.memory_space<vmem>>, %arg8: memref<32x32xf32, #tpu.memory_space<vmem>>, %arg9: memref<32x1xf32, #tpu.memory_space<vmem>>, %arg10: memref<32x128xf32, #tpu.memory_space<vmem>>) attributes {dimension_semantics = [#tpu.dimension_semantics<parallel>], iteration_bounds = array<i64: 1>, scalar_prefetch = 0 : i64, scratch_operands = 0 : i64, tpu.core_type = #tpu.core_type<tc>, window_params = [{transform_indices = @transform_0, window_bounds = array<i64: 8, 128>}, {transform_indices = @transform_1, window_bounds = array<i64: 32, 128>}, {pipeline_mode = #tpu.pipeline_mode<synchronous>, transform_indices = @transform_2, window_bounds = array<i64: 32, 8>}, {pipeline_mode = #tpu.pipeline_mode<synchronous>, transform_indices = @transform_3, window_bounds = array<i64: 32, 8>}, {pipeline_mode = #tpu.pipeline_mode<synchronous>, transform_indices = @transform_4, window_bounds = array<i64: 32, 8>}, {pipeline_mode = #tpu.pipeline_mode<synchronous>, transform_indices = @transform_5, window_bounds = array<i64: 32, 32>}, {pipeline_mode = #tpu.pipeline_mode<synchronous>, transform_indices = @transform_6, window_bounds = array<i64: 32, 32>}, {pipeline_mode = #tpu.pipeline_mode<synchronous>, transform_indices = @transform_7, window_bounds = array<i64: 32, 32>}, {pipeline_mode = #tpu.pipeline_mode<synchronous>, transform_indices = @transform_8, window_bounds = array<i64: 32, 1>}, {transform_indices = @transform_9, window_bounds = array<i64: 32, 128>}]} {
    %c0 = arith.constant 0 : index
    %c0_0 = arith.constant 0 : index
    %0 = vector.load %arg2[%c0, %c0_0] : memref<32x128xf32, #tpu.memory_space<vmem>>, vector<32x128xf32>
    %c0_1 = arith.constant 0 : index
    %c0_2 = arith.constant 0 : index
    %1 = vector.load %arg9[%c0_1, %c0_2] : memref<32x1xf32, #tpu.memory_space<vmem>>, vector<32x1xf32>
    %2 = vector.shape_cast %1 : vector<32x1xf32> to vector<32x1xf32>
    %3 = vector.broadcast %2 : vector<32x1xf32> to vector<32x128xf32>
    %c0_3 = arith.constant 0 : index
    %c0_4 = arith.constant 0 : index
    %4 = vector.load %arg1[%c0_3, %c0_4] : memref<8x128xf32, #tpu.memory_space<vmem>>, vector<1x128xf32>
    %c0_5 = arith.constant 0 : index
    %c0_6 = arith.constant 0 : index
    %5 = vector.load %arg3[%c0_5, %c0_6] : memref<32x8xf32, #tpu.memory_space<vmem>>, vector<32x1xf32>
    %c0_7 = arith.constant 0 : index
    %c0_8 = arith.constant 0 : index
    %6 = vector.load %arg4[%c0_7, %c0_8] : memref<32x8xf32, #tpu.memory_space<vmem>>, vector<32x1xf32>
    %c0_9 = arith.constant 0 : index
    %c0_10 = arith.constant 0 : index
    %7 = vector.load %arg5[%c0_9, %c0_10] : memref<32x8xf32, #tpu.memory_space<vmem>>, vector<32x1xf32>
    %8 = vector.broadcast %4 : vector<1x128xf32> to vector<32x128xf32>
    %9 = vector.broadcast %5 : vector<32x1xf32> to vector<32x128xf32>
    %10 = arith.mulf %8, %9 : vector<32x128xf32>
    %11 = vector.broadcast %6 : vector<32x1xf32> to vector<32x128xf32>
    %12 = arith.addf %10, %11 : vector<32x128xf32>
    %cst = arith.constant 5.000000e-01 : f32
    %13 = vector.broadcast %cst : f32 to vector<32x128xf32>
    %14 = arith.mulf %13, %12 : vector<32x128xf32>
    %15 = math.tanh %14 : vector<32x128xf32>
    %cst_11 = arith.constant 5.000000e-01 : f32
    %16 = vector.broadcast %cst_11 : f32 to vector<32x128xf32>
    %17 = arith.mulf %16, %15 : vector<32x128xf32>
    %cst_12 = arith.constant 5.000000e-01 : f32
    %18 = vector.broadcast %cst_12 : f32 to vector<32x128xf32>
    %19 = arith.addf %17, %18 : vector<32x128xf32>
    %20 = vector.broadcast %7 : vector<32x1xf32> to vector<32x128xf32>
    %21 = arith.mulf %19, %20 : vector<32x128xf32>
    %22 = arith.addf %3, %21 : vector<32x128xf32>
    %c1 = arith.constant 1 : index
    %c0_13 = arith.constant 0 : index
    %23 = vector.load %arg1[%c1, %c0_13] : memref<8x128xf32, #tpu.memory_space<vmem>>, vector<1x128xf32>
    %c0_14 = arith.constant 0 : index
    %c1_15 = arith.constant 1 : index
    %24 = vector.load %arg3[%c0_14, %c1_15] : memref<32x8xf32, #tpu.memory_space<vmem>>, vector<32x1xf32>
    %c0_16 = arith.constant 0 : index
    %c1_17 = arith.constant 1 : index
    %25 = vector.load %arg4[%c0_16, %c1_17] : memref<32x8xf32, #tpu.memory_space<vmem>>, vector<32x1xf32>
    %c0_18 = arith.constant 0 : index
    %c1_19 = arith.constant 1 : index
    %26 = vector.load %arg5[%c0_18, %c1_19] : memref<32x8xf32, #tpu.memory_space<vmem>>, vector<32x1xf32>
    %27 = vector.broadcast %23 : vector<1x128xf32> to vector<32x128xf32>
    %28 = vector.broadcast %24 : vector<32x1xf32> to vector<32x128xf32>
    %29 = arith.mulf %27, %28 : vector<32x128xf32>
    %30 = vector.broadcast %25 : vector<32x1xf32> to vector<32x128xf32>
    %31 = arith.addf %29, %30 : vector<32x128xf32>
    %cst_20 = arith.constant 5.000000e-01 : f32
    %32 = vector.broadcast %cst_20 : f32 to vector<32x128xf32>
    %33 = arith.mulf %32, %31 : vector<32x128xf32>
    %34 = math.tanh %33 : vector<32x128xf32>
    %cst_21 = arith.constant 5.000000e-01 : f32
    %35 = vector.broadcast %cst_21 : f32 to vector<32x128xf32>
    %36 = arith.mulf %35, %34 : vector<32x128xf32>
    %cst_22 = arith.constant 5.000000e-01 : f32
    %37 = vector.broadcast %cst_22 : f32 to vector<32x128xf32>
    %38 = arith.addf %36, %37 : vector<32x128xf32>
    %39 = vector.broadcast %26 : vector<32x1xf32> to vector<32x128xf32>
    %40 = arith.mulf %38, %39 : vector<32x128xf32>
    %41 = arith.addf %22, %40 : vector<32x128xf32>
    %c2 = arith.constant 2 : index
    %c0_23 = arith.constant 0 : index
    %42 = vector.load %arg1[%c2, %c0_23] : memref<8x128xf32, #tpu.memory_space<vmem>>, vector<1x128xf32>
    %c0_24 = arith.constant 0 : index
    %c2_25 = arith.constant 2 : index
    %43 = vector.load %arg3[%c0_24, %c2_25] : memref<32x8xf32, #tpu.memory_space<vmem>>, vector<32x1xf32>
    %c0_26 = arith.constant 0 : index
    %c2_27 = arith.constant 2 : index
    %44 = vector.load %arg4[%c0_26, %c2_27] : memref<32x8xf32, #tpu.memory_space<vmem>>, vector<32x1xf32>
    %c0_28 = arith.constant 0 : index
    %c2_29 = arith.constant 2 : index
    %45 = vector.load %arg5[%c0_28, %c2_29] : memref<32x8xf32, #tpu.memory_space<vmem>>, vector<32x1xf32>
    %46 = vector.broadcast %42 : vector<1x128xf32> to vector<32x128xf32>
    %47 = vector.broadcast %43 : vector<32x1xf32> to vector<32x128xf32>
    %48 = arith.mulf %46, %47 : vector<32x128xf32>
    %49 = vector.broadcast %44 : vector<32x1xf32> to vector<32x128xf32>
    %50 = arith.addf %48, %49 : vector<32x128xf32>
    %cst_30 = arith.constant 5.000000e-01 : f32
    %51 = vector.broadcast %cst_30 : f32 to vector<32x128xf32>
    %52 = arith.mulf %51, %50 : vector<32x128xf32>
    %53 = math.tanh %52 : vector<32x128xf32>
    %cst_31 = arith.constant 5.000000e-01 : f32
    %54 = vector.broadcast %cst_31 : f32 to vector<32x128xf32>
    %55 = arith.mulf %54, %53 : vector<32x128xf32>
    %cst_32 = arith.constant 5.000000e-01 : f32
    %56 = vector.broadcast %cst_32 : f32 to vector<32x128xf32>
    %57 = arith.addf %55, %56 : vector<32x128xf32>
    %58 = vector.broadcast %45 : vector<32x1xf32> to vector<32x128xf32>
    %59 = arith.mulf %57, %58 : vector<32x128xf32>
    %60 = arith.addf %41, %59 : vector<32x128xf32>
    %c3 = arith.constant 3 : index
    %c0_33 = arith.constant 0 : index
    %61 = vector.load %arg1[%c3, %c0_33] : memref<8x128xf32, #tpu.memory_space<vmem>>, vector<1x128xf32>
    %c0_34 = arith.constant 0 : index
    %c3_35 = arith.constant 3 : index
    %62 = vector.load %arg3[%c0_34, %c3_35] : memref<32x8xf32, #tpu.memory_space<vmem>>, vector<32x1xf32>
    %c0_36 = arith.constant 0 : index
    %c3_37 = arith.constant 3 : index
    %63 = vector.load %arg4[%c0_36, %c3_37] : memref<32x8xf32, #tpu.memory_space<vmem>>, vector<32x1xf32>
    %c0_38 = arith.constant 0 : index
    %c3_39 = arith.constant 3 : index
    %64 = vector.load %arg5[%c0_38, %c3_39] : memref<32x8xf32, #tpu.memory_space<vmem>>, vector<32x1xf32>
    %65 = vector.broadcast %61 : vector<1x128xf32> to vector<32x128xf32>
    %66 = vector.broadcast %62 : vector<32x1xf32> to vector<32x128xf32>
    %67 = arith.mulf %65, %66 : vector<32x128xf32>
    %68 = vector.broadcast %63 : vector<32x1xf32> to vector<32x128xf32>
    %69 = arith.addf %67, %68 : vector<32x128xf32>
    %cst_40 = arith.constant 5.000000e-01 : f32
    %70 = vector.broadcast %cst_40 : f32 to vector<32x128xf32>
    %71 = arith.mulf %70, %69 : vector<32x128xf32>
    %72 = math.tanh %71 : vector<32x128xf32>
    %cst_41 = arith.constant 5.000000e-01 : f32
    %73 = vector.broadcast %cst_41 : f32 to vector<32x128xf32>
    %74 = arith.mulf %73, %72 : vector<32x128xf32>
    %cst_42 = arith.constant 5.000000e-01 : f32
    %75 = vector.broadcast %cst_42 : f32 to vector<32x128xf32>
    %76 = arith.addf %74, %75 : vector<32x128xf32>
    %77 = vector.broadcast %64 : vector<32x1xf32> to vector<32x128xf32>
    %78 = arith.mulf %76, %77 : vector<32x128xf32>
    %79 = arith.addf %60, %78 : vector<32x128xf32>
    %c4 = arith.constant 4 : index
    %c0_43 = arith.constant 0 : index
    %80 = vector.load %arg1[%c4, %c0_43] : memref<8x128xf32, #tpu.memory_space<vmem>>, vector<1x128xf32>
    %c0_44 = arith.constant 0 : index
    %c4_45 = arith.constant 4 : index
    %81 = vector.load %arg3[%c0_44, %c4_45] : memref<32x8xf32, #tpu.memory_space<vmem>>, vector<32x1xf32>
    %c0_46 = arith.constant 0 : index
    %c4_47 = arith.constant 4 : index
    %82 = vector.load %arg4[%c0_46, %c4_47] : memref<32x8xf32, #tpu.memory_space<vmem>>, vector<32x1xf32>
    %c0_48 = arith.constant 0 : index
    %c4_49 = arith.constant 4 : index
    %83 = vector.load %arg5[%c0_48, %c4_49] : memref<32x8xf32, #tpu.memory_space<vmem>>, vector<32x1xf32>
    %84 = vector.broadcast %80 : vector<1x128xf32> to vector<32x128xf32>
    %85 = vector.broadcast %81 : vector<32x1xf32> to vector<32x128xf32>
    %86 = arith.mulf %84, %85 : vector<32x128xf32>
    %87 = vector.broadcast %82 : vector<32x1xf32> to vector<32x128xf32>
    %88 = arith.addf %86, %87 : vector<32x128xf32>
    %cst_50 = arith.constant 5.000000e-01 : f32
    %89 = vector.broadcast %cst_50 : f32 to vector<32x128xf32>
    %90 = arith.mulf %89, %88 : vector<32x128xf32>
    %91 = math.tanh %90 : vector<32x128xf32>
    %cst_51 = arith.constant 5.000000e-01 : f32
    %92 = vector.broadcast %cst_51 : f32 to vector<32x128xf32>
    %93 = arith.mulf %92, %91 : vector<32x128xf32>
    %cst_52 = arith.constant 5.000000e-01 : f32
    %94 = vector.broadcast %cst_52 : f32 to vector<32x128xf32>
    %95 = arith.addf %93, %94 : vector<32x128xf32>
    %96 = vector.broadcast %83 : vector<32x1xf32> to vector<32x128xf32>
    %97 = arith.mulf %95, %96 : vector<32x128xf32>
    %98 = arith.addf %79, %97 : vector<32x128xf32>
    %c5 = arith.constant 5 : index
    %c0_53 = arith.constant 0 : index
    %99 = vector.load %arg1[%c5, %c0_53] : memref<8x128xf32, #tpu.memory_space<vmem>>, vector<1x128xf32>
    %c0_54 = arith.constant 0 : index
    %c5_55 = arith.constant 5 : index
    %100 = vector.load %arg3[%c0_54, %c5_55] : memref<32x8xf32, #tpu.memory_space<vmem>>, vector<32x1xf32>
    %c0_56 = arith.constant 0 : index
    %c5_57 = arith.constant 5 : index
    %101 = vector.load %arg4[%c0_56, %c5_57] : memref<32x8xf32, #tpu.memory_space<vmem>>, vector<32x1xf32>
    %c0_58 = arith.constant 0 : index
    %c5_59 = arith.constant 5 : index
    %102 = vector.load %arg5[%c0_58, %c5_59] : memref<32x8xf32, #tpu.memory_space<vmem>>, vector<32x1xf32>
    %103 = vector.broadcast %99 : vector<1x128xf32> to vector<32x128xf32>
    %104 = vector.broadcast %100 : vector<32x1xf32> to vector<32x128xf32>
    %105 = arith.mulf %103, %104 : vector<32x128xf32>
    %106 = vector.broadcast %101 : vector<32x1xf32> to vector<32x128xf32>
    %107 = arith.addf %105, %106 : vector<32x128xf32>
    %cst_60 = arith.constant 5.000000e-01 : f32
    %108 = vector.broadcast %cst_60 : f32 to vector<32x128xf32>
    %109 = arith.mulf %108, %107 : vector<32x128xf32>
    %110 = math.tanh %109 : vector<32x128xf32>
    %cst_61 = arith.constant 5.000000e-01 : f32
    %111 = vector.broadcast %cst_61 : f32 to vector<32x128xf32>
    %112 = arith.mulf %111, %110 : vector<32x128xf32>
    %cst_62 = arith.constant 5.000000e-01 : f32
    %113 = vector.broadcast %cst_62 : f32 to vector<32x128xf32>
    %114 = arith.addf %112, %113 : vector<32x128xf32>
    %115 = vector.broadcast %102 : vector<32x1xf32> to vector<32x128xf32>
    %116 = arith.mulf %114, %115 : vector<32x128xf32>
    %117 = arith.addf %98, %116 : vector<32x128xf32>
    %c6 = arith.constant 6 : index
    %c0_63 = arith.constant 0 : index
    %118 = vector.load %arg1[%c6, %c0_63] : memref<8x128xf32, #tpu.memory_space<vmem>>, vector<1x128xf32>
    %c0_64 = arith.constant 0 : index
    %c6_65 = arith.constant 6 : index
    %119 = vector.load %arg3[%c0_64, %c6_65] : memref<32x8xf32, #tpu.memory_space<vmem>>, vector<32x1xf32>
    %c0_66 = arith.constant 0 : index
    %c6_67 = arith.constant 6 : index
    %120 = vector.load %arg4[%c0_66, %c6_67] : memref<32x8xf32, #tpu.memory_space<vmem>>, vector<32x1xf32>
    %c0_68 = arith.constant 0 : index
    %c6_69 = arith.constant 6 : index
    %121 = vector.load %arg5[%c0_68, %c6_69] : memref<32x8xf32, #tpu.memory_space<vmem>>, vector<32x1xf32>
    %122 = vector.broadcast %118 : vector<1x128xf32> to vector<32x128xf32>
    %123 = vector.broadcast %119 : vector<32x1xf32> to vector<32x128xf32>
    %124 = arith.mulf %122, %123 : vector<32x128xf32>
    %125 = vector.broadcast %120 : vector<32x1xf32> to vector<32x128xf32>
    %126 = arith.addf %124, %125 : vector<32x128xf32>
    %cst_70 = arith.constant 5.000000e-01 : f32
    %127 = vector.broadcast %cst_70 : f32 to vector<32x128xf32>
    %128 = arith.mulf %127, %126 : vector<32x128xf32>
    %129 = math.tanh %128 : vector<32x128xf32>
    %cst_71 = arith.constant 5.000000e-01 : f32
    %130 = vector.broadcast %cst_71 : f32 to vector<32x128xf32>
    %131 = arith.mulf %130, %129 : vector<32x128xf32>
    %cst_72 = arith.constant 5.000000e-01 : f32
    %132 = vector.broadcast %cst_72 : f32 to vector<32x128xf32>
    %133 = arith.addf %131, %132 : vector<32x128xf32>
    %134 = vector.broadcast %121 : vector<32x1xf32> to vector<32x128xf32>
    %135 = arith.mulf %133, %134 : vector<32x128xf32>
    %136 = arith.addf %117, %135 : vector<32x128xf32>
    %c7 = arith.constant 7 : index
    %c0_73 = arith.constant 0 : index
    %137 = vector.load %arg1[%c7, %c0_73] : memref<8x128xf32, #tpu.memory_space<vmem>>, vector<1x128xf32>
    %c0_74 = arith.constant 0 : index
    %c7_75 = arith.constant 7 : index
    %138 = vector.load %arg3[%c0_74, %c7_75] : memref<32x8xf32, #tpu.memory_space<vmem>>, vector<32x1xf32>
    %c0_76 = arith.constant 0 : index
    %c7_77 = arith.constant 7 : index
    %139 = vector.load %arg4[%c0_76, %c7_77] : memref<32x8xf32, #tpu.memory_space<vmem>>, vector<32x1xf32>
    %c0_78 = arith.constant 0 : index
    %c7_79 = arith.constant 7 : index
    %140 = vector.load %arg5[%c0_78, %c7_79] : memref<32x8xf32, #tpu.memory_space<vmem>>, vector<32x1xf32>
    %141 = vector.broadcast %137 : vector<1x128xf32> to vector<32x128xf32>
    %142 = vector.broadcast %138 : vector<32x1xf32> to vector<32x128xf32>
    %143 = arith.mulf %141, %142 : vector<32x128xf32>
    %144 = vector.broadcast %139 : vector<32x1xf32> to vector<32x128xf32>
    %145 = arith.addf %143, %144 : vector<32x128xf32>
    %cst_80 = arith.constant 5.000000e-01 : f32
    %146 = vector.broadcast %cst_80 : f32 to vector<32x128xf32>
    %147 = arith.mulf %146, %145 : vector<32x128xf32>
    %148 = math.tanh %147 : vector<32x128xf32>
    %cst_81 = arith.constant 5.000000e-01 : f32
    %149 = vector.broadcast %cst_81 : f32 to vector<32x128xf32>
    %150 = arith.mulf %149, %148 : vector<32x128xf32>
    %cst_82 = arith.constant 5.000000e-01 : f32
    %151 = vector.broadcast %cst_82 : f32 to vector<32x128xf32>
    %152 = arith.addf %150, %151 : vector<32x128xf32>
    %153 = vector.broadcast %140 : vector<32x1xf32> to vector<32x128xf32>
    %154 = arith.mulf %152, %153 : vector<32x128xf32>
    %155 = arith.addf %136, %154 : vector<32x128xf32>
    %c0_83 = arith.constant 0 : index
    %c0_84 = arith.constant 0 : index
    %156 = vector.load %arg2[%c0_83, %c0_84] : memref<32x128xf32, #tpu.memory_space<vmem>>, vector<1x128xf32>
    %c0_85 = arith.constant 0 : index
    %c0_86 = arith.constant 0 : index
    %157 = vector.load %arg6[%c0_85, %c0_86] : memref<32x32xf32, #tpu.memory_space<vmem>>, vector<32x1xf32>
    %c0_87 = arith.constant 0 : index
    %c0_88 = arith.constant 0 : index
    %158 = vector.load %arg7[%c0_87, %c0_88] : memref<32x32xf32, #tpu.memory_space<vmem>>, vector<32x1xf32>
    %c0_89 = arith.constant 0 : index
    %c0_90 = arith.constant 0 : index
    %159 = vector.load %arg8[%c0_89, %c0_90] : memref<32x32xf32, #tpu.memory_space<vmem>>, vector<32x1xf32>
    %160 = vector.broadcast %156 : vector<1x128xf32> to vector<32x128xf32>
    %161 = vector.broadcast %157 : vector<32x1xf32> to vector<32x128xf32>
    %162 = arith.mulf %160, %161 : vector<32x128xf32>
    %163 = vector.broadcast %158 : vector<32x1xf32> to vector<32x128xf32>
    %164 = arith.addf %162, %163 : vector<32x128xf32>
    %cst_91 = arith.constant 5.000000e-01 : f32
    %165 = vector.broadcast %cst_91 : f32 to vector<32x128xf32>
    %166 = arith.mulf %165, %164 : vector<32x128xf32>
    %167 = math.tanh %166 : vector<32x128xf32>
    %cst_92 = arith.constant 5.000000e-01 : f32
    %168 = vector.broadcast %cst_92 : f32 to vector<32x128xf32>
    %169 = arith.mulf %168, %167 : vector<32x128xf32>
    %cst_93 = arith.constant 5.000000e-01 : f32
    %170 = vector.broadcast %cst_93 : f32 to vector<32x128xf32>
    %171 = arith.addf %169, %170 : vector<32x128xf32>
    %172 = vector.broadcast %159 : vector<32x1xf32> to vector<32x128xf32>
    %173 = arith.mulf %171, %172 : vector<32x128xf32>
    %174 = arith.addf %155, %173 : vector<32x128xf32>
    %c1_94 = arith.constant 1 : index
    %c0_95 = arith.constant 0 : index
    %175 = vector.load %arg2[%c1_94, %c0_95] : memref<32x128xf32, #tpu.memory_space<vmem>>, vector<1x128xf32>
    %c0_96 = arith.constant 0 : index
    %c1_97 = arith.constant 1 : index
    %176 = vector.load %arg6[%c0_96, %c1_97] : memref<32x32xf32, #tpu.memory_space<vmem>>, vector<32x1xf32>
    %c0_98 = arith.constant 0 : index
    %c1_99 = arith.constant 1 : index
    %177 = vector.load %arg7[%c0_98, %c1_99] : memref<32x32xf32, #tpu.memory_space<vmem>>, vector<32x1xf32>
    %c0_100 = arith.constant 0 : index
    %c1_101 = arith.constant 1 : index
    %178 = vector.load %arg8[%c0_100, %c1_101] : memref<32x32xf32, #tpu.memory_space<vmem>>, vector<32x1xf32>
    %179 = vector.broadcast %175 : vector<1x128xf32> to vector<32x128xf32>
    %180 = vector.broadcast %176 : vector<32x1xf32> to vector<32x128xf32>
    %181 = arith.mulf %179, %180 : vector<32x128xf32>
    %182 = vector.broadcast %177 : vector<32x1xf32> to vector<32x128xf32>
    %183 = arith.addf %181, %182 : vector<32x128xf32>
    %cst_102 = arith.constant 5.000000e-01 : f32
    %184 = vector.broadcast %cst_102 : f32 to vector<32x128xf32>
    %185 = arith.mulf %184, %183 : vector<32x128xf32>
    %186 = math.tanh %185 : vector<32x128xf32>
    %cst_103 = arith.constant 5.000000e-01 : f32
    %187 = vector.broadcast %cst_103 : f32 to vector<32x128xf32>
    %188 = arith.mulf %187, %186 : vector<32x128xf32>
    %cst_104 = arith.constant 5.000000e-01 : f32
    %189 = vector.broadcast %cst_104 : f32 to vector<32x128xf32>
    %190 = arith.addf %188, %189 : vector<32x128xf32>
    %191 = vector.broadcast %178 : vector<32x1xf32> to vector<32x128xf32>
    %192 = arith.mulf %190, %191 : vector<32x128xf32>
    %193 = arith.addf %174, %192 : vector<32x128xf32>
    %c2_105 = arith.constant 2 : index
    %c0_106 = arith.constant 0 : index
    %194 = vector.load %arg2[%c2_105, %c0_106] : memref<32x128xf32, #tpu.memory_space<vmem>>, vector<1x128xf32>
    %c0_107 = arith.constant 0 : index
    %c2_108 = arith.constant 2 : index
    %195 = vector.load %arg6[%c0_107, %c2_108] : memref<32x32xf32, #tpu.memory_space<vmem>>, vector<32x1xf32>
    %c0_109 = arith.constant 0 : index
    %c2_110 = arith.constant 2 : index
    %196 = vector.load %arg7[%c0_109, %c2_110] : memref<32x32xf32, #tpu.memory_space<vmem>>, vector<32x1xf32>
    %c0_111 = arith.constant 0 : index
    %c2_112 = arith.constant 2 : index
    %197 = vector.load %arg8[%c0_111, %c2_112] : memref<32x32xf32, #tpu.memory_space<vmem>>, vector<32x1xf32>
    %198 = vector.broadcast %194 : vector<1x128xf32> to vector<32x128xf32>
    %199 = vector.broadcast %195 : vector<32x1xf32> to vector<32x128xf32>
    %200 = arith.mulf %198, %199 : vector<32x128xf32>
    %201 = vector.broadcast %196 : vector<32x1xf32> to vector<32x128xf32>
    %202 = arith.addf %200, %201 : vector<32x128xf32>
    %cst_113 = arith.constant 5.000000e-01 : f32
    %203 = vector.broadcast %cst_113 : f32 to vector<32x128xf32>
    %204 = arith.mulf %203, %202 : vector<32x128xf32>
    %205 = math.tanh %204 : vector<32x128xf32>
    %cst_114 = arith.constant 5.000000e-01 : f32
    %206 = vector.broadcast %cst_114 : f32 to vector<32x128xf32>
    %207 = arith.mulf %206, %205 : vector<32x128xf32>
    %cst_115 = arith.constant 5.000000e-01 : f32
    %208 = vector.broadcast %cst_115 : f32 to vector<32x128xf32>
    %209 = arith.addf %207, %208 : vector<32x128xf32>
    %210 = vector.broadcast %197 : vector<32x1xf32> to vector<32x128xf32>
    %211 = arith.mulf %209, %210 : vector<32x128xf32>
    %212 = arith.addf %193, %211 : vector<32x128xf32>
    %c3_116 = arith.constant 3 : index
    %c0_117 = arith.constant 0 : index
    %213 = vector.load %arg2[%c3_116, %c0_117] : memref<32x128xf32, #tpu.memory_space<vmem>>, vector<1x128xf32>
    %c0_118 = arith.constant 0 : index
    %c3_119 = arith.constant 3 : index
    %214 = vector.load %arg6[%c0_118, %c3_119] : memref<32x32xf32, #tpu.memory_space<vmem>>, vector<32x1xf32>
    %c0_120 = arith.constant 0 : index
    %c3_121 = arith.constant 3 : index
    %215 = vector.load %arg7[%c0_120, %c3_121] : memref<32x32xf32, #tpu.memory_space<vmem>>, vector<32x1xf32>
    %c0_122 = arith.constant 0 : index
    %c3_123 = arith.constant 3 : index
    %216 = vector.load %arg8[%c0_122, %c3_123] : memref<32x32xf32, #tpu.memory_space<vmem>>, vector<32x1xf32>
    %217 = vector.broadcast %213 : vector<1x128xf32> to vector<32x128xf32>
    %218 = vector.broadcast %214 : vector<32x1xf32> to vector<32x128xf32>
    %219 = arith.mulf %217, %218 : vector<32x128xf32>
    %220 = vector.broadcast %215 : vector<32x1xf32> to vector<32x128xf32>
    %221 = arith.addf %219, %220 : vector<32x128xf32>
    %cst_124 = arith.constant 5.000000e-01 : f32
    %222 = vector.broadcast %cst_124 : f32 to vector<32x128xf32>
    %223 = arith.mulf %222, %221 : vector<32x128xf32>
    %224 = math.tanh %223 : vector<32x128xf32>
    %cst_125 = arith.constant 5.000000e-01 : f32
    %225 = vector.broadcast %cst_125 : f32 to vector<32x128xf32>
    %226 = arith.mulf %225, %224 : vector<32x128xf32>
    %cst_126 = arith.constant 5.000000e-01 : f32
    %227 = vector.broadcast %cst_126 : f32 to vector<32x128xf32>
    %228 = arith.addf %226, %227 : vector<32x128xf32>
    %229 = vector.broadcast %216 : vector<32x1xf32> to vector<32x128xf32>
    %230 = arith.mulf %228, %229 : vector<32x128xf32>
    %231 = arith.addf %212, %230 : vector<32x128xf32>
    %c4_127 = arith.constant 4 : index
    %c0_128 = arith.constant 0 : index
    %232 = vector.load %arg2[%c4_127, %c0_128] : memref<32x128xf32, #tpu.memory_space<vmem>>, vector<1x128xf32>
    %c0_129 = arith.constant 0 : index
    %c4_130 = arith.constant 4 : index
    %233 = vector.load %arg6[%c0_129, %c4_130] : memref<32x32xf32, #tpu.memory_space<vmem>>, vector<32x1xf32>
    %c0_131 = arith.constant 0 : index
    %c4_132 = arith.constant 4 : index
    %234 = vector.load %arg7[%c0_131, %c4_132] : memref<32x32xf32, #tpu.memory_space<vmem>>, vector<32x1xf32>
    %c0_133 = arith.constant 0 : index
    %c4_134 = arith.constant 4 : index
    %235 = vector.load %arg8[%c0_133, %c4_134] : memref<32x32xf32, #tpu.memory_space<vmem>>, vector<32x1xf32>
    %236 = vector.broadcast %232 : vector<1x128xf32> to vector<32x128xf32>
    %237 = vector.broadcast %233 : vector<32x1xf32> to vector<32x128xf32>
    %238 = arith.mulf %236, %237 : vector<32x128xf32>
    %239 = vector.broadcast %234 : vector<32x1xf32> to vector<32x128xf32>
    %240 = arith.addf %238, %239 : vector<32x128xf32>
    %cst_135 = arith.constant 5.000000e-01 : f32
    %241 = vector.broadcast %cst_135 : f32 to vector<32x128xf32>
    %242 = arith.mulf %241, %240 : vector<32x128xf32>
    %243 = math.tanh %242 : vector<32x128xf32>
    %cst_136 = arith.constant 5.000000e-01 : f32
    %244 = vector.broadcast %cst_136 : f32 to vector<32x128xf32>
    %245 = arith.mulf %244, %243 : vector<32x128xf32>
    %cst_137 = arith.constant 5.000000e-01 : f32
    %246 = vector.broadcast %cst_137 : f32 to vector<32x128xf32>
    %247 = arith.addf %245, %246 : vector<32x128xf32>
    %248 = vector.broadcast %235 : vector<32x1xf32> to vector<32x128xf32>
    %249 = arith.mulf %247, %248 : vector<32x128xf32>
    %250 = arith.addf %231, %249 : vector<32x128xf32>
    %c5_138 = arith.constant 5 : index
    %c0_139 = arith.constant 0 : index
    %251 = vector.load %arg2[%c5_138, %c0_139] : memref<32x128xf32, #tpu.memory_space<vmem>>, vector<1x128xf32>
    %c0_140 = arith.constant 0 : index
    %c5_141 = arith.constant 5 : index
    %252 = vector.load %arg6[%c0_140, %c5_141] : memref<32x32xf32, #tpu.memory_space<vmem>>, vector<32x1xf32>
    %c0_142 = arith.constant 0 : index
    %c5_143 = arith.constant 5 : index
    %253 = vector.load %arg7[%c0_142, %c5_143] : memref<32x32xf32, #tpu.memory_space<vmem>>, vector<32x1xf32>
    %c0_144 = arith.constant 0 : index
    %c5_145 = arith.constant 5 : index
    %254 = vector.load %arg8[%c0_144, %c5_145] : memref<32x32xf32, #tpu.memory_space<vmem>>, vector<32x1xf32>
    %255 = vector.broadcast %251 : vector<1x128xf32> to vector<32x128xf32>
    %256 = vector.broadcast %252 : vector<32x1xf32> to vector<32x128xf32>
    %257 = arith.mulf %255, %256 : vector<32x128xf32>
    %258 = vector.broadcast %253 : vector<32x1xf32> to vector<32x128xf32>
    %259 = arith.addf %257, %258 : vector<32x128xf32>
    %cst_146 = arith.constant 5.000000e-01 : f32
    %260 = vector.broadcast %cst_146 : f32 to vector<32x128xf32>
    %261 = arith.mulf %260, %259 : vector<32x128xf32>
    %262 = math.tanh %261 : vector<32x128xf32>
    %cst_147 = arith.constant 5.000000e-01 : f32
    %263 = vector.broadcast %cst_147 : f32 to vector<32x128xf32>
    %264 = arith.mulf %263, %262 : vector<32x128xf32>
    %cst_148 = arith.constant 5.000000e-01 : f32
    %265 = vector.broadcast %cst_148 : f32 to vector<32x128xf32>
    %266 = arith.addf %264, %265 : vector<32x128xf32>
    %267 = vector.broadcast %254 : vector<32x1xf32> to vector<32x128xf32>
    %268 = arith.mulf %266, %267 : vector<32x128xf32>
    %269 = arith.addf %250, %268 : vector<32x128xf32>
    %c6_149 = arith.constant 6 : index
    %c0_150 = arith.constant 0 : index
    %270 = vector.load %arg2[%c6_149, %c0_150] : memref<32x128xf32, #tpu.memory_space<vmem>>, vector<1x128xf32>
    %c0_151 = arith.constant 0 : index
    %c6_152 = arith.constant 6 : index
    %271 = vector.load %arg6[%c0_151, %c6_152] : memref<32x32xf32, #tpu.memory_space<vmem>>, vector<32x1xf32>
    %c0_153 = arith.constant 0 : index
    %c6_154 = arith.constant 6 : index
    %272 = vector.load %arg7[%c0_153, %c6_154] : memref<32x32xf32, #tpu.memory_space<vmem>>, vector<32x1xf32>
    %c0_155 = arith.constant 0 : index
    %c6_156 = arith.constant 6 : index
    %273 = vector.load %arg8[%c0_155, %c6_156] : memref<32x32xf32, #tpu.memory_space<vmem>>, vector<32x1xf32>
    %274 = vector.broadcast %270 : vector<1x128xf32> to vector<32x128xf32>
    %275 = vector.broadcast %271 : vector<32x1xf32> to vector<32x128xf32>
    %276 = arith.mulf %274, %275 : vector<32x128xf32>
    %277 = vector.broadcast %272 : vector<32x1xf32> to vector<32x128xf32>
    %278 = arith.addf %276, %277 : vector<32x128xf32>
    %cst_157 = arith.constant 5.000000e-01 : f32
    %279 = vector.broadcast %cst_157 : f32 to vector<32x128xf32>
    %280 = arith.mulf %279, %278 : vector<32x128xf32>
    %281 = math.tanh %280 : vector<32x128xf32>
    %cst_158 = arith.constant 5.000000e-01 : f32
    %282 = vector.broadcast %cst_158 : f32 to vector<32x128xf32>
    %283 = arith.mulf %282, %281 : vector<32x128xf32>
    %cst_159 = arith.constant 5.000000e-01 : f32
    %284 = vector.broadcast %cst_159 : f32 to vector<32x128xf32>
    %285 = arith.addf %283, %284 : vector<32x128xf32>
    %286 = vector.broadcast %273 : vector<32x1xf32> to vector<32x128xf32>
    %287 = arith.mulf %285, %286 : vector<32x128xf32>
    %288 = arith.addf %269, %287 : vector<32x128xf32>
    %c7_160 = arith.constant 7 : index
    %c0_161 = arith.constant 0 : index
    %289 = vector.load %arg2[%c7_160, %c0_161] : memref<32x128xf32, #tpu.memory_space<vmem>>, vector<1x128xf32>
    %c0_162 = arith.constant 0 : index
    %c7_163 = arith.constant 7 : index
    %290 = vector.load %arg6[%c0_162, %c7_163] : memref<32x32xf32, #tpu.memory_space<vmem>>, vector<32x1xf32>
    %c0_164 = arith.constant 0 : index
    %c7_165 = arith.constant 7 : index
    %291 = vector.load %arg7[%c0_164, %c7_165] : memref<32x32xf32, #tpu.memory_space<vmem>>, vector<32x1xf32>
    %c0_166 = arith.constant 0 : index
    %c7_167 = arith.constant 7 : index
    %292 = vector.load %arg8[%c0_166, %c7_167] : memref<32x32xf32, #tpu.memory_space<vmem>>, vector<32x1xf32>
    %293 = vector.broadcast %289 : vector<1x128xf32> to vector<32x128xf32>
    %294 = vector.broadcast %290 : vector<32x1xf32> to vector<32x128xf32>
    %295 = arith.mulf %293, %294 : vector<32x128xf32>
    %296 = vector.broadcast %291 : vector<32x1xf32> to vector<32x128xf32>
    %297 = arith.addf %295, %296 : vector<32x128xf32>
    %cst_168 = arith.constant 5.000000e-01 : f32
    %298 = vector.broadcast %cst_168 : f32 to vector<32x128xf32>
    %299 = arith.mulf %298, %297 : vector<32x128xf32>
    %300 = math.tanh %299 : vector<32x128xf32>
    %cst_169 = arith.constant 5.000000e-01 : f32
    %301 = vector.broadcast %cst_169 : f32 to vector<32x128xf32>
    %302 = arith.mulf %301, %300 : vector<32x128xf32>
    %cst_170 = arith.constant 5.000000e-01 : f32
    %303 = vector.broadcast %cst_170 : f32 to vector<32x128xf32>
    %304 = arith.addf %302, %303 : vector<32x128xf32>
    %305 = vector.broadcast %292 : vector<32x1xf32> to vector<32x128xf32>
    %306 = arith.mulf %304, %305 : vector<32x128xf32>
    %307 = arith.addf %288, %306 : vector<32x128xf32>
    %c8 = arith.constant 8 : index
    %c0_171 = arith.constant 0 : index
    %308 = vector.load %arg2[%c8, %c0_171] : memref<32x128xf32, #tpu.memory_space<vmem>>, vector<1x128xf32>
    %c0_172 = arith.constant 0 : index
    %c8_173 = arith.constant 8 : index
    %309 = vector.load %arg6[%c0_172, %c8_173] : memref<32x32xf32, #tpu.memory_space<vmem>>, vector<32x1xf32>
    %c0_174 = arith.constant 0 : index
    %c8_175 = arith.constant 8 : index
    %310 = vector.load %arg7[%c0_174, %c8_175] : memref<32x32xf32, #tpu.memory_space<vmem>>, vector<32x1xf32>
    %c0_176 = arith.constant 0 : index
    %c8_177 = arith.constant 8 : index
    %311 = vector.load %arg8[%c0_176, %c8_177] : memref<32x32xf32, #tpu.memory_space<vmem>>, vector<32x1xf32>
    %312 = vector.broadcast %308 : vector<1x128xf32> to vector<32x128xf32>
    %313 = vector.broadcast %309 : vector<32x1xf32> to vector<32x128xf32>
    %314 = arith.mulf %312, %313 : vector<32x128xf32>
    %315 = vector.broadcast %310 : vector<32x1xf32> to vector<32x128xf32>
    %316 = arith.addf %314, %315 : vector<32x128xf32>
    %cst_178 = arith.constant 5.000000e-01 : f32
    %317 = vector.broadcast %cst_178 : f32 to vector<32x128xf32>
    %318 = arith.mulf %317, %316 : vector<32x128xf32>
    %319 = math.tanh %318 : vector<32x128xf32>
    %cst_179 = arith.constant 5.000000e-01 : f32
    %320 = vector.broadcast %cst_179 : f32 to vector<32x128xf32>
    %321 = arith.mulf %320, %319 : vector<32x128xf32>
    %cst_180 = arith.constant 5.000000e-01 : f32
    %322 = vector.broadcast %cst_180 : f32 to vector<32x128xf32>
    %323 = arith.addf %321, %322 : vector<32x128xf32>
    %324 = vector.broadcast %311 : vector<32x1xf32> to vector<32x128xf32>
    %325 = arith.mulf %323, %324 : vector<32x128xf32>
    %326 = arith.addf %307, %325 : vector<32x128xf32>
    %c9 = arith.constant 9 : index
    %c0_181 = arith.constant 0 : index
    %327 = vector.load %arg2[%c9, %c0_181] : memref<32x128xf32, #tpu.memory_space<vmem>>, vector<1x128xf32>
    %c0_182 = arith.constant 0 : index
    %c9_183 = arith.constant 9 : index
    %328 = vector.load %arg6[%c0_182, %c9_183] : memref<32x32xf32, #tpu.memory_space<vmem>>, vector<32x1xf32>
    %c0_184 = arith.constant 0 : index
    %c9_185 = arith.constant 9 : index
    %329 = vector.load %arg7[%c0_184, %c9_185] : memref<32x32xf32, #tpu.memory_space<vmem>>, vector<32x1xf32>
    %c0_186 = arith.constant 0 : index
    %c9_187 = arith.constant 9 : index
    %330 = vector.load %arg8[%c0_186, %c9_187] : memref<32x32xf32, #tpu.memory_space<vmem>>, vector<32x1xf32>
    %331 = vector.broadcast %327 : vector<1x128xf32> to vector<32x128xf32>
    %332 = vector.broadcast %328 : vector<32x1xf32> to vector<32x128xf32>
    %333 = arith.mulf %331, %332 : vector<32x128xf32>
    %334 = vector.broadcast %329 : vector<32x1xf32> to vector<32x128xf32>
    %335 = arith.addf %333, %334 : vector<32x128xf32>
    %cst_188 = arith.constant 5.000000e-01 : f32
    %336 = vector.broadcast %cst_188 : f32 to vector<32x128xf32>
    %337 = arith.mulf %336, %335 : vector<32x128xf32>
    %338 = math.tanh %337 : vector<32x128xf32>
    %cst_189 = arith.constant 5.000000e-01 : f32
    %339 = vector.broadcast %cst_189 : f32 to vector<32x128xf32>
    %340 = arith.mulf %339, %338 : vector<32x128xf32>
    %cst_190 = arith.constant 5.000000e-01 : f32
    %341 = vector.broadcast %cst_190 : f32 to vector<32x128xf32>
    %342 = arith.addf %340, %341 : vector<32x128xf32>
    %343 = vector.broadcast %330 : vector<32x1xf32> to vector<32x128xf32>
    %344 = arith.mulf %342, %343 : vector<32x128xf32>
    %345 = arith.addf %326, %344 : vector<32x128xf32>
    %c10 = arith.constant 10 : index
    %c0_191 = arith.constant 0 : index
    %346 = vector.load %arg2[%c10, %c0_191] : memref<32x128xf32, #tpu.memory_space<vmem>>, vector<1x128xf32>
    %c0_192 = arith.constant 0 : index
    %c10_193 = arith.constant 10 : index
    %347 = vector.load %arg6[%c0_192, %c10_193] : memref<32x32xf32, #tpu.memory_space<vmem>>, vector<32x1xf32>
    %c0_194 = arith.constant 0 : index
    %c10_195 = arith.constant 10 : index
    %348 = vector.load %arg7[%c0_194, %c10_195] : memref<32x32xf32, #tpu.memory_space<vmem>>, vector<32x1xf32>
    %c0_196 = arith.constant 0 : index
    %c10_197 = arith.constant 10 : index
    %349 = vector.load %arg8[%c0_196, %c10_197] : memref<32x32xf32, #tpu.memory_space<vmem>>, vector<32x1xf32>
    %350 = vector.broadcast %346 : vector<1x128xf32> to vector<32x128xf32>
    %351 = vector.broadcast %347 : vector<32x1xf32> to vector<32x128xf32>
    %352 = arith.mulf %350, %351 : vector<32x128xf32>
    %353 = vector.broadcast %348 : vector<32x1xf32> to vector<32x128xf32>
    %354 = arith.addf %352, %353 : vector<32x128xf32>
    %cst_198 = arith.constant 5.000000e-01 : f32
    %355 = vector.broadcast %cst_198 : f32 to vector<32x128xf32>
    %356 = arith.mulf %355, %354 : vector<32x128xf32>
    %357 = math.tanh %356 : vector<32x128xf32>
    %cst_199 = arith.constant 5.000000e-01 : f32
    %358 = vector.broadcast %cst_199 : f32 to vector<32x128xf32>
    %359 = arith.mulf %358, %357 : vector<32x128xf32>
    %cst_200 = arith.constant 5.000000e-01 : f32
    %360 = vector.broadcast %cst_200 : f32 to vector<32x128xf32>
    %361 = arith.addf %359, %360 : vector<32x128xf32>
    %362 = vector.broadcast %349 : vector<32x1xf32> to vector<32x128xf32>
    %363 = arith.mulf %361, %362 : vector<32x128xf32>
    %364 = arith.addf %345, %363 : vector<32x128xf32>
    %c11 = arith.constant 11 : index
    %c0_201 = arith.constant 0 : index
    %365 = vector.load %arg2[%c11, %c0_201] : memref<32x128xf32, #tpu.memory_space<vmem>>, vector<1x128xf32>
    %c0_202 = arith.constant 0 : index
    %c11_203 = arith.constant 11 : index
    %366 = vector.load %arg6[%c0_202, %c11_203] : memref<32x32xf32, #tpu.memory_space<vmem>>, vector<32x1xf32>
    %c0_204 = arith.constant 0 : index
    %c11_205 = arith.constant 11 : index
    %367 = vector.load %arg7[%c0_204, %c11_205] : memref<32x32xf32, #tpu.memory_space<vmem>>, vector<32x1xf32>
    %c0_206 = arith.constant 0 : index
    %c11_207 = arith.constant 11 : index
    %368 = vector.load %arg8[%c0_206, %c11_207] : memref<32x32xf32, #tpu.memory_space<vmem>>, vector<32x1xf32>
    %369 = vector.broadcast %365 : vector<1x128xf32> to vector<32x128xf32>
    %370 = vector.broadcast %366 : vector<32x1xf32> to vector<32x128xf32>
    %371 = arith.mulf %369, %370 : vector<32x128xf32>
    %372 = vector.broadcast %367 : vector<32x1xf32> to vector<32x128xf32>
    %373 = arith.addf %371, %372 : vector<32x128xf32>
    %cst_208 = arith.constant 5.000000e-01 : f32
    %374 = vector.broadcast %cst_208 : f32 to vector<32x128xf32>
    %375 = arith.mulf %374, %373 : vector<32x128xf32>
    %376 = math.tanh %375 : vector<32x128xf32>
    %cst_209 = arith.constant 5.000000e-01 : f32
    %377 = vector.broadcast %cst_209 : f32 to vector<32x128xf32>
    %378 = arith.mulf %377, %376 : vector<32x128xf32>
    %cst_210 = arith.constant 5.000000e-01 : f32
    %379 = vector.broadcast %cst_210 : f32 to vector<32x128xf32>
    %380 = arith.addf %378, %379 : vector<32x128xf32>
    %381 = vector.broadcast %368 : vector<32x1xf32> to vector<32x128xf32>
    %382 = arith.mulf %380, %381 : vector<32x128xf32>
    %383 = arith.addf %364, %382 : vector<32x128xf32>
    %c12 = arith.constant 12 : index
    %c0_211 = arith.constant 0 : index
    %384 = vector.load %arg2[%c12, %c0_211] : memref<32x128xf32, #tpu.memory_space<vmem>>, vector<1x128xf32>
    %c0_212 = arith.constant 0 : index
    %c12_213 = arith.constant 12 : index
    %385 = vector.load %arg6[%c0_212, %c12_213] : memref<32x32xf32, #tpu.memory_space<vmem>>, vector<32x1xf32>
    %c0_214 = arith.constant 0 : index
    %c12_215 = arith.constant 12 : index
    %386 = vector.load %arg7[%c0_214, %c12_215] : memref<32x32xf32, #tpu.memory_space<vmem>>, vector<32x1xf32>
    %c0_216 = arith.constant 0 : index
    %c12_217 = arith.constant 12 : index
    %387 = vector.load %arg8[%c0_216, %c12_217] : memref<32x32xf32, #tpu.memory_space<vmem>>, vector<32x1xf32>
    %388 = vector.broadcast %384 : vector<1x128xf32> to vector<32x128xf32>
    %389 = vector.broadcast %385 : vector<32x1xf32> to vector<32x128xf32>
    %390 = arith.mulf %388, %389 : vector<32x128xf32>
    %391 = vector.broadcast %386 : vector<32x1xf32> to vector<32x128xf32>
    %392 = arith.addf %390, %391 : vector<32x128xf32>
    %cst_218 = arith.constant 5.000000e-01 : f32
    %393 = vector.broadcast %cst_218 : f32 to vector<32x128xf32>
    %394 = arith.mulf %393, %392 : vector<32x128xf32>
    %395 = math.tanh %394 : vector<32x128xf32>
    %cst_219 = arith.constant 5.000000e-01 : f32
    %396 = vector.broadcast %cst_219 : f32 to vector<32x128xf32>
    %397 = arith.mulf %396, %395 : vector<32x128xf32>
    %cst_220 = arith.constant 5.000000e-01 : f32
    %398 = vector.broadcast %cst_220 : f32 to vector<32x128xf32>
    %399 = arith.addf %397, %398 : vector<32x128xf32>
    %400 = vector.broadcast %387 : vector<32x1xf32> to vector<32x128xf32>
    %401 = arith.mulf %399, %400 : vector<32x128xf32>
    %402 = arith.addf %383, %401 : vector<32x128xf32>
    %c13 = arith.constant 13 : index
    %c0_221 = arith.constant 0 : index
    %403 = vector.load %arg2[%c13, %c0_221] : memref<32x128xf32, #tpu.memory_space<vmem>>, vector<1x128xf32>
    %c0_222 = arith.constant 0 : index
    %c13_223 = arith.constant 13 : index
    %404 = vector.load %arg6[%c0_222, %c13_223] : memref<32x32xf32, #tpu.memory_space<vmem>>, vector<32x1xf32>
    %c0_224 = arith.constant 0 : index
    %c13_225 = arith.constant 13 : index
    %405 = vector.load %arg7[%c0_224, %c13_225] : memref<32x32xf32, #tpu.memory_space<vmem>>, vector<32x1xf32>
    %c0_226 = arith.constant 0 : index
    %c13_227 = arith.constant 13 : index
    %406 = vector.load %arg8[%c0_226, %c13_227] : memref<32x32xf32, #tpu.memory_space<vmem>>, vector<32x1xf32>
    %407 = vector.broadcast %403 : vector<1x128xf32> to vector<32x128xf32>
    %408 = vector.broadcast %404 : vector<32x1xf32> to vector<32x128xf32>
    %409 = arith.mulf %407, %408 : vector<32x128xf32>
    %410 = vector.broadcast %405 : vector<32x1xf32> to vector<32x128xf32>
    %411 = arith.addf %409, %410 : vector<32x128xf32>
    %cst_228 = arith.constant 5.000000e-01 : f32
    %412 = vector.broadcast %cst_228 : f32 to vector<32x128xf32>
    %413 = arith.mulf %412, %411 : vector<32x128xf32>
    %414 = math.tanh %413 : vector<32x128xf32>
    %cst_229 = arith.constant 5.000000e-01 : f32
    %415 = vector.broadcast %cst_229 : f32 to vector<32x128xf32>
    %416 = arith.mulf %415, %414 : vector<32x128xf32>
    %cst_230 = arith.constant 5.000000e-01 : f32
    %417 = vector.broadcast %cst_230 : f32 to vector<32x128xf32>
    %418 = arith.addf %416, %417 : vector<32x128xf32>
    %419 = vector.broadcast %406 : vector<32x1xf32> to vector<32x128xf32>
    %420 = arith.mulf %418, %419 : vector<32x128xf32>
    %421 = arith.addf %402, %420 : vector<32x128xf32>
    %c14 = arith.constant 14 : index
    %c0_231 = arith.constant 0 : index
    %422 = vector.load %arg2[%c14, %c0_231] : memref<32x128xf32, #tpu.memory_space<vmem>>, vector<1x128xf32>
    %c0_232 = arith.constant 0 : index
    %c14_233 = arith.constant 14 : index
    %423 = vector.load %arg6[%c0_232, %c14_233] : memref<32x32xf32, #tpu.memory_space<vmem>>, vector<32x1xf32>
    %c0_234 = arith.constant 0 : index
    %c14_235 = arith.constant 14 : index
    %424 = vector.load %arg7[%c0_234, %c14_235] : memref<32x32xf32, #tpu.memory_space<vmem>>, vector<32x1xf32>
    %c0_236 = arith.constant 0 : index
    %c14_237 = arith.constant 14 : index
    %425 = vector.load %arg8[%c0_236, %c14_237] : memref<32x32xf32, #tpu.memory_space<vmem>>, vector<32x1xf32>
    %426 = vector.broadcast %422 : vector<1x128xf32> to vector<32x128xf32>
    %427 = vector.broadcast %423 : vector<32x1xf32> to vector<32x128xf32>
    %428 = arith.mulf %426, %427 : vector<32x128xf32>
    %429 = vector.broadcast %424 : vector<32x1xf32> to vector<32x128xf32>
    %430 = arith.addf %428, %429 : vector<32x128xf32>
    %cst_238 = arith.constant 5.000000e-01 : f32
    %431 = vector.broadcast %cst_238 : f32 to vector<32x128xf32>
    %432 = arith.mulf %431, %430 : vector<32x128xf32>
    %433 = math.tanh %432 : vector<32x128xf32>
    %cst_239 = arith.constant 5.000000e-01 : f32
    %434 = vector.broadcast %cst_239 : f32 to vector<32x128xf32>
    %435 = arith.mulf %434, %433 : vector<32x128xf32>
    %cst_240 = arith.constant 5.000000e-01 : f32
    %436 = vector.broadcast %cst_240 : f32 to vector<32x128xf32>
    %437 = arith.addf %435, %436 : vector<32x128xf32>
    %438 = vector.broadcast %425 : vector<32x1xf32> to vector<32x128xf32>
    %439 = arith.mulf %437, %438 : vector<32x128xf32>
    %440 = arith.addf %421, %439 : vector<32x128xf32>
    %c15 = arith.constant 15 : index
    %c0_241 = arith.constant 0 : index
    %441 = vector.load %arg2[%c15, %c0_241] : memref<32x128xf32, #tpu.memory_space<vmem>>, vector<1x128xf32>
    %c0_242 = arith.constant 0 : index
    %c15_243 = arith.constant 15 : index
    %442 = vector.load %arg6[%c0_242, %c15_243] : memref<32x32xf32, #tpu.memory_space<vmem>>, vector<32x1xf32>
    %c0_244 = arith.constant 0 : index
    %c15_245 = arith.constant 15 : index
    %443 = vector.load %arg7[%c0_244, %c15_245] : memref<32x32xf32, #tpu.memory_space<vmem>>, vector<32x1xf32>
    %c0_246 = arith.constant 0 : index
    %c15_247 = arith.constant 15 : index
    %444 = vector.load %arg8[%c0_246, %c15_247] : memref<32x32xf32, #tpu.memory_space<vmem>>, vector<32x1xf32>
    %445 = vector.broadcast %441 : vector<1x128xf32> to vector<32x128xf32>
    %446 = vector.broadcast %442 : vector<32x1xf32> to vector<32x128xf32>
    %447 = arith.mulf %445, %446 : vector<32x128xf32>
    %448 = vector.broadcast %443 : vector<32x1xf32> to vector<32x128xf32>
    %449 = arith.addf %447, %448 : vector<32x128xf32>
    %cst_248 = arith.constant 5.000000e-01 : f32
    %450 = vector.broadcast %cst_248 : f32 to vector<32x128xf32>
    %451 = arith.mulf %450, %449 : vector<32x128xf32>
    %452 = math.tanh %451 : vector<32x128xf32>
    %cst_249 = arith.constant 5.000000e-01 : f32
    %453 = vector.broadcast %cst_249 : f32 to vector<32x128xf32>
    %454 = arith.mulf %453, %452 : vector<32x128xf32>
    %cst_250 = arith.constant 5.000000e-01 : f32
    %455 = vector.broadcast %cst_250 : f32 to vector<32x128xf32>
    %456 = arith.addf %454, %455 : vector<32x128xf32>
    %457 = vector.broadcast %444 : vector<32x1xf32> to vector<32x128xf32>
    %458 = arith.mulf %456, %457 : vector<32x128xf32>
    %459 = arith.addf %440, %458 : vector<32x128xf32>
    %c16 = arith.constant 16 : index
    %c0_251 = arith.constant 0 : index
    %460 = vector.load %arg2[%c16, %c0_251] : memref<32x128xf32, #tpu.memory_space<vmem>>, vector<1x128xf32>
    %c0_252 = arith.constant 0 : index
    %c16_253 = arith.constant 16 : index
    %461 = vector.load %arg6[%c0_252, %c16_253] : memref<32x32xf32, #tpu.memory_space<vmem>>, vector<32x1xf32>
    %c0_254 = arith.constant 0 : index
    %c16_255 = arith.constant 16 : index
    %462 = vector.load %arg7[%c0_254, %c16_255] : memref<32x32xf32, #tpu.memory_space<vmem>>, vector<32x1xf32>
    %c0_256 = arith.constant 0 : index
    %c16_257 = arith.constant 16 : index
    %463 = vector.load %arg8[%c0_256, %c16_257] : memref<32x32xf32, #tpu.memory_space<vmem>>, vector<32x1xf32>
    %464 = vector.broadcast %460 : vector<1x128xf32> to vector<32x128xf32>
    %465 = vector.broadcast %461 : vector<32x1xf32> to vector<32x128xf32>
    %466 = arith.mulf %464, %465 : vector<32x128xf32>
    %467 = vector.broadcast %462 : vector<32x1xf32> to vector<32x128xf32>
    %468 = arith.addf %466, %467 : vector<32x128xf32>
    %cst_258 = arith.constant 5.000000e-01 : f32
    %469 = vector.broadcast %cst_258 : f32 to vector<32x128xf32>
    %470 = arith.mulf %469, %468 : vector<32x128xf32>
    %471 = math.tanh %470 : vector<32x128xf32>
    %cst_259 = arith.constant 5.000000e-01 : f32
    %472 = vector.broadcast %cst_259 : f32 to vector<32x128xf32>
    %473 = arith.mulf %472, %471 : vector<32x128xf32>
    %cst_260 = arith.constant 5.000000e-01 : f32
    %474 = vector.broadcast %cst_260 : f32 to vector<32x128xf32>
    %475 = arith.addf %473, %474 : vector<32x128xf32>
    %476 = vector.broadcast %463 : vector<32x1xf32> to vector<32x128xf32>
    %477 = arith.mulf %475, %476 : vector<32x128xf32>
    %478 = arith.addf %459, %477 : vector<32x128xf32>
    %c17 = arith.constant 17 : index
    %c0_261 = arith.constant 0 : index
    %479 = vector.load %arg2[%c17, %c0_261] : memref<32x128xf32, #tpu.memory_space<vmem>>, vector<1x128xf32>
    %c0_262 = arith.constant 0 : index
    %c17_263 = arith.constant 17 : index
    %480 = vector.load %arg6[%c0_262, %c17_263] : memref<32x32xf32, #tpu.memory_space<vmem>>, vector<32x1xf32>
    %c0_264 = arith.constant 0 : index
    %c17_265 = arith.constant 17 : index
    %481 = vector.load %arg7[%c0_264, %c17_265] : memref<32x32xf32, #tpu.memory_space<vmem>>, vector<32x1xf32>
    %c0_266 = arith.constant 0 : index
    %c17_267 = arith.constant 17 : index
    %482 = vector.load %arg8[%c0_266, %c17_267] : memref<32x32xf32, #tpu.memory_space<vmem>>, vector<32x1xf32>
    %483 = vector.broadcast %479 : vector<1x128xf32> to vector<32x128xf32>
    %484 = vector.broadcast %480 : vector<32x1xf32> to vector<32x128xf32>
    %485 = arith.mulf %483, %484 : vector<32x128xf32>
    %486 = vector.broadcast %481 : vector<32x1xf32> to vector<32x128xf32>
    %487 = arith.addf %485, %486 : vector<32x128xf32>
    %cst_268 = arith.constant 5.000000e-01 : f32
    %488 = vector.broadcast %cst_268 : f32 to vector<32x128xf32>
    %489 = arith.mulf %488, %487 : vector<32x128xf32>
    %490 = math.tanh %489 : vector<32x128xf32>
    %cst_269 = arith.constant 5.000000e-01 : f32
    %491 = vector.broadcast %cst_269 : f32 to vector<32x128xf32>
    %492 = arith.mulf %491, %490 : vector<32x128xf32>
    %cst_270 = arith.constant 5.000000e-01 : f32
    %493 = vector.broadcast %cst_270 : f32 to vector<32x128xf32>
    %494 = arith.addf %492, %493 : vector<32x128xf32>
    %495 = vector.broadcast %482 : vector<32x1xf32> to vector<32x128xf32>
    %496 = arith.mulf %494, %495 : vector<32x128xf32>
    %497 = arith.addf %478, %496 : vector<32x128xf32>
    %c18 = arith.constant 18 : index
    %c0_271 = arith.constant 0 : index
    %498 = vector.load %arg2[%c18, %c0_271] : memref<32x128xf32, #tpu.memory_space<vmem>>, vector<1x128xf32>
    %c0_272 = arith.constant 0 : index
    %c18_273 = arith.constant 18 : index
    %499 = vector.load %arg6[%c0_272, %c18_273] : memref<32x32xf32, #tpu.memory_space<vmem>>, vector<32x1xf32>
    %c0_274 = arith.constant 0 : index
    %c18_275 = arith.constant 18 : index
    %500 = vector.load %arg7[%c0_274, %c18_275] : memref<32x32xf32, #tpu.memory_space<vmem>>, vector<32x1xf32>
    %c0_276 = arith.constant 0 : index
    %c18_277 = arith.constant 18 : index
    %501 = vector.load %arg8[%c0_276, %c18_277] : memref<32x32xf32, #tpu.memory_space<vmem>>, vector<32x1xf32>
    %502 = vector.broadcast %498 : vector<1x128xf32> to vector<32x128xf32>
    %503 = vector.broadcast %499 : vector<32x1xf32> to vector<32x128xf32>
    %504 = arith.mulf %502, %503 : vector<32x128xf32>
    %505 = vector.broadcast %500 : vector<32x1xf32> to vector<32x128xf32>
    %506 = arith.addf %504, %505 : vector<32x128xf32>
    %cst_278 = arith.constant 5.000000e-01 : f32
    %507 = vector.broadcast %cst_278 : f32 to vector<32x128xf32>
    %508 = arith.mulf %507, %506 : vector<32x128xf32>
    %509 = math.tanh %508 : vector<32x128xf32>
    %cst_279 = arith.constant 5.000000e-01 : f32
    %510 = vector.broadcast %cst_279 : f32 to vector<32x128xf32>
    %511 = arith.mulf %510, %509 : vector<32x128xf32>
    %cst_280 = arith.constant 5.000000e-01 : f32
    %512 = vector.broadcast %cst_280 : f32 to vector<32x128xf32>
    %513 = arith.addf %511, %512 : vector<32x128xf32>
    %514 = vector.broadcast %501 : vector<32x1xf32> to vector<32x128xf32>
    %515 = arith.mulf %513, %514 : vector<32x128xf32>
    %516 = arith.addf %497, %515 : vector<32x128xf32>
    %c19 = arith.constant 19 : index
    %c0_281 = arith.constant 0 : index
    %517 = vector.load %arg2[%c19, %c0_281] : memref<32x128xf32, #tpu.memory_space<vmem>>, vector<1x128xf32>
    %c0_282 = arith.constant 0 : index
    %c19_283 = arith.constant 19 : index
    %518 = vector.load %arg6[%c0_282, %c19_283] : memref<32x32xf32, #tpu.memory_space<vmem>>, vector<32x1xf32>
    %c0_284 = arith.constant 0 : index
    %c19_285 = arith.constant 19 : index
    %519 = vector.load %arg7[%c0_284, %c19_285] : memref<32x32xf32, #tpu.memory_space<vmem>>, vector<32x1xf32>
    %c0_286 = arith.constant 0 : index
    %c19_287 = arith.constant 19 : index
    %520 = vector.load %arg8[%c0_286, %c19_287] : memref<32x32xf32, #tpu.memory_space<vmem>>, vector<32x1xf32>
    %521 = vector.broadcast %517 : vector<1x128xf32> to vector<32x128xf32>
    %522 = vector.broadcast %518 : vector<32x1xf32> to vector<32x128xf32>
    %523 = arith.mulf %521, %522 : vector<32x128xf32>
    %524 = vector.broadcast %519 : vector<32x1xf32> to vector<32x128xf32>
    %525 = arith.addf %523, %524 : vector<32x128xf32>
    %cst_288 = arith.constant 5.000000e-01 : f32
    %526 = vector.broadcast %cst_288 : f32 to vector<32x128xf32>
    %527 = arith.mulf %526, %525 : vector<32x128xf32>
    %528 = math.tanh %527 : vector<32x128xf32>
    %cst_289 = arith.constant 5.000000e-01 : f32
    %529 = vector.broadcast %cst_289 : f32 to vector<32x128xf32>
    %530 = arith.mulf %529, %528 : vector<32x128xf32>
    %cst_290 = arith.constant 5.000000e-01 : f32
    %531 = vector.broadcast %cst_290 : f32 to vector<32x128xf32>
    %532 = arith.addf %530, %531 : vector<32x128xf32>
    %533 = vector.broadcast %520 : vector<32x1xf32> to vector<32x128xf32>
    %534 = arith.mulf %532, %533 : vector<32x128xf32>
    %535 = arith.addf %516, %534 : vector<32x128xf32>
    %c20 = arith.constant 20 : index
    %c0_291 = arith.constant 0 : index
    %536 = vector.load %arg2[%c20, %c0_291] : memref<32x128xf32, #tpu.memory_space<vmem>>, vector<1x128xf32>
    %c0_292 = arith.constant 0 : index
    %c20_293 = arith.constant 20 : index
    %537 = vector.load %arg6[%c0_292, %c20_293] : memref<32x32xf32, #tpu.memory_space<vmem>>, vector<32x1xf32>
    %c0_294 = arith.constant 0 : index
    %c20_295 = arith.constant 20 : index
    %538 = vector.load %arg7[%c0_294, %c20_295] : memref<32x32xf32, #tpu.memory_space<vmem>>, vector<32x1xf32>
    %c0_296 = arith.constant 0 : index
    %c20_297 = arith.constant 20 : index
    %539 = vector.load %arg8[%c0_296, %c20_297] : memref<32x32xf32, #tpu.memory_space<vmem>>, vector<32x1xf32>
    %540 = vector.broadcast %536 : vector<1x128xf32> to vector<32x128xf32>
    %541 = vector.broadcast %537 : vector<32x1xf32> to vector<32x128xf32>
    %542 = arith.mulf %540, %541 : vector<32x128xf32>
    %543 = vector.broadcast %538 : vector<32x1xf32> to vector<32x128xf32>
    %544 = arith.addf %542, %543 : vector<32x128xf32>
    %cst_298 = arith.constant 5.000000e-01 : f32
    %545 = vector.broadcast %cst_298 : f32 to vector<32x128xf32>
    %546 = arith.mulf %545, %544 : vector<32x128xf32>
    %547 = math.tanh %546 : vector<32x128xf32>
    %cst_299 = arith.constant 5.000000e-01 : f32
    %548 = vector.broadcast %cst_299 : f32 to vector<32x128xf32>
    %549 = arith.mulf %548, %547 : vector<32x128xf32>
    %cst_300 = arith.constant 5.000000e-01 : f32
    %550 = vector.broadcast %cst_300 : f32 to vector<32x128xf32>
    %551 = arith.addf %549, %550 : vector<32x128xf32>
    %552 = vector.broadcast %539 : vector<32x1xf32> to vector<32x128xf32>
    %553 = arith.mulf %551, %552 : vector<32x128xf32>
    %554 = arith.addf %535, %553 : vector<32x128xf32>
    %c21 = arith.constant 21 : index
    %c0_301 = arith.constant 0 : index
    %555 = vector.load %arg2[%c21, %c0_301] : memref<32x128xf32, #tpu.memory_space<vmem>>, vector<1x128xf32>
    %c0_302 = arith.constant 0 : index
    %c21_303 = arith.constant 21 : index
    %556 = vector.load %arg6[%c0_302, %c21_303] : memref<32x32xf32, #tpu.memory_space<vmem>>, vector<32x1xf32>
    %c0_304 = arith.constant 0 : index
    %c21_305 = arith.constant 21 : index
    %557 = vector.load %arg7[%c0_304, %c21_305] : memref<32x32xf32, #tpu.memory_space<vmem>>, vector<32x1xf32>
    %c0_306 = arith.constant 0 : index
    %c21_307 = arith.constant 21 : index
    %558 = vector.load %arg8[%c0_306, %c21_307] : memref<32x32xf32, #tpu.memory_space<vmem>>, vector<32x1xf32>
    %559 = vector.broadcast %555 : vector<1x128xf32> to vector<32x128xf32>
    %560 = vector.broadcast %556 : vector<32x1xf32> to vector<32x128xf32>
    %561 = arith.mulf %559, %560 : vector<32x128xf32>
    %562 = vector.broadcast %557 : vector<32x1xf32> to vector<32x128xf32>
    %563 = arith.addf %561, %562 : vector<32x128xf32>
    %cst_308 = arith.constant 5.000000e-01 : f32
    %564 = vector.broadcast %cst_308 : f32 to vector<32x128xf32>
    %565 = arith.mulf %564, %563 : vector<32x128xf32>
    %566 = math.tanh %565 : vector<32x128xf32>
    %cst_309 = arith.constant 5.000000e-01 : f32
    %567 = vector.broadcast %cst_309 : f32 to vector<32x128xf32>
    %568 = arith.mulf %567, %566 : vector<32x128xf32>
    %cst_310 = arith.constant 5.000000e-01 : f32
    %569 = vector.broadcast %cst_310 : f32 to vector<32x128xf32>
    %570 = arith.addf %568, %569 : vector<32x128xf32>
    %571 = vector.broadcast %558 : vector<32x1xf32> to vector<32x128xf32>
    %572 = arith.mulf %570, %571 : vector<32x128xf32>
    %573 = arith.addf %554, %572 : vector<32x128xf32>
    %c22 = arith.constant 22 : index
    %c0_311 = arith.constant 0 : index
    %574 = vector.load %arg2[%c22, %c0_311] : memref<32x128xf32, #tpu.memory_space<vmem>>, vector<1x128xf32>
    %c0_312 = arith.constant 0 : index
    %c22_313 = arith.constant 22 : index
    %575 = vector.load %arg6[%c0_312, %c22_313] : memref<32x32xf32, #tpu.memory_space<vmem>>, vector<32x1xf32>
    %c0_314 = arith.constant 0 : index
    %c22_315 = arith.constant 22 : index
    %576 = vector.load %arg7[%c0_314, %c22_315] : memref<32x32xf32, #tpu.memory_space<vmem>>, vector<32x1xf32>
    %c0_316 = arith.constant 0 : index
    %c22_317 = arith.constant 22 : index
    %577 = vector.load %arg8[%c0_316, %c22_317] : memref<32x32xf32, #tpu.memory_space<vmem>>, vector<32x1xf32>
    %578 = vector.broadcast %574 : vector<1x128xf32> to vector<32x128xf32>
    %579 = vector.broadcast %575 : vector<32x1xf32> to vector<32x128xf32>
    %580 = arith.mulf %578, %579 : vector<32x128xf32>
    %581 = vector.broadcast %576 : vector<32x1xf32> to vector<32x128xf32>
    %582 = arith.addf %580, %581 : vector<32x128xf32>
    %cst_318 = arith.constant 5.000000e-01 : f32
    %583 = vector.broadcast %cst_318 : f32 to vector<32x128xf32>
    %584 = arith.mulf %583, %582 : vector<32x128xf32>
    %585 = math.tanh %584 : vector<32x128xf32>
    %cst_319 = arith.constant 5.000000e-01 : f32
    %586 = vector.broadcast %cst_319 : f32 to vector<32x128xf32>
    %587 = arith.mulf %586, %585 : vector<32x128xf32>
    %cst_320 = arith.constant 5.000000e-01 : f32
    %588 = vector.broadcast %cst_320 : f32 to vector<32x128xf32>
    %589 = arith.addf %587, %588 : vector<32x128xf32>
    %590 = vector.broadcast %577 : vector<32x1xf32> to vector<32x128xf32>
    %591 = arith.mulf %589, %590 : vector<32x128xf32>
    %592 = arith.addf %573, %591 : vector<32x128xf32>
    %c23 = arith.constant 23 : index
    %c0_321 = arith.constant 0 : index
    %593 = vector.load %arg2[%c23, %c0_321] : memref<32x128xf32, #tpu.memory_space<vmem>>, vector<1x128xf32>
    %c0_322 = arith.constant 0 : index
    %c23_323 = arith.constant 23 : index
    %594 = vector.load %arg6[%c0_322, %c23_323] : memref<32x32xf32, #tpu.memory_space<vmem>>, vector<32x1xf32>
    %c0_324 = arith.constant 0 : index
    %c23_325 = arith.constant 23 : index
    %595 = vector.load %arg7[%c0_324, %c23_325] : memref<32x32xf32, #tpu.memory_space<vmem>>, vector<32x1xf32>
    %c0_326 = arith.constant 0 : index
    %c23_327 = arith.constant 23 : index
    %596 = vector.load %arg8[%c0_326, %c23_327] : memref<32x32xf32, #tpu.memory_space<vmem>>, vector<32x1xf32>
    %597 = vector.broadcast %593 : vector<1x128xf32> to vector<32x128xf32>
    %598 = vector.broadcast %594 : vector<32x1xf32> to vector<32x128xf32>
    %599 = arith.mulf %597, %598 : vector<32x128xf32>
    %600 = vector.broadcast %595 : vector<32x1xf32> to vector<32x128xf32>
    %601 = arith.addf %599, %600 : vector<32x128xf32>
    %cst_328 = arith.constant 5.000000e-01 : f32
    %602 = vector.broadcast %cst_328 : f32 to vector<32x128xf32>
    %603 = arith.mulf %602, %601 : vector<32x128xf32>
    %604 = math.tanh %603 : vector<32x128xf32>
    %cst_329 = arith.constant 5.000000e-01 : f32
    %605 = vector.broadcast %cst_329 : f32 to vector<32x128xf32>
    %606 = arith.mulf %605, %604 : vector<32x128xf32>
    %cst_330 = arith.constant 5.000000e-01 : f32
    %607 = vector.broadcast %cst_330 : f32 to vector<32x128xf32>
    %608 = arith.addf %606, %607 : vector<32x128xf32>
    %609 = vector.broadcast %596 : vector<32x1xf32> to vector<32x128xf32>
    %610 = arith.mulf %608, %609 : vector<32x128xf32>
    %611 = arith.addf %592, %610 : vector<32x128xf32>
    %c24 = arith.constant 24 : index
    %c0_331 = arith.constant 0 : index
    %612 = vector.load %arg2[%c24, %c0_331] : memref<32x128xf32, #tpu.memory_space<vmem>>, vector<1x128xf32>
    %c0_332 = arith.constant 0 : index
    %c24_333 = arith.constant 24 : index
    %613 = vector.load %arg6[%c0_332, %c24_333] : memref<32x32xf32, #tpu.memory_space<vmem>>, vector<32x1xf32>
    %c0_334 = arith.constant 0 : index
    %c24_335 = arith.constant 24 : index
    %614 = vector.load %arg7[%c0_334, %c24_335] : memref<32x32xf32, #tpu.memory_space<vmem>>, vector<32x1xf32>
    %c0_336 = arith.constant 0 : index
    %c24_337 = arith.constant 24 : index
    %615 = vector.load %arg8[%c0_336, %c24_337] : memref<32x32xf32, #tpu.memory_space<vmem>>, vector<32x1xf32>
    %616 = vector.broadcast %612 : vector<1x128xf32> to vector<32x128xf32>
    %617 = vector.broadcast %613 : vector<32x1xf32> to vector<32x128xf32>
    %618 = arith.mulf %616, %617 : vector<32x128xf32>
    %619 = vector.broadcast %614 : vector<32x1xf32> to vector<32x128xf32>
    %620 = arith.addf %618, %619 : vector<32x128xf32>
    %cst_338 = arith.constant 5.000000e-01 : f32
    %621 = vector.broadcast %cst_338 : f32 to vector<32x128xf32>
    %622 = arith.mulf %621, %620 : vector<32x128xf32>
    %623 = math.tanh %622 : vector<32x128xf32>
    %cst_339 = arith.constant 5.000000e-01 : f32
    %624 = vector.broadcast %cst_339 : f32 to vector<32x128xf32>
    %625 = arith.mulf %624, %623 : vector<32x128xf32>
    %cst_340 = arith.constant 5.000000e-01 : f32
    %626 = vector.broadcast %cst_340 : f32 to vector<32x128xf32>
    %627 = arith.addf %625, %626 : vector<32x128xf32>
    %628 = vector.broadcast %615 : vector<32x1xf32> to vector<32x128xf32>
    %629 = arith.mulf %627, %628 : vector<32x128xf32>
    %630 = arith.addf %611, %629 : vector<32x128xf32>
    %c25 = arith.constant 25 : index
    %c0_341 = arith.constant 0 : index
    %631 = vector.load %arg2[%c25, %c0_341] : memref<32x128xf32, #tpu.memory_space<vmem>>, vector<1x128xf32>
    %c0_342 = arith.constant 0 : index
    %c25_343 = arith.constant 25 : index
    %632 = vector.load %arg6[%c0_342, %c25_343] : memref<32x32xf32, #tpu.memory_space<vmem>>, vector<32x1xf32>
    %c0_344 = arith.constant 0 : index
    %c25_345 = arith.constant 25 : index
    %633 = vector.load %arg7[%c0_344, %c25_345] : memref<32x32xf32, #tpu.memory_space<vmem>>, vector<32x1xf32>
    %c0_346 = arith.constant 0 : index
    %c25_347 = arith.constant 25 : index
    %634 = vector.load %arg8[%c0_346, %c25_347] : memref<32x32xf32, #tpu.memory_space<vmem>>, vector<32x1xf32>
    %635 = vector.broadcast %631 : vector<1x128xf32> to vector<32x128xf32>
    %636 = vector.broadcast %632 : vector<32x1xf32> to vector<32x128xf32>
    %637 = arith.mulf %635, %636 : vector<32x128xf32>
    %638 = vector.broadcast %633 : vector<32x1xf32> to vector<32x128xf32>
    %639 = arith.addf %637, %638 : vector<32x128xf32>
    %cst_348 = arith.constant 5.000000e-01 : f32
    %640 = vector.broadcast %cst_348 : f32 to vector<32x128xf32>
    %641 = arith.mulf %640, %639 : vector<32x128xf32>
    %642 = math.tanh %641 : vector<32x128xf32>
    %cst_349 = arith.constant 5.000000e-01 : f32
    %643 = vector.broadcast %cst_349 : f32 to vector<32x128xf32>
    %644 = arith.mulf %643, %642 : vector<32x128xf32>
    %cst_350 = arith.constant 5.000000e-01 : f32
    %645 = vector.broadcast %cst_350 : f32 to vector<32x128xf32>
    %646 = arith.addf %644, %645 : vector<32x128xf32>
    %647 = vector.broadcast %634 : vector<32x1xf32> to vector<32x128xf32>
    %648 = arith.mulf %646, %647 : vector<32x128xf32>
    %649 = arith.addf %630, %648 : vector<32x128xf32>
    %c26 = arith.constant 26 : index
    %c0_351 = arith.constant 0 : index
    %650 = vector.load %arg2[%c26, %c0_351] : memref<32x128xf32, #tpu.memory_space<vmem>>, vector<1x128xf32>
    %c0_352 = arith.constant 0 : index
    %c26_353 = arith.constant 26 : index
    %651 = vector.load %arg6[%c0_352, %c26_353] : memref<32x32xf32, #tpu.memory_space<vmem>>, vector<32x1xf32>
    %c0_354 = arith.constant 0 : index
    %c26_355 = arith.constant 26 : index
    %652 = vector.load %arg7[%c0_354, %c26_355] : memref<32x32xf32, #tpu.memory_space<vmem>>, vector<32x1xf32>
    %c0_356 = arith.constant 0 : index
    %c26_357 = arith.constant 26 : index
    %653 = vector.load %arg8[%c0_356, %c26_357] : memref<32x32xf32, #tpu.memory_space<vmem>>, vector<32x1xf32>
    %654 = vector.broadcast %650 : vector<1x128xf32> to vector<32x128xf32>
    %655 = vector.broadcast %651 : vector<32x1xf32> to vector<32x128xf32>
    %656 = arith.mulf %654, %655 : vector<32x128xf32>
    %657 = vector.broadcast %652 : vector<32x1xf32> to vector<32x128xf32>
    %658 = arith.addf %656, %657 : vector<32x128xf32>
    %cst_358 = arith.constant 5.000000e-01 : f32
    %659 = vector.broadcast %cst_358 : f32 to vector<32x128xf32>
    %660 = arith.mulf %659, %658 : vector<32x128xf32>
    %661 = math.tanh %660 : vector<32x128xf32>
    %cst_359 = arith.constant 5.000000e-01 : f32
    %662 = vector.broadcast %cst_359 : f32 to vector<32x128xf32>
    %663 = arith.mulf %662, %661 : vector<32x128xf32>
    %cst_360 = arith.constant 5.000000e-01 : f32
    %664 = vector.broadcast %cst_360 : f32 to vector<32x128xf32>
    %665 = arith.addf %663, %664 : vector<32x128xf32>
    %666 = vector.broadcast %653 : vector<32x1xf32> to vector<32x128xf32>
    %667 = arith.mulf %665, %666 : vector<32x128xf32>
    %668 = arith.addf %649, %667 : vector<32x128xf32>
    %c27 = arith.constant 27 : index
    %c0_361 = arith.constant 0 : index
    %669 = vector.load %arg2[%c27, %c0_361] : memref<32x128xf32, #tpu.memory_space<vmem>>, vector<1x128xf32>
    %c0_362 = arith.constant 0 : index
    %c27_363 = arith.constant 27 : index
    %670 = vector.load %arg6[%c0_362, %c27_363] : memref<32x32xf32, #tpu.memory_space<vmem>>, vector<32x1xf32>
    %c0_364 = arith.constant 0 : index
    %c27_365 = arith.constant 27 : index
    %671 = vector.load %arg7[%c0_364, %c27_365] : memref<32x32xf32, #tpu.memory_space<vmem>>, vector<32x1xf32>
    %c0_366 = arith.constant 0 : index
    %c27_367 = arith.constant 27 : index
    %672 = vector.load %arg8[%c0_366, %c27_367] : memref<32x32xf32, #tpu.memory_space<vmem>>, vector<32x1xf32>
    %673 = vector.broadcast %669 : vector<1x128xf32> to vector<32x128xf32>
    %674 = vector.broadcast %670 : vector<32x1xf32> to vector<32x128xf32>
    %675 = arith.mulf %673, %674 : vector<32x128xf32>
    %676 = vector.broadcast %671 : vector<32x1xf32> to vector<32x128xf32>
    %677 = arith.addf %675, %676 : vector<32x128xf32>
    %cst_368 = arith.constant 5.000000e-01 : f32
    %678 = vector.broadcast %cst_368 : f32 to vector<32x128xf32>
    %679 = arith.mulf %678, %677 : vector<32x128xf32>
    %680 = math.tanh %679 : vector<32x128xf32>
    %cst_369 = arith.constant 5.000000e-01 : f32
    %681 = vector.broadcast %cst_369 : f32 to vector<32x128xf32>
    %682 = arith.mulf %681, %680 : vector<32x128xf32>
    %cst_370 = arith.constant 5.000000e-01 : f32
    %683 = vector.broadcast %cst_370 : f32 to vector<32x128xf32>
    %684 = arith.addf %682, %683 : vector<32x128xf32>
    %685 = vector.broadcast %672 : vector<32x1xf32> to vector<32x128xf32>
    %686 = arith.mulf %684, %685 : vector<32x128xf32>
    %687 = arith.addf %668, %686 : vector<32x128xf32>
    %c28 = arith.constant 28 : index
    %c0_371 = arith.constant 0 : index
    %688 = vector.load %arg2[%c28, %c0_371] : memref<32x128xf32, #tpu.memory_space<vmem>>, vector<1x128xf32>
    %c0_372 = arith.constant 0 : index
    %c28_373 = arith.constant 28 : index
    %689 = vector.load %arg6[%c0_372, %c28_373] : memref<32x32xf32, #tpu.memory_space<vmem>>, vector<32x1xf32>
    %c0_374 = arith.constant 0 : index
    %c28_375 = arith.constant 28 : index
    %690 = vector.load %arg7[%c0_374, %c28_375] : memref<32x32xf32, #tpu.memory_space<vmem>>, vector<32x1xf32>
    %c0_376 = arith.constant 0 : index
    %c28_377 = arith.constant 28 : index
    %691 = vector.load %arg8[%c0_376, %c28_377] : memref<32x32xf32, #tpu.memory_space<vmem>>, vector<32x1xf32>
    %692 = vector.broadcast %688 : vector<1x128xf32> to vector<32x128xf32>
    %693 = vector.broadcast %689 : vector<32x1xf32> to vector<32x128xf32>
    %694 = arith.mulf %692, %693 : vector<32x128xf32>
    %695 = vector.broadcast %690 : vector<32x1xf32> to vector<32x128xf32>
    %696 = arith.addf %694, %695 : vector<32x128xf32>
    %cst_378 = arith.constant 5.000000e-01 : f32
    %697 = vector.broadcast %cst_378 : f32 to vector<32x128xf32>
    %698 = arith.mulf %697, %696 : vector<32x128xf32>
    %699 = math.tanh %698 : vector<32x128xf32>
    %cst_379 = arith.constant 5.000000e-01 : f32
    %700 = vector.broadcast %cst_379 : f32 to vector<32x128xf32>
    %701 = arith.mulf %700, %699 : vector<32x128xf32>
    %cst_380 = arith.constant 5.000000e-01 : f32
    %702 = vector.broadcast %cst_380 : f32 to vector<32x128xf32>
    %703 = arith.addf %701, %702 : vector<32x128xf32>
    %704 = vector.broadcast %691 : vector<32x1xf32> to vector<32x128xf32>
    %705 = arith.mulf %703, %704 : vector<32x128xf32>
    %706 = arith.addf %687, %705 : vector<32x128xf32>
    %c29 = arith.constant 29 : index
    %c0_381 = arith.constant 0 : index
    %707 = vector.load %arg2[%c29, %c0_381] : memref<32x128xf32, #tpu.memory_space<vmem>>, vector<1x128xf32>
    %c0_382 = arith.constant 0 : index
    %c29_383 = arith.constant 29 : index
    %708 = vector.load %arg6[%c0_382, %c29_383] : memref<32x32xf32, #tpu.memory_space<vmem>>, vector<32x1xf32>
    %c0_384 = arith.constant 0 : index
    %c29_385 = arith.constant 29 : index
    %709 = vector.load %arg7[%c0_384, %c29_385] : memref<32x32xf32, #tpu.memory_space<vmem>>, vector<32x1xf32>
    %c0_386 = arith.constant 0 : index
    %c29_387 = arith.constant 29 : index
    %710 = vector.load %arg8[%c0_386, %c29_387] : memref<32x32xf32, #tpu.memory_space<vmem>>, vector<32x1xf32>
    %711 = vector.broadcast %707 : vector<1x128xf32> to vector<32x128xf32>
    %712 = vector.broadcast %708 : vector<32x1xf32> to vector<32x128xf32>
    %713 = arith.mulf %711, %712 : vector<32x128xf32>
    %714 = vector.broadcast %709 : vector<32x1xf32> to vector<32x128xf32>
    %715 = arith.addf %713, %714 : vector<32x128xf32>
    %cst_388 = arith.constant 5.000000e-01 : f32
    %716 = vector.broadcast %cst_388 : f32 to vector<32x128xf32>
    %717 = arith.mulf %716, %715 : vector<32x128xf32>
    %718 = math.tanh %717 : vector<32x128xf32>
    %cst_389 = arith.constant 5.000000e-01 : f32
    %719 = vector.broadcast %cst_389 : f32 to vector<32x128xf32>
    %720 = arith.mulf %719, %718 : vector<32x128xf32>
    %cst_390 = arith.constant 5.000000e-01 : f32
    %721 = vector.broadcast %cst_390 : f32 to vector<32x128xf32>
    %722 = arith.addf %720, %721 : vector<32x128xf32>
    %723 = vector.broadcast %710 : vector<32x1xf32> to vector<32x128xf32>
    %724 = arith.mulf %722, %723 : vector<32x128xf32>
    %725 = arith.addf %706, %724 : vector<32x128xf32>
    %c30 = arith.constant 30 : index
    %c0_391 = arith.constant 0 : index
    %726 = vector.load %arg2[%c30, %c0_391] : memref<32x128xf32, #tpu.memory_space<vmem>>, vector<1x128xf32>
    %c0_392 = arith.constant 0 : index
    %c30_393 = arith.constant 30 : index
    %727 = vector.load %arg6[%c0_392, %c30_393] : memref<32x32xf32, #tpu.memory_space<vmem>>, vector<32x1xf32>
    %c0_394 = arith.constant 0 : index
    %c30_395 = arith.constant 30 : index
    %728 = vector.load %arg7[%c0_394, %c30_395] : memref<32x32xf32, #tpu.memory_space<vmem>>, vector<32x1xf32>
    %c0_396 = arith.constant 0 : index
    %c30_397 = arith.constant 30 : index
    %729 = vector.load %arg8[%c0_396, %c30_397] : memref<32x32xf32, #tpu.memory_space<vmem>>, vector<32x1xf32>
    %730 = vector.broadcast %726 : vector<1x128xf32> to vector<32x128xf32>
    %731 = vector.broadcast %727 : vector<32x1xf32> to vector<32x128xf32>
    %732 = arith.mulf %730, %731 : vector<32x128xf32>
    %733 = vector.broadcast %728 : vector<32x1xf32> to vector<32x128xf32>
    %734 = arith.addf %732, %733 : vector<32x128xf32>
    %cst_398 = arith.constant 5.000000e-01 : f32
    %735 = vector.broadcast %cst_398 : f32 to vector<32x128xf32>
    %736 = arith.mulf %735, %734 : vector<32x128xf32>
    %737 = math.tanh %736 : vector<32x128xf32>
    %cst_399 = arith.constant 5.000000e-01 : f32
    %738 = vector.broadcast %cst_399 : f32 to vector<32x128xf32>
    %739 = arith.mulf %738, %737 : vector<32x128xf32>
    %cst_400 = arith.constant 5.000000e-01 : f32
    %740 = vector.broadcast %cst_400 : f32 to vector<32x128xf32>
    %741 = arith.addf %739, %740 : vector<32x128xf32>
    %742 = vector.broadcast %729 : vector<32x1xf32> to vector<32x128xf32>
    %743 = arith.mulf %741, %742 : vector<32x128xf32>
    %744 = arith.addf %725, %743 : vector<32x128xf32>
    %c31 = arith.constant 31 : index
    %c0_401 = arith.constant 0 : index
    %745 = vector.load %arg2[%c31, %c0_401] : memref<32x128xf32, #tpu.memory_space<vmem>>, vector<1x128xf32>
    %c0_402 = arith.constant 0 : index
    %c31_403 = arith.constant 31 : index
    %746 = vector.load %arg6[%c0_402, %c31_403] : memref<32x32xf32, #tpu.memory_space<vmem>>, vector<32x1xf32>
    %c0_404 = arith.constant 0 : index
    %c31_405 = arith.constant 31 : index
    %747 = vector.load %arg7[%c0_404, %c31_405] : memref<32x32xf32, #tpu.memory_space<vmem>>, vector<32x1xf32>
    %c0_406 = arith.constant 0 : index
    %c31_407 = arith.constant 31 : index
    %748 = vector.load %arg8[%c0_406, %c31_407] : memref<32x32xf32, #tpu.memory_space<vmem>>, vector<32x1xf32>
    %749 = vector.broadcast %745 : vector<1x128xf32> to vector<32x128xf32>
    %750 = vector.broadcast %746 : vector<32x1xf32> to vector<32x128xf32>
    %751 = arith.mulf %749, %750 : vector<32x128xf32>
    %752 = vector.broadcast %747 : vector<32x1xf32> to vector<32x128xf32>
    %753 = arith.addf %751, %752 : vector<32x128xf32>
    %cst_408 = arith.constant 5.000000e-01 : f32
    %754 = vector.broadcast %cst_408 : f32 to vector<32x128xf32>
    %755 = arith.mulf %754, %753 : vector<32x128xf32>
    %756 = math.tanh %755 : vector<32x128xf32>
    %cst_409 = arith.constant 5.000000e-01 : f32
    %757 = vector.broadcast %cst_409 : f32 to vector<32x128xf32>
    %758 = arith.mulf %757, %756 : vector<32x128xf32>
    %cst_410 = arith.constant 5.000000e-01 : f32
    %759 = vector.broadcast %cst_410 : f32 to vector<32x128xf32>
    %760 = arith.addf %758, %759 : vector<32x128xf32>
    %761 = vector.broadcast %748 : vector<32x1xf32> to vector<32x128xf32>
    %762 = arith.mulf %760, %761 : vector<32x128xf32>
    %763 = arith.addf %744, %762 : vector<32x128xf32>
    %cst_411 = arith.constant 0.166666672 : f32
    %764 = vector.broadcast %cst_411 : f32 to vector<32x128xf32>
    %765 = arith.mulf %764, %763 : vector<32x128xf32>
    %766 = arith.addf %0, %765 : vector<32x128xf32>
    %c0_412 = arith.constant 0 : index
    %c0_413 = arith.constant 0 : index
    %767 = vector.load %arg10[%c0_412, %c0_413] : memref<32x128xf32, #tpu.memory_space<vmem>>, vector<32x128xf32>
    tpu.vector_store %arg10[%c0_412, %c0_413], %766 {strides = array<i32>} : memref<32x128xf32, #tpu.memory_space<vmem>>, vector<32x128xf32>,
    return
  }
  func.func @transform_0(%arg0: i32) -> (i32, i32) {
    %c0_i32 = arith.constant 0 : i32
    %c0_i32_0 = arith.constant 0 : i32
    return %c0_i32, %arg0 : i32, i32
  }
  func.func @transform_1(%arg0: i32) -> (i32, i32) {
    %c0_i32 = arith.constant 0 : i32
    %c0_i32_0 = arith.constant 0 : i32
    return %c0_i32, %arg0 : i32, i32
  }
  func.func @transform_2(%arg0: i32) -> (i32, i32) {
    %c0_i32 = arith.constant 0 : i32
    %c0_i32_0 = arith.constant 0 : i32
    %c0_i32_1 = arith.constant 0 : i32
    return %c0_i32, %c0_i32_0 : i32, i32
  }
  func.func @transform_3(%arg0: i32) -> (i32, i32) {
    %c0_i32 = arith.constant 0 : i32
    %c0_i32_0 = arith.constant 0 : i32
    %c0_i32_1 = arith.constant 0 : i32
    return %c0_i32, %c0_i32_0 : i32, i32
  }
  func.func @transform_4(%arg0: i32) -> (i32, i32) {
    %c0_i32 = arith.constant 0 : i32
    %c0_i32_0 = arith.constant 0 : i32
    %c0_i32_1 = arith.constant 0 : i32
    return %c0_i32, %c0_i32_0 : i32, i32
  }
  func.func @transform_5(%arg0: i32) -> (i32, i32) {
    %c0_i32 = arith.constant 0 : i32
    %c0_i32_0 = arith.constant 0 : i32
    %c0_i32_1 = arith.constant 0 : i32
    return %c0_i32, %c0_i32_0 : i32, i32
  }
  func.func @transform_6(%arg0: i32) -> (i32, i32) {
    %c0_i32 = arith.constant 0 : i32
    %c0_i32_0 = arith.constant 0 : i32
    %c0_i32_1 = arith.constant 0 : i32
    return %c0_i32, %c0_i32_0 : i32, i32
  }
  func.func @transform_7(%arg0: i32) -> (i32, i32) {
    %c0_i32 = arith.constant 0 : i32
    %c0_i32_0 = arith.constant 0 : i32
    %c0_i32_1 = arith.constant 0 : i32
    return %c0_i32, %c0_i32_0 : i32, i32
  }
  func.func @transform_8(%arg0: i32) -> (i32, i32) {
    %c0_i32 = arith.constant 0 : i32
    %c0_i32_0 = arith.constant 0 : i32
    %c0_i32_1 = arith.constant 0 : i32
    return %c0_i32, %c0_i32_0 : i32, i32
  }
  func.func @transform_9(%arg0: i32) -> (i32, i32) {
    %c0_i32 = arith.constant 0 : i32
    %c0_i32_0 = arith.constant 0 : i32
    return %c0_i32, %arg0 : i32, i32
  }
}

</mosaic_0001>

<llo_original>
// kernel: tpu_custom_call.1
$region0: #{tpu_custom_call.1}
  #allocation0 [shape = 'u32[]', space=smem, size = 0x4, offset = 0x4, fixed_abs, tag = 'smem constant byte address 0x4 - core index']
  #allocation1 [shape = 'u32[144,128]{1,0:T(1,128)}', space=vmem, size = 0x12000, scoped, tag = 'internal scratch']
  %s0 = inlined_call_operand.vmem [shape: f32[8,128], index: 0, kind: input, shape index: {}]
  %s1 = inlined_call_operand.vmem [shape: f32[32,128], index: 1, kind: input, shape index: {}]
  %s2 = inlined_call_operand.vmem [shape: f32[32,8], index: 2, kind: input, shape index: {}]
  %s3 = inlined_call_operand.vmem [shape: f32[32,8], index: 3, kind: input, shape index: {}]
  %s4 = inlined_call_operand.vmem [shape: f32[32,8], index: 4, kind: input, shape index: {}]
  %s5 = inlined_call_operand.vmem [shape: f32[32,32], index: 5, kind: input, shape index: {}]
  %s6 = inlined_call_operand.vmem [shape: f32[32,32], index: 6, kind: input, shape index: {}]
  %s7 = inlined_call_operand.vmem [shape: f32[32,32], index: 7, kind: input, shape index: {}]
  %s8 = inlined_call_operand.vmem [shape: f32[32,1], index: 8, kind: input, shape index: {}]
  %s9 = inlined_call_operand.hbm [shape: f32[32,128], index: 9, kind: output, shape index: {}]
  %s10 = sld [smem:[#allocation0]]
  $region46: #{tpu_custom_call.1} parent=0
    _
  %s12 = ssub.s32 1, %s10
  %s13 = scalar_select 0, %s12, %s10
  $region1: #{tpu_custom_call.1} parent=0
    #allocation2 [shape = 'u8[16384]{0}', space=vmem, size = 0x4000, scoped, tag = 'output window, operand 0, single buffered']
    #allocation3 [shape = 's32[1]{0}', space=sflag, size = 0x4, scoped, tag = 'scoped memory for tpu_custom_call.1']
    %14 = vsyncpa [#allocation3], 0
    // Predicated region
    $region2: #{tpu_custom_call.1} parent=1 // pred_check
      _
    $region3: #{tpu_custom_call.1} parent=1 // pred_check_branch
      %16 = sbr.rel (0) target = $region5
    $region4: #{tpu_custom_call.1} parent=1 // pred_region
      _
    $region5: #{tpu_custom_call.1} parent=1 // pred_fallthru
      _
    // Predicated region
    $region6: #{tpu_custom_call.1} parent=1 // pred_check
      _
    $region7: #{tpu_custom_call.1} parent=1 // pred_check_branch
      %18 = sbr.rel (0) target = $region9
    $region8: #{tpu_custom_call.1} parent=1 // pred_region
      _
    $region9: #{tpu_custom_call.1} parent=1 // pred_fallthru
      _
    // Predicated region
    $region10: #{tpu_custom_call.1} parent=1 // pred_check
      _
    $region11: #{tpu_custom_call.1} parent=1 // pred_check_branch
      %20 = sbr.rel (0) target = $region13
    $region12: #{tpu_custom_call.1} parent=1 // pred_region
      _
    $region13: #{tpu_custom_call.1} parent=1 // pred_fallthru
      _
    // Predicated region
    $region14: #{tpu_custom_call.1} parent=1 // pred_check
      _
    $region15: #{tpu_custom_call.1} parent=1 // pred_check_branch
      %22 = sbr.rel (0) target = $region17
    $region16: #{tpu_custom_call.1} parent=1 // pred_region
      _
    $region17: #{tpu_custom_call.1} parent=1 // pred_fallthru
      _
    // Predicated region
    $region18: #{tpu_custom_call.1} parent=1 // pred_check
      _
    $region19: #{tpu_custom_call.1} parent=1 // pred_check_branch
      %24 = sbr.rel (0) target = $region21
    $region20: #{tpu_custom_call.1} parent=1 // pred_region
      _
    $region21: #{tpu_custom_call.1} parent=1 // pred_fallthru
      _
    // Predicated region
    $region22: #{tpu_custom_call.1} parent=1 // pred_check
      _
    $region23: #{tpu_custom_call.1} parent=1 // pred_check_branch
      %26 = sbr.rel (0) target = $region25
    $region24: #{tpu_custom_call.1} parent=1 // pred_region
      _
    $region25: #{tpu_custom_call.1} parent=1 // pred_fallthru
      _
    // Predicated region
    $region26: #{tpu_custom_call.1} parent=1 // pred_check
      _
    $region27: #{tpu_custom_call.1} parent=1 // pred_check_branch
      %28 = sbr.rel (0) target = $region29
    $region28: #{tpu_custom_call.1} parent=1 // pred_region
      _
    $region29: #{tpu_custom_call.1} parent=1 // pred_fallthru
      _
    // Predicated region
    $region30: #{tpu_custom_call.1} parent=1 // pred_check
      _
    $region31: #{tpu_custom_call.1} parent=1 // pred_check_branch
      %30 = sbr.rel (0) target = $region33
    $region32: #{tpu_custom_call.1} parent=1 // pred_region
      _
    $region33: #{tpu_custom_call.1} parent=1 // pred_fallthru
      _
    // Predicated region
    $region34: #{tpu_custom_call.1} parent=1 // pred_check
      _
    $region35: #{tpu_custom_call.1} parent=1 // pred_check_branch
      %32 = sbr.rel (0) target = $region37
    $region36: #{tpu_custom_call.1} parent=1 // pred_region
      _
    $region37: #{tpu_custom_call.1} parent=1 // pred_fallthru
      _
    %v33 = vld [vmem:[%s1] sm:$0xff]
    %v34 = vld [vmem:[%s1 + $0x8] sm:$0xff]
    %v35 = vld [vmem:[%s1 + $0x10] sm:$0xff]
    %v36 = vld [vmem:[%s1 + $0x18] sm:$0xff]
    %v37 = vld [vmem:[%s8] sm:$0xff]
    %v38 = vld [vmem:[%s8 + $0x8] sm:$0xff]
    %v39 = vld [vmem:[%s8 + $0x10] sm:$0xff]
    %v40 = vld [vmem:[%s8 + $0x18] sm:$0xff]
    %42 = vset.pattern.permute.xlu0 0
    %43 = vperm.xlu0 %42, %v37
    %v44 = vpop.permute.xlu0 %43
    %47 = vset.pattern.permute.xlu0 0
    %48 = vperm.xlu0 %47, %v38
    %v49 = vpop.permute.xlu0 %48
    %52 = vset.pattern.permute.xlu0 0
    %53 = vperm.xlu0 %52, %v39
    %v54 = vpop.permute.xlu0 %53
    %57 = vset.pattern.permute.xlu0 0
    %58 = vperm.xlu0 %57, %v40
    %v59 = vpop.permute.xlu0 %58
    %v61 = vld [vmem:[%s0] sm:$0x1]
    %v62 = vld [vmem:[%s2] sm:$0xff]
    %v63 = vld [vmem:[%s2 + $0x8] sm:$0xff]
    %v64 = vld [vmem:[%s2 + $0x10] sm:$0xff]
    %v65 = vld [vmem:[%s2 + $0x18] sm:$0xff]
    %v66 = vld [vmem:[%s3] sm:$0xff]
    %v67 = vld [vmem:[%s3 + $0x8] sm:$0xff]
    %v68 = vld [vmem:[%s3 + $0x10] sm:$0xff]
    %v69 = vld [vmem:[%s3 + $0x18] sm:$0xff]
    %v70 = vld [vmem:[%s4] sm:$0xff]
    %v71 = vld [vmem:[%s4 + $0x8] sm:$0xff]
    %v72 = vld [vmem:[%s4 + $0x10] sm:$0xff]
    %v73 = vld [vmem:[%s4 + $0x18] sm:$0xff]
    %v74 = vlaneseq
    %v75 = vshrl.u32 %v74, 7
    %v76 = vsub.s32 0, %v75
    %v77 = vrot.slane %v61, %v76
    %79 = vset.pattern.permute.xlu0 0
    %80 = vperm.xlu0 %79, %v62
    %v81 = vpop.permute.xlu0 %80
    %84 = vset.pattern.permute.xlu0 0
    %85 = vperm.xlu0 %84, %v63
    %v86 = vpop.permute.xlu0 %85
    %89 = vset.pattern.permute.xlu0 0
    %90 = vperm.xlu0 %89, %v64
    %v91 = vpop.permute.xlu0 %90
    %94 = vset.pattern.permute.xlu0 0
    %95 = vperm.xlu0 %94, %v65
    %v96 = vpop.permute.xlu0 %95
    %v98 = vmul.f32 %v77, %v81
    %v99 = vmul.f32 %v77, %v86
    %v100 = vmul.f32 %v77, %v91
    %v101 = vmul.f32 %v77, %v96
    %103 = vset.pattern.permute.xlu0 0
    %104 = vperm.xlu0 %103, %v66
    %v105 = vpop.permute.xlu0 %104
    %108 = vset.pattern.permute.xlu0 0
    %109 = vperm.xlu0 %108, %v67
    %v110 = vpop.permute.xlu0 %109
    %113 = vset.pattern.permute.xlu0 0
    %114 = vperm.xlu0 %113, %v68
    %v115 = vpop.permute.xlu0 %114
    %118 = vset.pattern.permute.xlu0 0
    %119 = vperm.xlu0 %118, %v69
    %v120 = vpop.permute.xlu0 %119
    %v122 = vadd.f32 %v98, %v105
    %v123 = vadd.f32 %v99, %v110
    %v124 = vadd.f32 %v100, %v115
    %v125 = vadd.f32 %v101, %v120
    %v126 = vmul.f32 %v122, 0.5
    %v127 = vmul.f32 %v123, 0.5
    %v128 = vmul.f32 %v124, 0.5
    %v129 = vmul.f32 %v125, 0.5
    %v130 = vtanh.pop %v126
    %v131 = vtanh.pop %v127
    %v132 = vtanh.pop %v128
    %v133 = vtanh.pop %v129
    %v134 = vmul.f32 %v130, 0.5
    %v135 = vmul.f32 %v131, 0.5
    %v136 = vmul.f32 %v132, 0.5
    %v137 = vmul.f32 %v133, 0.5
    %v138 = vadd.f32 %v134, 0.5
    %v139 = vadd.f32 %v135, 0.5
    %v140 = vadd.f32 %v136, 0.5
    %v141 = vadd.f32 %v137, 0.5
    %143 = vset.pattern.permute.xlu0 0
    %144 = vperm.xlu0 %143, %v70
    %v145 = vpop.permute.xlu0 %144
    %148 = vset.pattern.permute.xlu0 0
    %149 = vperm.xlu0 %148, %v71
    %v150 = vpop.permute.xlu0 %149
    %153 = vset.pattern.permute.xlu0 0
    %154 = vperm.xlu0 %153, %v72
    %v155 = vpop.permute.xlu0 %154
    %158 = vset.pattern.permute.xlu0 0
    %159 = vperm.xlu0 %158, %v73
    %v160 = vpop.permute.xlu0 %159
    %v162 = vmul.f32 %v138, %v145
    %v163 = vmul.f32 %v139, %v150
    %v164 = vmul.f32 %v140, %v155
    %v165 = vmul.f32 %v141, %v160
    %v166 = vadd.f32 %v44, %v162
    %v167 = vadd.f32 %v49, %v163
    %v168 = vadd.f32 %v54, %v164
    %v169 = vadd.f32 %v59, %v165
    %v170 = vld [vmem:[%s0 + $0x1] sm:$0x1]
    %v171 = vlaneseq
    %v172 = vshrl.u32 %v171, 7
    %v173 = vsub.s32 0, %v172
    %v174 = vrot.slane %v170, %v173
    %175 = vset.pattern.permute.xlu0 1
    %176 = vperm.xlu0 %175, %v62
    %v177 = vpop.permute.xlu0 %176
    %179 = vset.pattern.permute.xlu0 1
    %180 = vperm.xlu0 %179, %v63
    %v181 = vpop.permute.xlu0 %180
    %183 = vset.pattern.permute.xlu0 1
    %184 = vperm.xlu0 %183, %v64
    %v185 = vpop.permute.xlu0 %184
    %187 = vset.pattern.permute.xlu0 1
    %188 = vperm.xlu0 %187, %v65
    %v189 = vpop.permute.xlu0 %188
    %v191 = vmul.f32 %v174, %v177
    %v192 = vmul.f32 %v174, %v181
    %v193 = vmul.f32 %v174, %v185
    %v194 = vmul.f32 %v174, %v189
    %195 = vset.pattern.permute.xlu0 1
    %196 = vperm.xlu0 %195, %v66
    %v197 = vpop.permute.xlu0 %196
    %199 = vset.pattern.permute.xlu0 1
    %200 = vperm.xlu0 %199, %v67
    %v201 = vpop.permute.xlu0 %200
    %203 = vset.pattern.permute.xlu0 1
    %204 = vperm.xlu0 %203, %v68
    %v205 = vpop.permute.xlu0 %204
    %207 = vset.pattern.permute.xlu0 1
    %208 = vperm.xlu0 %207, %v69
    %v209 = vpop.permute.xlu0 %208
    %v211 = vadd.f32 %v191, %v197
    %v212 = vadd.f32 %v192, %v201
    %v213 = vadd.f32 %v193, %v205
    %v214 = vadd.f32 %v194, %v209
    %v215 = vmul.f32 %v211, 0.5
    %v216 = vmul.f32 %v212, 0.5
    %v217 = vmul.f32 %v213, 0.5
    %v218 = vmul.f32 %v214, 0.5
    %v219 = vtanh.pop %v215
    %v220 = vtanh.pop %v216
    %v221 = vtanh.pop %v217
    %v222 = vtanh.pop %v218
    %v223 = vmul.f32 %v219, 0.5
    %v224 = vmul.f32 %v220, 0.5
    %v225 = vmul.f32 %v221, 0.5
    %v226 = vmul.f32 %v222, 0.5
    %v227 = vadd.f32 %v223, 0.5
    %v228 = vadd.f32 %v224, 0.5
    %v229 = vadd.f32 %v225, 0.5
    %v230 = vadd.f32 %v226, 0.5
    %231 = vset.pattern.permute.xlu0 1
    %232 = vperm.xlu0 %231, %v70
    %v233 = vpop.permute.xlu0 %232
    %235 = vset.pattern.permute.xlu0 1
    %236 = vperm.xlu0 %235, %v71
    %v237 = vpop.permute.xlu0 %236
    %239 = vset.pattern.permute.xlu0 1
    %240 = vperm.xlu0 %239, %v72
    %v241 = vpop.permute.xlu0 %240
    %243 = vset.pattern.permute.xlu0 1
    %244 = vperm.xlu0 %243, %v73
    %v245 = vpop.permute.xlu0 %244
    %v247 = vmul.f32 %v227, %v233
    %v248 = vmul.f32 %v228, %v237
    %v249 = vmul.f32 %v229, %v241
    %v250 = vmul.f32 %v230, %v245
    %v251 = vadd.f32 %v166, %v247
    %v252 = vadd.f32 %v167, %v248
    %v253 = vadd.f32 %v168, %v249
    %v254 = vadd.f32 %v169, %v250
    %v255 = vld [vmem:[%s0 + $0x2] sm:$0x1]
    %v256 = vlaneseq
    %v257 = vshrl.u32 %v256, 7
    %v258 = vsub.s32 0, %v257
    %v259 = vrot.slane %v255, %v258
    %260 = vset.pattern.permute.xlu0 2
    %261 = vperm.xlu0 %260, %v62
    %v262 = vpop.permute.xlu0 %261
    %264 = vset.pattern.permute.xlu0 2
    %265 = vperm.xlu0 %264, %v63
    %v266 = vpop.permute.xlu0 %265
    %268 = vset.pattern.permute.xlu0 2
    %269 = vperm.xlu0 %268, %v64
    %v270 = vpop.permute.xlu0 %269
    %272 = vset.pattern.permute.xlu0 2
    %273 = vperm.xlu0 %272, %v65
    %v274 = vpop.permute.xlu0 %273
    %v276 = vmul.f32 %v259, %v262
    %v277 = vmul.f32 %v259, %v266
    %v278 = vmul.f32 %v259, %v270
    %v279 = vmul.f32 %v259, %v274
    %280 = vset.pattern.permute.xlu0 2
    %281 = vperm.xlu0 %280, %v66
    %v282 = vpop.permute.xlu0 %281
    %284 = vset.pattern.permute.xlu0 2
    %285 = vperm.xlu0 %284, %v67
    %v286 = vpop.permute.xlu0 %285
    %288 = vset.pattern.permute.xlu0 2
    %289 = vperm.xlu0 %288, %v68
    %v290 = vpop.permute.xlu0 %289
    %292 = vset.pattern.permute.xlu0 2
    %293 = vperm.xlu0 %292, %v69
    %v294 = vpop.permute.xlu0 %293
    %v296 = vadd.f32 %v276, %v282
    %v297 = vadd.f32 %v277, %v286
    %v298 = vadd.f32 %v278, %v290
    %v299 = vadd.f32 %v279, %v294
    %v300 = vmul.f32 %v296, 0.5
    %v301 = vmul.f32 %v297, 0.5
    %v302 = vmul.f32 %v298, 0.5
    %v303 = vmul.f32 %v299, 0.5
    %v304 = vtanh.pop %v300
    %v305 = vtanh.pop %v301
    %v306 = vtanh.pop %v302
    %v307 = vtanh.pop %v303
    %v308 = vmul.f32 %v304, 0.5
    %v309 = vmul.f32 %v305, 0.5
    %v310 = vmul.f32 %v306, 0.5
    %v311 = vmul.f32 %v307, 0.5
    %v312 = vadd.f32 %v308, 0.5
    %v313 = vadd.f32 %v309, 0.5
    %v314 = vadd.f32 %v310, 0.5
    %v315 = vadd.f32 %v311, 0.5
    %316 = vset.pattern.permute.xlu0 2
    %317 = vperm.xlu0 %316, %v70
    %v318 = vpop.permute.xlu0 %317
    %320 = vset.pattern.permute.xlu0 2
    %321 = vperm.xlu0 %320, %v71
    %v322 = vpop.permute.xlu0 %321
    %324 = vset.pattern.permute.xlu0 2
    %325 = vperm.xlu0 %324, %v72
    %v326 = vpop.permute.xlu0 %325
    %328 = vset.pattern.permute.xlu0 2
    %329 = vperm.xlu0 %328, %v73
    %v330 = vpop.permute.xlu0 %329
    %v332 = vmul.f32 %v312, %v318
    %v333 = vmul.f32 %v313, %v322
    %v334 = vmul.f32 %v314, %v326
    %v335 = vmul.f32 %v315, %v330
    %v336 = vadd.f32 %v251, %v332
    %v337 = vadd.f32 %v252, %v333
    %v338 = vadd.f32 %v253, %v334
    %v339 = vadd.f32 %v254, %v335
    %v340 = vld [vmem:[%s0 + $0x3] sm:$0x1]
    %v341 = vlaneseq
    %v342 = vshrl.u32 %v341, 7
    %v343 = vsub.s32 0, %v342
    %v344 = vrot.slane %v340, %v343
    %345 = vset.pattern.permute.xlu0 3
    %346 = vperm.xlu0 %345, %v62
    %v347 = vpop.permute.xlu0 %346
    %349 = vset.pattern.permute.xlu0 3
    %350 = vperm.xlu0 %349, %v63
    %v351 = vpop.permute.xlu0 %350
    %353 = vset.pattern.permute.xlu0 3
    %354 = vperm.xlu0 %353, %v64
    %v355 = vpop.permute.xlu0 %354
    %357 = vset.pattern.permute.xlu0 3
    %358 = vperm.xlu0 %357, %v65
    %v359 = vpop.permute.xlu0 %358
    %v361 = vmul.f32 %v344, %v347
    %v362 = vmul.f32 %v344, %v351
    %v363 = vmul.f32 %v344, %v355
    %v364 = vmul.f32 %v344, %v359
    %365 = vset.pattern.permute.xlu0 3
    %366 = vperm.xlu0 %365, %v66
    %v367 = vpop.permute.xlu0 %366
    %369 = vset.pattern.permute.xlu0 3
    %370 = vperm.xlu0 %369, %v67
    %v371 = vpop.permute.xlu0 %370
    %373 = vset.pattern.permute.xlu0 3
    %374 = vperm.xlu0 %373, %v68
    %v375 = vpop.permute.xlu0 %374
    %377 = vset.pattern.permute.xlu0 3
    %378 = vperm.xlu0 %377, %v69
    %v379 = vpop.permute.xlu0 %378
    %v381 = vadd.f32 %v361, %v367
    %v382 = vadd.f32 %v362, %v371
    %v383 = vadd.f32 %v363, %v375
    %v384 = vadd.f32 %v364, %v379
    %v385 = vmul.f32 %v381, 0.5
    %v386 = vmul.f32 %v382, 0.5
    %v387 = vmul.f32 %v383, 0.5
    %v388 = vmul.f32 %v384, 0.5
    %v389 = vtanh.pop %v385
    %v390 = vtanh.pop %v386
    %v391 = vtanh.pop %v387
    %v392 = vtanh.pop %v388
    %v393 = vmul.f32 %v389, 0.5
    %v394 = vmul.f32 %v390, 0.5
    %v395 = vmul.f32 %v391, 0.5
    %v396 = vmul.f32 %v392, 0.5
    %v397 = vadd.f32 %v393, 0.5
    %v398 = vadd.f32 %v394, 0.5
    %v399 = vadd.f32 %v395, 0.5
    %v400 = vadd.f32 %v396, 0.5
    %401 = vset.pattern.permute.xlu0 3
    %402 = vperm.xlu0 %401, %v70
    %v403 = vpop.permute.xlu0 %402
    %405 = vset.pattern.permute.xlu0 3
    %406 = vperm.xlu0 %405, %v71
    %v407 = vpop.permute.xlu0 %406
    %409 = vset.pattern.permute.xlu0 3
    %410 = vperm.xlu0 %409, %v72
    %v411 = vpop.permute.xlu0 %410
    %413 = vset.pattern.permute.xlu0 3
    %414 = vperm.xlu0 %413, %v73
    %v415 = vpop.permute.xlu0 %414
    %v417 = vmul.f32 %v397, %v403
    %v418 = vmul.f32 %v398, %v407
    %v419 = vmul.f32 %v399, %v411
    %v420 = vmul.f32 %v400, %v415
    %v421 = vadd.f32 %v336, %v417
    %v422 = vadd.f32 %v337, %v418
    %v423 = vadd.f32 %v338, %v419
    %v424 = vadd.f32 %v339, %v420
    %v425 = vld [vmem:[%s0 + $0x4] sm:$0x1]
    %v426 = vlaneseq
    %v427 = vshrl.u32 %v426, 7
    %v428 = vsub.s32 0, %v427
    %v429 = vrot.slane %v425, %v428
    %430 = vset.pattern.permute.xlu0 4
    %431 = vperm.xlu0 %430, %v62
    %v432 = vpop.permute.xlu0 %431
    %434 = vset.pattern.permute.xlu0 4
    %435 = vperm.xlu0 %434, %v63
    %v436 = vpop.permute.xlu0 %435
    %438 = vset.pattern.permute.xlu0 4
    %439 = vperm.xlu0 %438, %v64
    %v440 = vpop.permute.xlu0 %439
    %442 = vset.pattern.permute.xlu0 4
    %443 = vperm.xlu0 %442, %v65
    %v444 = vpop.permute.xlu0 %443
    %v446 = vmul.f32 %v429, %v432
    %v447 = vmul.f32 %v429, %v436
    %v448 = vmul.f32 %v429, %v440
    %v449 = vmul.f32 %v429, %v444
    %450 = vset.pattern.permute.xlu0 4
    %451 = vperm.xlu0 %450, %v66
    %v452 = vpop.permute.xlu0 %451
    %454 = vset.pattern.permute.xlu0 4
    %455 = vperm.xlu0 %454, %v67
    %v456 = vpop.permute.xlu0 %455
    %458 = vset.pattern.permute.xlu0 4
    %459 = vperm.xlu0 %458, %v68
    %v460 = vpop.permute.xlu0 %459
    %462 = vset.pattern.permute.xlu0 4
    %463 = vperm.xlu0 %462, %v69
    %v464 = vpop.permute.xlu0 %463
    %v466 = vadd.f32 %v446, %v452
    %v467 = vadd.f32 %v447, %v456
    %v468 = vadd.f32 %v448, %v460
    %v469 = vadd.f32 %v449, %v464
    %v470 = vmul.f32 %v466, 0.5
    %v471 = vmul.f32 %v467, 0.5
    %v472 = vmul.f32 %v468, 0.5
    %v473 = vmul.f32 %v469, 0.5
    %v474 = vtanh.pop %v470
    %v475 = vtanh.pop %v471
    %v476 = vtanh.pop %v472
    %v477 = vtanh.pop %v473
    %v478 = vmul.f32 %v474, 0.5
    %v479 = vmul.f32 %v475, 0.5
    %v480 = vmul.f32 %v476, 0.5
    %v481 = vmul.f32 %v477, 0.5
    %v482 = vadd.f32 %v478, 0.5
    %v483 = vadd.f32 %v479, 0.5
    %v484 = vadd.f32 %v480, 0.5
    %v485 = vadd.f32 %v481, 0.5
    %486 = vset.pattern.permute.xlu0 4
    %487 = vperm.xlu0 %486, %v70
    %v488 = vpop.permute.xlu0 %487
    %490 = vset.pattern.permute.xlu0 4
    %491 = vperm.xlu0 %490, %v71
    %v492 = vpop.permute.xlu0 %491
    %494 = vset.pattern.permute.xlu0 4
    %495 = vperm.xlu0 %494, %v72
    %v496 = vpop.permute.xlu0 %495
    %498 = vset.pattern.permute.xlu0 4
    %499 = vperm.xlu0 %498, %v73
    %v500 = vpop.permute.xlu0 %499
    %v502 = vmul.f32 %v482, %v488
    %v503 = vmul.f32 %v483, %v492
    %v504 = vmul.f32 %v484, %v496
    %v505 = vmul.f32 %v485, %v500
    %v506 = vadd.f32 %v421, %v502
    %v507 = vadd.f32 %v422, %v503
    %v508 = vadd.f32 %v423, %v504
    %v509 = vadd.f32 %v424, %v505
    %v510 = vld [vmem:[%s0 + $0x5] sm:$0x1]
    %v511 = vlaneseq
    %v512 = vshrl.u32 %v511, 7
    %v513 = vsub.s32 0, %v512
    %v514 = vrot.slane %v510, %v513
    %515 = vset.pattern.permute.xlu0 5
    %516 = vperm.xlu0 %515, %v62
    %v517 = vpop.permute.xlu0 %516
    %519 = vset.pattern.permute.xlu0 5
    %520 = vperm.xlu0 %519, %v63
    %v521 = vpop.permute.xlu0 %520
    %523 = vset.pattern.permute.xlu0 5
    %524 = vperm.xlu0 %523, %v64
    %v525 = vpop.permute.xlu0 %524
    %527 = vset.pattern.permute.xlu0 5
    %528 = vperm.xlu0 %527, %v65
    %v529 = vpop.permute.xlu0 %528
    %v531 = vmul.f32 %v514, %v517
    %v532 = vmul.f32 %v514, %v521
    %v533 = vmul.f32 %v514, %v525
    %v534 = vmul.f32 %v514, %v529
    %535 = vset.pattern.permute.xlu0 5
    %536 = vperm.xlu0 %535, %v66
    %v537 = vpop.permute.xlu0 %536
    %539 = vset.pattern.permute.xlu0 5
    %540 = vperm.xlu0 %539, %v67
    %v541 = vpop.permute.xlu0 %540
    %543 = vset.pattern.permute.xlu0 5
    %544 = vperm.xlu0 %543, %v68
    %v545 = vpop.permute.xlu0 %544
    %547 = vset.pattern.permute.xlu0 5
    %548 = vperm.xlu0 %547, %v69
    %v549 = vpop.permute.xlu0 %548
    %v551 = vadd.f32 %v531, %v537
    %v552 = vadd.f32 %v532, %v541
    %v553 = vadd.f32 %v533, %v545
    %v554 = vadd.f32 %v534, %v549
    %v555 = vmul.f32 %v551, 0.5
    %v556 = vmul.f32 %v552, 0.5
    %v557 = vmul.f32 %v553, 0.5
    %v558 = vmul.f32 %v554, 0.5
    %v559 = vtanh.pop %v555
    %v560 = vtanh.pop %v556
    %v561 = vtanh.pop %v557
    %v562 = vtanh.pop %v558
    %v563 = vmul.f32 %v559, 0.5
    %v564 = vmul.f32 %v560, 0.5
    %v565 = vmul.f32 %v561, 0.5
    %v566 = vmul.f32 %v562, 0.5
    %v567 = vadd.f32 %v563, 0.5
    %v568 = vadd.f32 %v564, 0.5
    %v569 = vadd.f32 %v565, 0.5
    %v570 = vadd.f32 %v566, 0.5
    %571 = vset.pattern.permute.xlu0 5
    %572 = vperm.xlu0 %571, %v70
    %v573 = vpop.permute.xlu0 %572
    %575 = vset.pattern.permute.xlu0 5
    %576 = vperm.xlu0 %575, %v71
    %v577 = vpop.permute.xlu0 %576
    %579 = vset.pattern.permute.xlu0 5
    %580 = vperm.xlu0 %579, %v72
    %v581 = vpop.permute.xlu0 %580
    %583 = vset.pattern.permute.xlu0 5
    %584 = vperm.xlu0 %583, %v73
    %v585 = vpop.permute.xlu0 %584
    %v587 = vmul.f32 %v567, %v573
    %v588 = vmul.f32 %v568, %v577
    %v589 = vmul.f32 %v569, %v581
    %v590 = vmul.f32 %v570, %v585
    %v591 = vadd.f32 %v506, %v587
    %v592 = vadd.f32 %v507, %v588
    %v593 = vadd.f32 %v508, %v589
    %v594 = vadd.f32 %v509, %v590
    %v595 = vld [vmem:[%s0 + $0x6] sm:$0x1]
    %v596 = vlaneseq
    %v597 = vshrl.u32 %v596, 7
    %v598 = vsub.s32 0, %v597
    %v599 = vrot.slane %v595, %v598
    %600 = vset.pattern.permute.xlu0 6
    %601 = vperm.xlu0 %600, %v62
    %v602 = vpop.permute.xlu0 %601
    %604 = vset.pattern.permute.xlu0 6
    %605 = vperm.xlu0 %604, %v63
    %v606 = vpop.permute.xlu0 %605
    %608 = vset.pattern.permute.xlu0 6
    %609 = vperm.xlu0 %608, %v64
    %v610 = vpop.permute.xlu0 %609
    %612 = vset.pattern.permute.xlu0 6
    %613 = vperm.xlu0 %612, %v65
    %v614 = vpop.permute.xlu0 %613
    %v616 = vmul.f32 %v599, %v602
    %v617 = vmul.f32 %v599, %v606
    %v618 = vmul.f32 %v599, %v610
    %v619 = vmul.f32 %v599, %v614
    %620 = vset.pattern.permute.xlu0 6
    %621 = vperm.xlu0 %620, %v66
    %v622 = vpop.permute.xlu0 %621
    %624 = vset.pattern.permute.xlu0 6
    %625 = vperm.xlu0 %624, %v67
    %v626 = vpop.permute.xlu0 %625
    %628 = vset.pattern.permute.xlu0 6
    %629 = vperm.xlu0 %628, %v68
    %v630 = vpop.permute.xlu0 %629
    %632 = vset.pattern.permute.xlu0 6
    %633 = vperm.xlu0 %632, %v69
    %v634 = vpop.permute.xlu0 %633
    %v636 = vadd.f32 %v616, %v622
    %v637 = vadd.f32 %v617, %v626
    %v638 = vadd.f32 %v618, %v630
    %v639 = vadd.f32 %v619, %v634
    %v640 = vmul.f32 %v636, 0.5
    %v641 = vmul.f32 %v637, 0.5
    %v642 = vmul.f32 %v638, 0.5
    %v643 = vmul.f32 %v639, 0.5
    %v644 = vtanh.pop %v640
    %v645 = vtanh.pop %v641
    %v646 = vtanh.pop %v642
    %v647 = vtanh.pop %v643
    %v648 = vmul.f32 %v644, 0.5
    %v649 = vmul.f32 %v645, 0.5
    %v650 = vmul.f32 %v646, 0.5
    %v651 = vmul.f32 %v647, 0.5
    %v652 = vadd.f32 %v648, 0.5
    %v653 = vadd.f32 %v649, 0.5
    %v654 = vadd.f32 %v650, 0.5
    %v655 = vadd.f32 %v651, 0.5
    %656 = vset.pattern.permute.xlu0 6
    %657 = vperm.xlu0 %656, %v70
    %v658 = vpop.permute.xlu0 %657
    %660 = vset.pattern.permute.xlu0 6
    %661 = vperm.xlu0 %660, %v71
    %v662 = vpop.permute.xlu0 %661
    %664 = vset.pattern.permute.xlu0 6
    %665 = vperm.xlu0 %664, %v72
    %v666 = vpop.permute.xlu0 %665
    %668 = vset.pattern.permute.xlu0 6
    %669 = vperm.xlu0 %668, %v73
    %v670 = vpop.permute.xlu0 %669
    %v672 = vmul.f32 %v652, %v658
    %v673 = vmul.f32 %v653, %v662
    %v674 = vmul.f32 %v654, %v666
    %v675 = vmul.f32 %v655, %v670
    %v676 = vadd.f32 %v591, %v672
    %v677 = vadd.f32 %v592, %v673
    %v678 = vadd.f32 %v593, %v674
    %v679 = vadd.f32 %v594, %v675
    %v680 = vld [vmem:[%s0 + $0x7] sm:$0x1]
    %v681 = vlaneseq
    %v682 = vshrl.u32 %v681, 7
    %v683 = vsub.s32 0, %v682
    %v684 = vrot.slane %v680, %v683
    %685 = vset.pattern.permute.xlu0 7
    %686 = vperm.xlu0 %685, %v62
    %v687 = vpop.permute.xlu0 %686
    %689 = vset.pattern.permute.xlu0 7
    %690 = vperm.xlu0 %689, %v63
    %v691 = vpop.permute.xlu0 %690
    %693 = vset.pattern.permute.xlu0 7
    %694 = vperm.xlu0 %693, %v64
    %v695 = vpop.permute.xlu0 %694
    %697 = vset.pattern.permute.xlu0 7
    %698 = vperm.xlu0 %697, %v65
    %v699 = vpop.permute.xlu0 %698
    %v701 = vmul.f32 %v684, %v687
    %v702 = vmul.f32 %v684, %v691
    %v703 = vmul.f32 %v684, %v695
    %v704 = vmul.f32 %v684, %v699
    %705 = vset.pattern.permute.xlu0 7
    %706 = vperm.xlu0 %705, %v66
    %v707 = vpop.permute.xlu0 %706
    %709 = vset.pattern.permute.xlu0 7
    %710 = vperm.xlu0 %709, %v67
    %v711 = vpop.permute.xlu0 %710
    %713 = vset.pattern.permute.xlu0 7
    %714 = vperm.xlu0 %713, %v68
    %v715 = vpop.permute.xlu0 %714
    %717 = vset.pattern.permute.xlu0 7
    %718 = vperm.xlu0 %717, %v69
    %v719 = vpop.permute.xlu0 %718
    %v721 = vadd.f32 %v701, %v707
    %v722 = vadd.f32 %v702, %v711
    %v723 = vadd.f32 %v703, %v715
    %v724 = vadd.f32 %v704, %v719
    %v725 = vmul.f32 %v721, 0.5
    %v726 = vmul.f32 %v722, 0.5
    %v727 = vmul.f32 %v723, 0.5
    %v728 = vmul.f32 %v724, 0.5
    %v729 = vtanh.pop %v725
    %v730 = vtanh.pop %v726
    %v731 = vtanh.pop %v727
    %v732 = vtanh.pop %v728
    %v733 = vmul.f32 %v729, 0.5
    %v734 = vmul.f32 %v730, 0.5
    %v735 = vmul.f32 %v731, 0.5
    %v736 = vmul.f32 %v732, 0.5
    %v737 = vadd.f32 %v733, 0.5
    %v738 = vadd.f32 %v734, 0.5
    %v739 = vadd.f32 %v735, 0.5
    %v740 = vadd.f32 %v736, 0.5
    %741 = vset.pattern.permute.xlu0 7
    %742 = vperm.xlu0 %741, %v70
    %v743 = vpop.permute.xlu0 %742
    %745 = vset.pattern.permute.xlu0 7
    %746 = vperm.xlu0 %745, %v71
    %v747 = vpop.permute.xlu0 %746
    %749 = vset.pattern.permute.xlu0 7
    %750 = vperm.xlu0 %749, %v72
    %v751 = vpop.permute.xlu0 %750
    %753 = vset.pattern.permute.xlu0 7
    %754 = vperm.xlu0 %753, %v73
    %v755 = vpop.permute.xlu0 %754
    %v757 = vmul.f32 %v737, %v743
    %v758 = vmul.f32 %v738, %v747
    %v759 = vmul.f32 %v739, %v751
    %v760 = vmul.f32 %v740, %v755
    %v761 = vadd.f32 %v676, %v757
    %v762 = vadd.f32 %v677, %v758
    %v763 = vadd.f32 %v678, %v759
    %v764 = vadd.f32 %v679, %v760
    %v765 = vld [vmem:[%s1] sm:$0x1]
    %v766 = vld [vmem:[%s5] sm:$0xff]
    %v767 = vld [vmem:[%s5 + $0x8] sm:$0xff]
    %v768 = vld [vmem:[%s5 + $0x10] sm:$0xff]
    %v769 = vld [vmem:[%s5 + $0x18] sm:$0xff]
    %v770 = vld [vmem:[%s6] sm:$0xff]
    %v771 = vld [vmem:[%s6 + $0x8] sm:$0xff]
    %v772 = vld [vmem:[%s6 + $0x10] sm:$0xff]
    %v773 = vld [vmem:[%s6 + $0x18] sm:$0xff]
    %v774 = vld [vmem:[%s7] sm:$0xff]
    %v775 = vld [vmem:[%s7 + $0x8] sm:$0xff]
    %v776 = vld [vmem:[%s7 + $0x10] sm:$0xff]
    %v777 = vld [vmem:[%s7 + $0x18] sm:$0xff]
    %v778 = vlaneseq
    %v779 = vshrl.u32 %v778, 7
    %v780 = vsub.s32 0, %v779
    %v781 = vrot.slane %v765, %v780
    %783 = vset.pattern.permute.xlu0 0
    %784 = vperm.xlu0 %783, %v766
    %v785 = vpop.permute.xlu0 %784
    %788 = vset.pattern.permute.xlu0 0
    %789 = vperm.xlu0 %788, %v767
    %v790 = vpop.permute.xlu0 %789
    %793 = vset.pattern.permute.xlu0 0
    %794 = vperm.xlu0 %793, %v768
    %v795 = vpop.permute.xlu0 %794
    %798 = vset.pattern.permute.xlu0 0
    %799 = vperm.xlu0 %798, %v769
    %v800 = vpop.permute.xlu0 %799
    %v802 = vmul.f32 %v781, %v785
    %v803 = vmul.f32 %v781, %v790
    %v804 = vmul.f32 %v781, %v795
    %v805 = vmul.f32 %v781, %v800
    %807 = vset.pattern.permute.xlu0 0
    %808 = vperm.xlu0 %807, %v770
    %v809 = vpop.permute.xlu0 %808
    %812 = vset.pattern.permute.xlu0 0
    %813 = vperm.xlu0 %812, %v771
    %v814 = vpop.permute.xlu0 %813
    %817 = vset.pattern.permute.xlu0 0
    %818 = vperm.xlu0 %817, %v772
    %v819 = vpop.permute.xlu0 %818
    %822 = vset.pattern.permute.xlu0 0
    %823 = vperm.xlu0 %822, %v773
    %v824 = vpop.permute.xlu0 %823
    %v826 = vadd.f32 %v802, %v809
    %v827 = vadd.f32 %v803, %v814
    %v828 = vadd.f32 %v804, %v819
    %v829 = vadd.f32 %v805, %v824
    %v830 = vmul.f32 %v826, 0.5
    %v831 = vmul.f32 %v827, 0.5
    %v832 = vmul.f32 %v828, 0.5
    %v833 = vmul.f32 %v829, 0.5
    %v834 = vtanh.pop %v830
    %v835 = vtanh.pop %v831
    %v836 = vtanh.pop %v832
    %v837 = vtanh.pop %v833
    %v838 = vmul.f32 %v834, 0.5
    %v839 = vmul.f32 %v835, 0.5
    %v840 = vmul.f32 %v836, 0.5
    %v841 = vmul.f32 %v837, 0.5
    %v842 = vadd.f32 %v838, 0.5
    %v843 = vadd.f32 %v839, 0.5
    %v844 = vadd.f32 %v840, 0.5
    %v845 = vadd.f32 %v841, 0.5
    %847 = vset.pattern.permute.xlu0 0
    %848 = vperm.xlu0 %847, %v774
    %v849 = vpop.permute.xlu0 %848
    %852 = vset.pattern.permute.xlu0 0
    %853 = vperm.xlu0 %852, %v775
    %v854 = vpop.permute.xlu0 %853
    %857 = vset.pattern.permute.xlu0 0
    %858 = vperm.xlu0 %857, %v776
    %v859 = vpop.permute.xlu0 %858
    %862 = vset.pattern.permute.xlu0 0
    %863 = vperm.xlu0 %862, %v777
    %v864 = vpop.permute.xlu0 %863
    %v866 = vmul.f32 %v842, %v849
    %v867 = vmul.f32 %v843, %v854
    %v868 = vmul.f32 %v844, %v859
    %v869 = vmul.f32 %v845, %v864
    %v870 = vadd.f32 %v761, %v866
    %v871 = vadd.f32 %v762, %v867
    %v872 = vadd.f32 %v763, %v868
    %v873 = vadd.f32 %v764, %v869
    %v874 = vld [vmem:[%s1 + $0x1] sm:$0x1]
    %v875 = vlaneseq
    %v876 = vshrl.u32 %v875, 7
    %v877 = vsub.s32 0, %v876
    %v878 = vrot.slane %v874, %v877
    %879 = vset.pattern.permute.xlu0 1
    %880 = vperm.xlu0 %879, %v766
    %v881 = vpop.permute.xlu0 %880
    %883 = vset.pattern.permute.xlu0 1
    %884 = vperm.xlu0 %883, %v767
    %v885 = vpop.permute.xlu0 %884
    %887 = vset.pattern.permute.xlu0 1
    %888 = vperm.xlu0 %887, %v768
    %v889 = vpop.permute.xlu0 %888
    %891 = vset.pattern.permute.xlu0 1
    %892 = vperm.xlu0 %891, %v769
    %v893 = vpop.permute.xlu0 %892
    %v895 = vmul.f32 %v878, %v881
    %v896 = vmul.f32 %v878, %v885
    %v897 = vmul.f32 %v878, %v889
    %v898 = vmul.f32 %v878, %v893
    %899 = vset.pattern.permute.xlu0 1
    %900 = vperm.xlu0 %899, %v770
    %v901 = vpop.permute.xlu0 %900
    %903 = vset.pattern.permute.xlu0 1
    %904 = vperm.xlu0 %903, %v771
    %v905 = vpop.permute.xlu0 %904
    %907 = vset.pattern.permute.xlu0 1
    %908 = vperm.xlu0 %907, %v772
    %v909 = vpop.permute.xlu0 %908
    %911 = vset.pattern.permute.xlu0 1
    %912 = vperm.xlu0 %911, %v773
    %v913 = vpop.permute.xlu0 %912
    %v915 = vadd.f32 %v895, %v901
    %v916 = vadd.f32 %v896, %v905
    %v917 = vadd.f32 %v897, %v909
    %v918 = vadd.f32 %v898, %v913
    %v919 = vmul.f32 %v915, 0.5
    %v920 = vmul.f32 %v916, 0.5
    %v921 = vmul.f32 %v917, 0.5
    %v922 = vmul.f32 %v918, 0.5
    %v923 = vtanh.pop %v919
    %v924 = vtanh.pop %v920
    %v925 = vtanh.pop %v921
    %v926 = vtanh.pop %v922
    %v927 = vmul.f32 %v923, 0.5
    %v928 = vmul.f32 %v924, 0.5
    %v929 = vmul.f32 %v925, 0.5
    %v930 = vmul.f32 %v926, 0.5
    %v931 = vadd.f32 %v927, 0.5
    %v932 = vadd.f32 %v928, 0.5
    %v933 = vadd.f32 %v929, 0.5
    %v934 = vadd.f32 %v930, 0.5
    %935 = vset.pattern.permute.xlu0 1
    %936 = vperm.xlu0 %935, %v774
    %v937 = vpop.permute.xlu0 %936
    %939 = vset.pattern.permute.xlu0 1
    %940 = vperm.xlu0 %939, %v775
    %v941 = vpop.permute.xlu0 %940
    %943 = vset.pattern.permute.xlu0 1
    %944 = vperm.xlu0 %943, %v776
    %v945 = vpop.permute.xlu0 %944
    %947 = vset.pattern.permute.xlu0 1
    %948 = vperm.xlu0 %947, %v777
    %v949 = vpop.permute.xlu0 %948
    %v951 = vmul.f32 %v931, %v937
    %v952 = vmul.f32 %v932, %v941
    %v953 = vmul.f32 %v933, %v945
    %v954 = vmul.f32 %v934, %v949
    %v955 = vadd.f32 %v870, %v951
    %v956 = vadd.f32 %v871, %v952
    %v957 = vadd.f32 %v872, %v953
    %v958 = vadd.f32 %v873, %v954
    %v959 = vld [vmem:[%s1 + $0x2] sm:$0x1]
    %v960 = vlaneseq
    %v961 = vshrl.u32 %v960, 7
    %v962 = vsub.s32 0, %v961
    %v963 = vrot.slane %v959, %v962
    %964 = vset.pattern.permute.xlu0 2
    %965 = vperm.xlu0 %964, %v766
    %v966 = vpop.permute.xlu0 %965
    %968 = vset.pattern.permute.xlu0 2
    %969 = vperm.xlu0 %968, %v767
    %v970 = vpop.permute.xlu0 %969
    %972 = vset.pattern.permute.xlu0 2
    %973 = vperm.xlu0 %972, %v768
    %v974 = vpop.permute.xlu0 %973
    %976 = vset.pattern.permute.xlu0 2
    %977 = vperm.xlu0 %976, %v769
    %v978 = vpop.permute.xlu0 %977
    %v980 = vmul.f32 %v963, %v966
    %v981 = vmul.f32 %v963, %v970
    %v982 = vmul.f32 %v963, %v974
    %v983 = vmul.f32 %v963, %v978
    %984 = vset.pattern.permute.xlu0 2
    %985 = vperm.xlu0 %984, %v770
    %v986 = vpop.permute.xlu0 %985
    %988 = vset.pattern.permute.xlu0 2
    %989 = vperm.xlu0 %988, %v771
    %v990 = vpop.permute.xlu0 %989
    %992 = vset.pattern.permute.xlu0 2
    %993 = vperm.xlu0 %992, %v772
    %v994 = vpop.permute.xlu0 %993
    %996 = vset.pattern.permute.xlu0 2
    %997 = vperm.xlu0 %996, %v773
    %v998 = vpop.permute.xlu0 %997
    %v1000 = vadd.f32 %v980, %v986
    %v1001 = vadd.f32 %v981, %v990
    %v1002 = vadd.f32 %v982, %v994
    %v1003 = vadd.f32 %v983, %v998
    %v1004 = vmul.f32 %v1000, 0.5
    %v1005 = vmul.f32 %v1001, 0.5
    %v1006 = vmul.f32 %v1002, 0.5
    %v1007 = vmul.f32 %v1003, 0.5
    %v1008 = vtanh.pop %v1004
    %v1009 = vtanh.pop %v1005
    %v1010 = vtanh.pop %v1006
    %v1011 = vtanh.pop %v1007
    %v1012 = vmul.f32 %v1008, 0.5
    %v1013 = vmul.f32 %v1009, 0.5
    %v1014 = vmul.f32 %v1010, 0.5
    %v1015 = vmul.f32 %v1011, 0.5
    %v1016 = vadd.f32 %v1012, 0.5
    %v1017 = vadd.f32 %v1013, 0.5
    %v1018 = vadd.f32 %v1014, 0.5
    %v1019 = vadd.f32 %v1015, 0.5
    %1020 = vset.pattern.permute.xlu0 2
    %1021 = vperm.xlu0 %1020, %v774
    %v1022 = vpop.permute.xlu0 %1021
    %1024 = vset.pattern.permute.xlu0 2
    %1025 = vperm.xlu0 %1024, %v775
    %v1026 = vpop.permute.xlu0 %1025
    %1028 = vset.pattern.permute.xlu0 2
    %1029 = vperm.xlu0 %1028, %v776
    %v1030 = vpop.permute.xlu0 %1029
    %1032 = vset.pattern.permute.xlu0 2
    %1033 = vperm.xlu0 %1032, %v777
    %v1034 = vpop.permute.xlu0 %1033
    %v1036 = vmul.f32 %v1016, %v1022
    %v1037 = vmul.f32 %v1017, %v1026
    %v1038 = vmul.f32 %v1018, %v1030
    %v1039 = vmul.f32 %v1019, %v1034
    %v1040 = vadd.f32 %v955, %v1036
    %v1041 = vadd.f32 %v956, %v1037
    %v1042 = vadd.f32 %v957, %v1038
    %v1043 = vadd.f32 %v958, %v1039
    %v1044 = vld [vmem:[%s1 + $0x3] sm:$0x1]
    %v1045 = vlaneseq
    %v1046 = vshrl.u32 %v1045, 7
    %v1047 = vsub.s32 0, %v1046
    %v1048 = vrot.slane %v1044, %v1047
    %1049 = vset.pattern.permute.xlu0 3
    %1050 = vperm.xlu0 %1049, %v766
    %v1051 = vpop.permute.xlu0 %1050
    %1053 = vset.pattern.permute.xlu0 3
    %1054 = vperm.xlu0 %1053, %v767
    %v1055 = vpop.permute.xlu0 %1054
    %1057 = vset.pattern.permute.xlu0 3
    %1058 = vperm.xlu0 %1057, %v768
    %v1059 = vpop.permute.xlu0 %1058
    %1061 = vset.pattern.permute.xlu0 3
    %1062 = vperm.xlu0 %1061, %v769
    %v1063 = vpop.permute.xlu0 %1062
    %v1065 = vmul.f32 %v1048, %v1051
    %v1066 = vmul.f32 %v1048, %v1055
    %v1067 = vmul.f32 %v1048, %v1059
    %v1068 = vmul.f32 %v1048, %v1063
    %1069 = vset.pattern.permute.xlu0 3
    %1070 = vperm.xlu0 %1069, %v770
    %v1071 = vpop.permute.xlu0 %1070
    %1073 = vset.pattern.permute.xlu0 3
    %1074 = vperm.xlu0 %1073, %v771
    %v1075 = vpop.permute.xlu0 %1074
    %1077 = vset.pattern.permute.xlu0 3
    %1078 = vperm.xlu0 %1077, %v772
    %v1079 = vpop.permute.xlu0 %1078
    %1081 = vset.pattern.permute.xlu0 3
    %1082 = vperm.xlu0 %1081, %v773
    %v1083 = vpop.permute.xlu0 %1082
    %v1085 = vadd.f32 %v1065, %v1071
    %v1086 = vadd.f32 %v1066, %v1075
    %v1087 = vadd.f32 %v1067, %v1079
    %v1088 = vadd.f32 %v1068, %v1083
    %v1089 = vmul.f32 %v1085, 0.5
    %v1090 = vmul.f32 %v1086, 0.5
    %v1091 = vmul.f32 %v1087, 0.5
    %v1092 = vmul.f32 %v1088, 0.5
    %v1093 = vtanh.pop %v1089
    %v1094 = vtanh.pop %v1090
    %v1095 = vtanh.pop %v1091
    %v1096 = vtanh.pop %v1092
    %v1097 = vmul.f32 %v1093, 0.5
    %v1098 = vmul.f32 %v1094, 0.5
    %v1099 = vmul.f32 %v1095, 0.5
    %v1100 = vmul.f32 %v1096, 0.5
    %v1101 = vadd.f32 %v1097, 0.5
    %v1102 = vadd.f32 %v1098, 0.5
    %v1103 = vadd.f32 %v1099, 0.5
    %v1104 = vadd.f32 %v1100, 0.5
    %1105 = vset.pattern.permute.xlu0 3
    %1106 = vperm.xlu0 %1105, %v774
    %v1107 = vpop.permute.xlu0 %1106
    %1109 = vset.pattern.permute.xlu0 3
    %1110 = vperm.xlu0 %1109, %v775
    %v1111 = vpop.permute.xlu0 %1110
    %1113 = vset.pattern.permute.xlu0 3
    %1114 = vperm.xlu0 %1113, %v776
    %v1115 = vpop.permute.xlu0 %1114
    %1117 = vset.pattern.permute.xlu0 3
    %1118 = vperm.xlu0 %1117, %v777
    %v1119 = vpop.permute.xlu0 %1118
    %v1121 = vmul.f32 %v1101, %v1107
    %v1122 = vmul.f32 %v1102, %v1111
    %v1123 = vmul.f32 %v1103, %v1115
    %v1124 = vmul.f32 %v1104, %v1119
    %v1125 = vadd.f32 %v1040, %v1121
    %v1126 = vadd.f32 %v1041, %v1122
    %v1127 = vadd.f32 %v1042, %v1123
    %v1128 = vadd.f32 %v1043, %v1124
    %v1129 = vld [vmem:[%s1 + $0x4] sm:$0x1]
    %v1130 = vlaneseq
    %v1131 = vshrl.u32 %v1130, 7
    %v1132 = vsub.s32 0, %v1131
    %v1133 = vrot.slane %v1129, %v1132
    %1134 = vset.pattern.permute.xlu0 4
    %1135 = vperm.xlu0 %1134, %v766
    %v1136 = vpop.permute.xlu0 %1135
    %1138 = vset.pattern.permute.xlu0 4
    %1139 = vperm.xlu0 %1138, %v767
    %v1140 = vpop.permute.xlu0 %1139
    %1142 = vset.pattern.permute.xlu0 4
    %1143 = vperm.xlu0 %1142, %v768
    %v1144 = vpop.permute.xlu0 %1143
    %1146 = vset.pattern.permute.xlu0 4
    %1147 = vperm.xlu0 %1146, %v769
    %v1148 = vpop.permute.xlu0 %1147
    %v1150 = vmul.f32 %v1133, %v1136
    %v1151 = vmul.f32 %v1133, %v1140
    %v1152 = vmul.f32 %v1133, %v1144
    %v1153 = vmul.f32 %v1133, %v1148
    %1154 = vset.pattern.permute.xlu0 4
    %1155 = vperm.xlu0 %1154, %v770
    %v1156 = vpop.permute.xlu0 %1155
    %1158 = vset.pattern.permute.xlu0 4
    %1159 = vperm.xlu0 %1158, %v771
    %v1160 = vpop.permute.xlu0 %1159
    %1162 = vset.pattern.permute.xlu0 4
    %1163 = vperm.xlu0 %1162, %v772
    %v1164 = vpop.permute.xlu0 %1163
    %1166 = vset.pattern.permute.xlu0 4
    %1167 = vperm.xlu0 %1166, %v773
    %v1168 = vpop.permute.xlu0 %1167
    %v1170 = vadd.f32 %v1150, %v1156
    %v1171 = vadd.f32 %v1151, %v1160
    %v1172 = vadd.f32 %v1152, %v1164
    %v1173 = vadd.f32 %v1153, %v1168
    %v1174 = vmul.f32 %v1170, 0.5
    %v1175 = vmul.f32 %v1171, 0.5
    %v1176 = vmul.f32 %v1172, 0.5
    %v1177 = vmul.f32 %v1173, 0.5
    %v1178 = vtanh.pop %v1174
    %v1179 = vtanh.pop %v1175
    %v1180 = vtanh.pop %v1176
    %v1181 = vtanh.pop %v1177
    %v1182 = vmul.f32 %v1178, 0.5
    %v1183 = vmul.f32 %v1179, 0.5
    %v1184 = vmul.f32 %v1180, 0.5
    %v1185 = vmul.f32 %v1181, 0.5
    %v1186 = vadd.f32 %v1182, 0.5
    %v1187 = vadd.f32 %v1183, 0.5
    %v1188 = vadd.f32 %v1184, 0.5
    %v1189 = vadd.f32 %v1185, 0.5
    %1190 = vset.pattern.permute.xlu0 4
    %1191 = vperm.xlu0 %1190, %v774
    %v1192 = vpop.permute.xlu0 %1191
    %1194 = vset.pattern.permute.xlu0 4
    %1195 = vperm.xlu0 %1194, %v775
    %v1196 = vpop.permute.xlu0 %1195
    %1198 = vset.pattern.permute.xlu0 4
    %1199 = vperm.xlu0 %1198, %v776
    %v1200 = vpop.permute.xlu0 %1199
    %1202 = vset.pattern.permute.xlu0 4
    %1203 = vperm.xlu0 %1202, %v777
    %v1204 = vpop.permute.xlu0 %1203
    %v1206 = vmul.f32 %v1186, %v1192
    %v1207 = vmul.f32 %v1187, %v1196
    %v1208 = vmul.f32 %v1188, %v1200
    %v1209 = vmul.f32 %v1189, %v1204
    %v1210 = vadd.f32 %v1125, %v1206
    %v1211 = vadd.f32 %v1126, %v1207
    %v1212 = vadd.f32 %v1127, %v1208
    %v1213 = vadd.f32 %v1128, %v1209
    %v1214 = vld [vmem:[%s1 + $0x5] sm:$0x1]
    %v1215 = vlaneseq
    %v1216 = vshrl.u32 %v1215, 7
    %v1217 = vsub.s32 0, %v1216
    %v1218 = vrot.slane %v1214, %v1217
    %1219 = vset.pattern.permute.xlu0 5
    %1220 = vperm.xlu0 %1219, %v766
    %v1221 = vpop.permute.xlu0 %1220
    %1223 = vset.pattern.permute.xlu0 5
    %1224 = vperm.xlu0 %1223, %v767
    %v1225 = vpop.permute.xlu0 %1224
    %1227 = vset.pattern.permute.xlu0 5
    %1228 = vperm.xlu0 %1227, %v768
    %v1229 = vpop.permute.xlu0 %1228
    %1231 = vset.pattern.permute.xlu0 5
    %1232 = vperm.xlu0 %1231, %v769
    %v1233 = vpop.permute.xlu0 %1232
    %v1235 = vmul.f32 %v1218, %v1221
    %v1236 = vmul.f32 %v1218, %v1225
    %v1237 = vmul.f32 %v1218, %v1229
    %v1238 = vmul.f32 %v1218, %v1233
    %1239 = vset.pattern.permute.xlu0 5
    %1240 = vperm.xlu0 %1239, %v770
    %v1241 = vpop.permute.xlu0 %1240
    %1243 = vset.pattern.permute.xlu0 5
    %1244 = vperm.xlu0 %1243, %v771
    %v1245 = vpop.permute.xlu0 %1244
    %1247 = vset.pattern.permute.xlu0 5
    %1248 = vperm.xlu0 %1247, %v772
    %v1249 = vpop.permute.xlu0 %1248
    %1251 = vset.pattern.permute.xlu0 5
    %1252 = vperm.xlu0 %1251, %v773
    %v1253 = vpop.permute.xlu0 %1252
    %v1255 = vadd.f32 %v1235, %v1241
    %v1256 = vadd.f32 %v1236, %v1245
    %v1257 = vadd.f32 %v1237, %v1249
    %v1258 = vadd.f32 %v1238, %v1253
    %v1259 = vmul.f32 %v1255, 0.5
    %v1260 = vmul.f32 %v1256, 0.5
    %v1261 = vmul.f32 %v1257, 0.5
    %v1262 = vmul.f32 %v1258, 0.5
    %v1263 = vtanh.pop %v1259
    %v1264 = vtanh.pop %v1260
    %v1265 = vtanh.pop %v1261
    %v1266 = vtanh.pop %v1262
    %v1267 = vmul.f32 %v1263, 0.5
    %v1268 = vmul.f32 %v1264, 0.5
    %v1269 = vmul.f32 %v1265, 0.5
    %v1270 = vmul.f32 %v1266, 0.5
    %v1271 = vadd.f32 %v1267, 0.5
    %v1272 = vadd.f32 %v1268, 0.5
    %v1273 = vadd.f32 %v1269, 0.5
    %v1274 = vadd.f32 %v1270, 0.5
    %1275 = vset.pattern.permute.xlu0 5
    %1276 = vperm.xlu0 %1275, %v774
    %v1277 = vpop.permute.xlu0 %1276
    %1279 = vset.pattern.permute.xlu0 5
    %1280 = vperm.xlu0 %1279, %v775
    %v1281 = vpop.permute.xlu0 %1280
    %1283 = vset.pattern.permute.xlu0 5
    %1284 = vperm.xlu0 %1283, %v776
    %v1285 = vpop.permute.xlu0 %1284
    %1287 = vset.pattern.permute.xlu0 5
    %1288 = vperm.xlu0 %1287, %v777
    %v1289 = vpop.permute.xlu0 %1288
    %v1291 = vmul.f32 %v1271, %v1277
    %v1292 = vmul.f32 %v1272, %v1281
    %v1293 = vmul.f32 %v1273, %v1285
    %v1294 = vmul.f32 %v1274, %v1289
    %v1295 = vadd.f32 %v1210, %v1291
    %v1296 = vadd.f32 %v1211, %v1292
    %v1297 = vadd.f32 %v1212, %v1293
    %v1298 = vadd.f32 %v1213, %v1294
    %v1299 = vld [vmem:[%s1 + $0x6] sm:$0x1]
    %v1300 = vlaneseq
    %v1301 = vshrl.u32 %v1300, 7
    %v1302 = vsub.s32 0, %v1301
    %v1303 = vrot.slane %v1299, %v1302
    %1304 = vset.pattern.permute.xlu0 6
    %1305 = vperm.xlu0 %1304, %v766
    %v1306 = vpop.permute.xlu0 %1305
    %1308 = vset.pattern.permute.xlu0 6
    %1309 = vperm.xlu0 %1308, %v767
    %v1310 = vpop.permute.xlu0 %1309
    %1312 = vset.pattern.permute.xlu0 6
    %1313 = vperm.xlu0 %1312, %v768
    %v1314 = vpop.permute.xlu0 %1313
    %1316 = vset.pattern.permute.xlu0 6
    %1317 = vperm.xlu0 %1316, %v769
    %v1318 = vpop.permute.xlu0 %1317
    %v1320 = vmul.f32 %v1303, %v1306
    %v1321 = vmul.f32 %v1303, %v1310
    %v1322 = vmul.f32 %v1303, %v1314
    %v1323 = vmul.f32 %v1303, %v1318
    %1324 = vset.pattern.permute.xlu0 6
    %1325 = vperm.xlu0 %1324, %v770
    %v1326 = vpop.permute.xlu0 %1325
    %1328 = vset.pattern.permute.xlu0 6
    %1329 = vperm.xlu0 %1328, %v771
    %v1330 = vpop.permute.xlu0 %1329
    %1332 = vset.pattern.permute.xlu0 6
    %1333 = vperm.xlu0 %1332, %v772
    %v1334 = vpop.permute.xlu0 %1333
    %1336 = vset.pattern.permute.xlu0 6
    %1337 = vperm.xlu0 %1336, %v773
    %v1338 = vpop.permute.xlu0 %1337
    %v1340 = vadd.f32 %v1320, %v1326
    %v1341 = vadd.f32 %v1321, %v1330
    %v1342 = vadd.f32 %v1322, %v1334
    %v1343 = vadd.f32 %v1323, %v1338
    %v1344 = vmul.f32 %v1340, 0.5
    %v1345 = vmul.f32 %v1341, 0.5
    %v1346 = vmul.f32 %v1342, 0.5
    %v1347 = vmul.f32 %v1343, 0.5
    %v1348 = vtanh.pop %v1344
    %v1349 = vtanh.pop %v1345
    %v1350 = vtanh.pop %v1346
    %v1351 = vtanh.pop %v1347
    %v1352 = vmul.f32 %v1348, 0.5
    %v1353 = vmul.f32 %v1349, 0.5
    %v1354 = vmul.f32 %v1350, 0.5
    %v1355 = vmul.f32 %v1351, 0.5
    %v1356 = vadd.f32 %v1352, 0.5
    %v1357 = vadd.f32 %v1353, 0.5
    %v1358 = vadd.f32 %v1354, 0.5
    %v1359 = vadd.f32 %v1355, 0.5
    %1360 = vset.pattern.permute.xlu0 6
    %1361 = vperm.xlu0 %1360, %v774
    %v1362 = vpop.permute.xlu0 %1361
    %1364 = vset.pattern.permute.xlu0 6
    %1365 = vperm.xlu0 %1364, %v775
    %v1366 = vpop.permute.xlu0 %1365
    %1368 = vset.pattern.permute.xlu0 6
    %1369 = vperm.xlu0 %1368, %v776
    %v1370 = vpop.permute.xlu0 %1369
    %1372 = vset.pattern.permute.xlu0 6
    %1373 = vperm.xlu0 %1372, %v777
    %v1374 = vpop.permute.xlu0 %1373
    %v1376 = vmul.f32 %v1356, %v1362
    %v1377 = vmul.f32 %v1357, %v1366
    %v1378 = vmul.f32 %v1358, %v1370
    %v1379 = vmul.f32 %v1359, %v1374
    %v1380 = vadd.f32 %v1295, %v1376
    %v1381 = vadd.f32 %v1296, %v1377
    %v1382 = vadd.f32 %v1297, %v1378
    %v1383 = vadd.f32 %v1298, %v1379
    %v1384 = vld [vmem:[%s1 + $0x7] sm:$0x1]
    %v1385 = vlaneseq
    %v1386 = vshrl.u32 %v1385, 7
    %v1387 = vsub.s32 0, %v1386
    %v1388 = vrot.slane %v1384, %v1387
    %1389 = vset.pattern.permute.xlu0 7
    %1390 = vperm.xlu0 %1389, %v766
    %v1391 = vpop.permute.xlu0 %1390
    %1393 = vset.pattern.permute.xlu0 7
    %1394 = vperm.xlu0 %1393, %v767
    %v1395 = vpop.permute.xlu0 %1394
    %1397 = vset.pattern.permute.xlu0 7
    %1398 = vperm.xlu0 %1397, %v768
    %v1399 = vpop.permute.xlu0 %1398
    %1401 = vset.pattern.permute.xlu0 7
    %1402 = vperm.xlu0 %1401, %v769
    %v1403 = vpop.permute.xlu0 %1402
    %v1405 = vmul.f32 %v1388, %v1391
    %v1406 = vmul.f32 %v1388, %v1395
    %v1407 = vmul.f32 %v1388, %v1399
    %v1408 = vmul.f32 %v1388, %v1403
    %1409 = vset.pattern.permute.xlu0 7
    %1410 = vperm.xlu0 %1409, %v770
    %v1411 = vpop.permute.xlu0 %1410
    %1413 = vset.pattern.permute.xlu0 7
    %1414 = vperm.xlu0 %1413, %v771
    %v1415 = vpop.permute.xlu0 %1414
    %1417 = vset.pattern.permute.xlu0 7
    %1418 = vperm.xlu0 %1417, %v772
    %v1419 = vpop.permute.xlu0 %1418
    %1421 = vset.pattern.permute.xlu0 7
    %1422 = vperm.xlu0 %1421, %v773
    %v1423 = vpop.permute.xlu0 %1422
    %v1425 = vadd.f32 %v1405, %v1411
    %v1426 = vadd.f32 %v1406, %v1415
    %v1427 = vadd.f32 %v1407, %v1419
    %v1428 = vadd.f32 %v1408, %v1423
    %v1429 = vmul.f32 %v1425, 0.5
    %v1430 = vmul.f32 %v1426, 0.5
    %v1431 = vmul.f32 %v1427, 0.5
    %v1432 = vmul.f32 %v1428, 0.5
    %v1433 = vtanh.pop %v1429
    %v1434 = vtanh.pop %v1430
    %v1435 = vtanh.pop %v1431
    %v1436 = vtanh.pop %v1432
    %v1437 = vmul.f32 %v1433, 0.5
    %v1438 = vmul.f32 %v1434, 0.5
    %v1439 = vmul.f32 %v1435, 0.5
    %v1440 = vmul.f32 %v1436, 0.5
    %v1441 = vadd.f32 %v1437, 0.5
    %v1442 = vadd.f32 %v1438, 0.5
    %v1443 = vadd.f32 %v1439, 0.5
    %v1444 = vadd.f32 %v1440, 0.5
    %1445 = vset.pattern.permute.xlu0 7
    %1446 = vperm.xlu0 %1445, %v774
    %v1447 = vpop.permute.xlu0 %1446
    %1449 = vset.pattern.permute.xlu0 7
    %1450 = vperm.xlu0 %1449, %v775
    %v1451 = vpop.permute.xlu0 %1450
    %1453 = vset.pattern.permute.xlu0 7
    %1454 = vperm.xlu0 %1453, %v776
    %v1455 = vpop.permute.xlu0 %1454
    %1457 = vset.pattern.permute.xlu0 7
    %1458 = vperm.xlu0 %1457, %v777
    %v1459 = vpop.permute.xlu0 %1458
    %v1461 = vmul.f32 %v1441, %v1447
    %v1462 = vmul.f32 %v1442, %v1451
    %v1463 = vmul.f32 %v1443, %v1455
    %v1464 = vmul.f32 %v1444, %v1459
    %v1465 = vadd.f32 %v1380, %v1461
    %v1466 = vadd.f32 %v1381, %v1462
    %v1467 = vadd.f32 %v1382, %v1463
    %v1468 = vadd.f32 %v1383, %v1464
    %v1469 = vld [vmem:[%s1 + $0x8] sm:$0x1]
    %v1470 = vlaneseq
    %v1471 = vshrl.u32 %v1470, 7
    %v1472 = vsub.s32 0, %v1471
    %v1473 = vrot.slane %v1469, %v1472
    %1474 = vset.pattern.permute.xlu0 8
    %1475 = vperm.xlu0 %1474, %v766
    %v1476 = vpop.permute.xlu0 %1475
    %1478 = vset.pattern.permute.xlu0 8
    %1479 = vperm.xlu0 %1478, %v767
    %v1480 = vpop.permute.xlu0 %1479
    %1482 = vset.pattern.permute.xlu0 8
    %1483 = vperm.xlu0 %1482, %v768
    %v1484 = vpop.permute.xlu0 %1483
    %1486 = vset.pattern.permute.xlu0 8
    %1487 = vperm.xlu0 %1486, %v769
    %v1488 = vpop.permute.xlu0 %1487
    %v1490 = vmul.f32 %v1473, %v1476
    %v1491 = vmul.f32 %v1473, %v1480
    %v1492 = vmul.f32 %v1473, %v1484
    %v1493 = vmul.f32 %v1473, %v1488
    %1494 = vset.pattern.permute.xlu0 8
    %1495 = vperm.xlu0 %1494, %v770
    %v1496 = vpop.permute.xlu0 %1495
    %1498 = vset.pattern.permute.xlu0 8
    %1499 = vperm.xlu0 %1498, %v771
    %v1500 = vpop.permute.xlu0 %1499
    %1502 = vset.pattern.permute.xlu0 8
    %1503 = vperm.xlu0 %1502, %v772
    %v1504 = vpop.permute.xlu0 %1503
    %1506 = vset.pattern.permute.xlu0 8
    %1507 = vperm.xlu0 %1506, %v773
    %v1508 = vpop.permute.xlu0 %1507
    %v1510 = vadd.f32 %v1490, %v1496
    %v1511 = vadd.f32 %v1491, %v1500
    %v1512 = vadd.f32 %v1492, %v1504
    %v1513 = vadd.f32 %v1493, %v1508
    %v1514 = vmul.f32 %v1510, 0.5
    %v1515 = vmul.f32 %v1511, 0.5
    %v1516 = vmul.f32 %v1512, 0.5
    %v1517 = vmul.f32 %v1513, 0.5
    %v1518 = vtanh.pop %v1514
    %v1519 = vtanh.pop %v1515
    %v1520 = vtanh.pop %v1516
    %v1521 = vtanh.pop %v1517
    %v1522 = vmul.f32 %v1518, 0.5
    %v1523 = vmul.f32 %v1519, 0.5
    %v1524 = vmul.f32 %v1520, 0.5
    %v1525 = vmul.f32 %v1521, 0.5
    %v1526 = vadd.f32 %v1522, 0.5
    %v1527 = vadd.f32 %v1523, 0.5
    %v1528 = vadd.f32 %v1524, 0.5
    %v1529 = vadd.f32 %v1525, 0.5
    %1530 = vset.pattern.permute.xlu0 8
    %1531 = vperm.xlu0 %1530, %v774
    %v1532 = vpop.permute.xlu0 %1531
    %1534 = vset.pattern.permute.xlu0 8
    %1535 = vperm.xlu0 %1534, %v775
    %v1536 = vpop.permute.xlu0 %1535
    %1538 = vset.pattern.permute.xlu0 8
    %1539 = vperm.xlu0 %1538, %v776
    %v1540 = vpop.permute.xlu0 %1539
    %1542 = vset.pattern.permute.xlu0 8
    %1543 = vperm.xlu0 %1542, %v777
    %v1544 = vpop.permute.xlu0 %1543
    %v1546 = vmul.f32 %v1526, %v1532
    %v1547 = vmul.f32 %v1527, %v1536
    %v1548 = vmul.f32 %v1528, %v1540
    %v1549 = vmul.f32 %v1529, %v1544
    %v1550 = vadd.f32 %v1465, %v1546
    %v1551 = vadd.f32 %v1466, %v1547
    %v1552 = vadd.f32 %v1467, %v1548
    %v1553 = vadd.f32 %v1468, %v1549
    %v1554 = vld [vmem:[%s1 + $0x9] sm:$0x1]
    %v1555 = vlaneseq
    %v1556 = vshrl.u32 %v1555, 7
    %v1557 = vsub.s32 0, %v1556
    %v1558 = vrot.slane %v1554, %v1557
    %1559 = vset.pattern.permute.xlu0 9
    %1560 = vperm.xlu0 %1559, %v766
    %v1561 = vpop.permute.xlu0 %1560
    %1563 = vset.pattern.permute.xlu0 9
    %1564 = vperm.xlu0 %1563, %v767
    %v1565 = vpop.permute.xlu0 %1564
    %1567 = vset.pattern.permute.xlu0 9
    %1568 = vperm.xlu0 %1567, %v768
    %v1569 = vpop.permute.xlu0 %1568
    %1571 = vset.pattern.permute.xlu0 9
    %1572 = vperm.xlu0 %1571, %v769
    %v1573 = vpop.permute.xlu0 %1572
    %v1575 = vmul.f32 %v1558, %v1561
    %v1576 = vmul.f32 %v1558, %v1565
    %v1577 = vmul.f32 %v1558, %v1569
    %v1578 = vmul.f32 %v1558, %v1573
    %1579 = vset.pattern.permute.xlu0 9
    %1580 = vperm.xlu0 %1579, %v770
    %v1581 = vpop.permute.xlu0 %1580
    %1583 = vset.pattern.permute.xlu0 9
    %1584 = vperm.xlu0 %1583, %v771
    %v1585 = vpop.permute.xlu0 %1584
    %1587 = vset.pattern.permute.xlu0 9
    %1588 = vperm.xlu0 %1587, %v772
    %v1589 = vpop.permute.xlu0 %1588
    %1591 = vset.pattern.permute.xlu0 9
    %1592 = vperm.xlu0 %1591, %v773
    %v1593 = vpop.permute.xlu0 %1592
    %v1595 = vadd.f32 %v1575, %v1581
    %v1596 = vadd.f32 %v1576, %v1585
    %v1597 = vadd.f32 %v1577, %v1589
    %v1598 = vadd.f32 %v1578, %v1593
    %v1599 = vmul.f32 %v1595, 0.5
    %v1600 = vmul.f32 %v1596, 0.5
    %v1601 = vmul.f32 %v1597, 0.5
    %v1602 = vmul.f32 %v1598, 0.5
    %v1603 = vtanh.pop %v1599
    %v1604 = vtanh.pop %v1600
    %v1605 = vtanh.pop %v1601
    %v1606 = vtanh.pop %v1602
    %v1607 = vmul.f32 %v1603, 0.5
    %v1608 = vmul.f32 %v1604, 0.5
    %v1609 = vmul.f32 %v1605, 0.5
    %v1610 = vmul.f32 %v1606, 0.5
    %v1611 = vadd.f32 %v1607, 0.5
    %v1612 = vadd.f32 %v1608, 0.5
    %v1613 = vadd.f32 %v1609, 0.5
    %v1614 = vadd.f32 %v1610, 0.5
    %1615 = vset.pattern.permute.xlu0 9
    %1616 = vperm.xlu0 %1615, %v774
    %v1617 = vpop.permute.xlu0 %1616
    %1619 = vset.pattern.permute.xlu0 9
    %1620 = vperm.xlu0 %1619, %v775
    %v1621 = vpop.permute.xlu0 %1620
    %1623 = vset.pattern.permute.xlu0 9
    %1624 = vperm.xlu0 %1623, %v776
    %v1625 = vpop.permute.xlu0 %1624
    %1627 = vset.pattern.permute.xlu0 9
    %1628 = vperm.xlu0 %1627, %v777
    %v1629 = vpop.permute.xlu0 %1628
    %v1631 = vmul.f32 %v1611, %v1617
    %v1632 = vmul.f32 %v1612, %v1621
    %v1633 = vmul.f32 %v1613, %v1625
    %v1634 = vmul.f32 %v1614, %v1629
    %v1635 = vadd.f32 %v1550, %v1631
    %v1636 = vadd.f32 %v1551, %v1632
    %v1637 = vadd.f32 %v1552, %v1633
    %v1638 = vadd.f32 %v1553, %v1634
    %v1639 = vld [vmem:[%s1 + $0xa] sm:$0x1]
    %v1640 = vlaneseq
    %v1641 = vshrl.u32 %v1640, 7
    %v1642 = vsub.s32 0, %v1641
    %v1643 = vrot.slane %v1639, %v1642
    %1644 = vset.pattern.permute.xlu0 10
    %1645 = vperm.xlu0 %1644, %v766
    %v1646 = vpop.permute.xlu0 %1645
    %1648 = vset.pattern.permute.xlu0 10
    %1649 = vperm.xlu0 %1648, %v767
    %v1650 = vpop.permute.xlu0 %1649
    %1652 = vset.pattern.permute.xlu0 10
    %1653 = vperm.xlu0 %1652, %v768
    %v1654 = vpop.permute.xlu0 %1653
    %1656 = vset.pattern.permute.xlu0 10
    %1657 = vperm.xlu0 %1656, %v769
    %v1658 = vpop.permute.xlu0 %1657
    %v1660 = vmul.f32 %v1643, %v1646
    %v1661 = vmul.f32 %v1643, %v1650
    %v1662 = vmul.f32 %v1643, %v1654
    %v1663 = vmul.f32 %v1643, %v1658
    %1664 = vset.pattern.permute.xlu0 10
    %1665 = vperm.xlu0 %1664, %v770
    %v1666 = vpop.permute.xlu0 %1665
    %1668 = vset.pattern.permute.xlu0 10
    %1669 = vperm.xlu0 %1668, %v771
    %v1670 = vpop.permute.xlu0 %1669
    %1672 = vset.pattern.permute.xlu0 10
    %1673 = vperm.xlu0 %1672, %v772
    %v1674 = vpop.permute.xlu0 %1673
    %1676 = vset.pattern.permute.xlu0 10
    %1677 = vperm.xlu0 %1676, %v773
    %v1678 = vpop.permute.xlu0 %1677
    %v1680 = vadd.f32 %v1660, %v1666
    %v1681 = vadd.f32 %v1661, %v1670
    %v1682 = vadd.f32 %v1662, %v1674
    %v1683 = vadd.f32 %v1663, %v1678
    %v1684 = vmul.f32 %v1680, 0.5
    %v1685 = vmul.f32 %v1681, 0.5
    %v1686 = vmul.f32 %v1682, 0.5
    %v1687 = vmul.f32 %v1683, 0.5
    %v1688 = vtanh.pop %v1684
    %v1689 = vtanh.pop %v1685
    %v1690 = vtanh.pop %v1686
    %v1691 = vtanh.pop %v1687
    %v1692 = vmul.f32 %v1688, 0.5
    %v1693 = vmul.f32 %v1689, 0.5
    %v1694 = vmul.f32 %v1690, 0.5
    %v1695 = vmul.f32 %v1691, 0.5
    %v1696 = vadd.f32 %v1692, 0.5
    %v1697 = vadd.f32 %v1693, 0.5
    %v1698 = vadd.f32 %v1694, 0.5
    %v1699 = vadd.f32 %v1695, 0.5
    %1700 = vset.pattern.permute.xlu0 10
    %1701 = vperm.xlu0 %1700, %v774
    %v1702 = vpop.permute.xlu0 %1701
    %1704 = vset.pattern.permute.xlu0 10
    %1705 = vperm.xlu0 %1704, %v775
    %v1706 = vpop.permute.xlu0 %1705
    %1708 = vset.pattern.permute.xlu0 10
    %1709 = vperm.xlu0 %1708, %v776
    %v1710 = vpop.permute.xlu0 %1709
    %1712 = vset.pattern.permute.xlu0 10
    %1713 = vperm.xlu0 %1712, %v777
    %v1714 = vpop.permute.xlu0 %1713
    %v1716 = vmul.f32 %v1696, %v1702
    %v1717 = vmul.f32 %v1697, %v1706
    %v1718 = vmul.f32 %v1698, %v1710
    %v1719 = vmul.f32 %v1699, %v1714
    %v1720 = vadd.f32 %v1635, %v1716
    %v1721 = vadd.f32 %v1636, %v1717
    %v1722 = vadd.f32 %v1637, %v1718
    %v1723 = vadd.f32 %v1638, %v1719
    %v1724 = vld [vmem:[%s1 + $0xb] sm:$0x1]
    %v1725 = vlaneseq
    %v1726 = vshrl.u32 %v1725, 7
    %v1727 = vsub.s32 0, %v1726
    %v1728 = vrot.slane %v1724, %v1727
    %1729 = vset.pattern.permute.xlu0 11
    %1730 = vperm.xlu0 %1729, %v766
    %v1731 = vpop.permute.xlu0 %1730
    %1733 = vset.pattern.permute.xlu0 11
    %1734 = vperm.xlu0 %1733, %v767
    %v1735 = vpop.permute.xlu0 %1734
    %1737 = vset.pattern.permute.xlu0 11
    %1738 = vperm.xlu0 %1737, %v768
    %v1739 = vpop.permute.xlu0 %1738
    %1741 = vset.pattern.permute.xlu0 11
    %1742 = vperm.xlu0 %1741, %v769
    %v1743 = vpop.permute.xlu0 %1742
    %v1745 = vmul.f32 %v1728, %v1731
    %v1746 = vmul.f32 %v1728, %v1735
    %v1747 = vmul.f32 %v1728, %v1739
    %v1748 = vmul.f32 %v1728, %v1743
    %1749 = vset.pattern.permute.xlu0 11
    %1750 = vperm.xlu0 %1749, %v770
    %v1751 = vpop.permute.xlu0 %1750
    %1753 = vset.pattern.permute.xlu0 11
    %1754 = vperm.xlu0 %1753, %v771
    %v1755 = vpop.permute.xlu0 %1754
    %1757 = vset.pattern.permute.xlu0 11
    %1758 = vperm.xlu0 %1757, %v772
    %v1759 = vpop.permute.xlu0 %1758
    %1761 = vset.pattern.permute.xlu0 11
    %1762 = vperm.xlu0 %1761, %v773
    %v1763 = vpop.permute.xlu0 %1762
    %v1765 = vadd.f32 %v1745, %v1751
    %v1766 = vadd.f32 %v1746, %v1755
    %v1767 = vadd.f32 %v1747, %v1759
    %v1768 = vadd.f32 %v1748, %v1763
    %v1769 = vmul.f32 %v1765, 0.5
    %v1770 = vmul.f32 %v1766, 0.5
    %v1771 = vmul.f32 %v1767, 0.5
    %v1772 = vmul.f32 %v1768, 0.5
    %v1773 = vtanh.pop %v1769
    %v1774 = vtanh.pop %v1770
    %v1775 = vtanh.pop %v1771
    %v1776 = vtanh.pop %v1772
    %v1777 = vmul.f32 %v1773, 0.5
    %v1778 = vmul.f32 %v1774, 0.5
    %v1779 = vmul.f32 %v1775, 0.5
    %v1780 = vmul.f32 %v1776, 0.5
    %v1781 = vadd.f32 %v1777, 0.5
    %v1782 = vadd.f32 %v1778, 0.5
    %v1783 = vadd.f32 %v1779, 0.5
    %v1784 = vadd.f32 %v1780, 0.5
    %1785 = vset.pattern.permute.xlu0 11
    %1786 = vperm.xlu0 %1785, %v774
    %v1787 = vpop.permute.xlu0 %1786
    %1789 = vset.pattern.permute.xlu0 11
    %1790 = vperm.xlu0 %1789, %v775
    %v1791 = vpop.permute.xlu0 %1790
    %1793 = vset.pattern.permute.xlu0 11
    %1794 = vperm.xlu0 %1793, %v776
    %v1795 = vpop.permute.xlu0 %1794
    %1797 = vset.pattern.permute.xlu0 11
    %1798 = vperm.xlu0 %1797, %v777
    %v1799 = vpop.permute.xlu0 %1798
    %v1801 = vmul.f32 %v1781, %v1787
    %v1802 = vmul.f32 %v1782, %v1791
    %v1803 = vmul.f32 %v1783, %v1795
    %v1804 = vmul.f32 %v1784, %v1799
    %v1805 = vadd.f32 %v1720, %v1801
    %v1806 = vadd.f32 %v1721, %v1802
    %v1807 = vadd.f32 %v1722, %v1803
    %v1808 = vadd.f32 %v1723, %v1804
    %v1809 = vld [vmem:[%s1 + $0xc] sm:$0x1]
    %v1810 = vlaneseq
    %v1811 = vshrl.u32 %v1810, 7
    %v1812 = vsub.s32 0, %v1811
    %v1813 = vrot.slane %v1809, %v1812
    %1814 = vset.pattern.permute.xlu0 12
    %1815 = vperm.xlu0 %1814, %v766
    %v1816 = vpop.permute.xlu0 %1815
    %1818 = vset.pattern.permute.xlu0 12
    %1819 = vperm.xlu0 %1818, %v767
    %v1820 = vpop.permute.xlu0 %1819
    %1822 = vset.pattern.permute.xlu0 12
    %1823 = vperm.xlu0 %1822, %v768
    %v1824 = vpop.permute.xlu0 %1823
    %1826 = vset.pattern.permute.xlu0 12
    %1827 = vperm.xlu0 %1826, %v769
    %v1828 = vpop.permute.xlu0 %1827
    %v1830 = vmul.f32 %v1813, %v1816
    %v1831 = vmul.f32 %v1813, %v1820
    %v1832 = vmul.f32 %v1813, %v1824
    %v1833 = vmul.f32 %v1813, %v1828
    %1834 = vset.pattern.permute.xlu0 12
    %1835 = vperm.xlu0 %1834, %v770
    %v1836 = vpop.permute.xlu0 %1835
    %1838 = vset.pattern.permute.xlu0 12
    %1839 = vperm.xlu0 %1838, %v771
    %v1840 = vpop.permute.xlu0 %1839
    %1842 = vset.pattern.permute.xlu0 12
    %1843 = vperm.xlu0 %1842, %v772
    %v1844 = vpop.permute.xlu0 %1843
    %1846 = vset.pattern.permute.xlu0 12
    %1847 = vperm.xlu0 %1846, %v773
    %v1848 = vpop.permute.xlu0 %1847
    %v1850 = vadd.f32 %v1830, %v1836
    %v1851 = vadd.f32 %v1831, %v1840
    %v1852 = vadd.f32 %v1832, %v1844
    %v1853 = vadd.f32 %v1833, %v1848
    %v1854 = vmul.f32 %v1850, 0.5
    %v1855 = vmul.f32 %v1851, 0.5
    %v1856 = vmul.f32 %v1852, 0.5
    %v1857 = vmul.f32 %v1853, 0.5
    %v1858 = vtanh.pop %v1854
    %v1859 = vtanh.pop %v1855
    %v1860 = vtanh.pop %v1856
    %v1861 = vtanh.pop %v1857
    %v1862 = vmul.f32 %v1858, 0.5
    %v1863 = vmul.f32 %v1859, 0.5
    %v1864 = vmul.f32 %v1860, 0.5
    %v1865 = vmul.f32 %v1861, 0.5
    %v1866 = vadd.f32 %v1862, 0.5
    %v1867 = vadd.f32 %v1863, 0.5
    %v1868 = vadd.f32 %v1864, 0.5
    %v1869 = vadd.f32 %v1865, 0.5
    %1870 = vset.pattern.permute.xlu0 12
    %1871 = vperm.xlu0 %1870, %v774
    %v1872 = vpop.permute.xlu0 %1871
    %1874 = vset.pattern.permute.xlu0 12
    %1875 = vperm.xlu0 %1874, %v775
    %v1876 = vpop.permute.xlu0 %1875
    %1878 = vset.pattern.permute.xlu0 12
    %1879 = vperm.xlu0 %1878, %v776
    %v1880 = vpop.permute.xlu0 %1879
    %1882 = vset.pattern.permute.xlu0 12
    %1883 = vperm.xlu0 %1882, %v777
    %v1884 = vpop.permute.xlu0 %1883
    %v1886 = vmul.f32 %v1866, %v1872
    %v1887 = vmul.f32 %v1867, %v1876
    %v1888 = vmul.f32 %v1868, %v1880
    %v1889 = vmul.f32 %v1869, %v1884
    %v1890 = vadd.f32 %v1805, %v1886
    %v1891 = vadd.f32 %v1806, %v1887
    %v1892 = vadd.f32 %v1807, %v1888
    %v1893 = vadd.f32 %v1808, %v1889
    %v1894 = vld [vmem:[%s1 + $0xd] sm:$0x1]
    %v1895 = vlaneseq
    %v1896 = vshrl.u32 %v1895, 7
    %v1897 = vsub.s32 0, %v1896
    %v1898 = vrot.slane %v1894, %v1897
    %1899 = vset.pattern.permute.xlu0 13
    %1900 = vperm.xlu0 %1899, %v766
    %v1901 = vpop.permute.xlu0 %1900
    %1903 = vset.pattern.permute.xlu0 13
    %1904 = vperm.xlu0 %1903, %v767
    %v1905 = vpop.permute.xlu0 %1904
    %1907 = vset.pattern.permute.xlu0 13
    %1908 = vperm.xlu0 %1907, %v768
    %v1909 = vpop.permute.xlu0 %1908
    %1911 = vset.pattern.permute.xlu0 13
    %1912 = vperm.xlu0 %1911, %v769
    %v1913 = vpop.permute.xlu0 %1912
    %v1915 = vmul.f32 %v1898, %v1901
    %v1916 = vmul.f32 %v1898, %v1905
    %v1917 = vmul.f32 %v1898, %v1909
    %v1918 = vmul.f32 %v1898, %v1913
    %1919 = vset.pattern.permute.xlu0 13
    %1920 = vperm.xlu0 %1919, %v770
    %v1921 = vpop.permute.xlu0 %1920
    %1923 = vset.pattern.permute.xlu0 13
    %1924 = vperm.xlu0 %1923, %v771
    %v1925 = vpop.permute.xlu0 %1924
    %1927 = vset.pattern.permute.xlu0 13
    %1928 = vperm.xlu0 %1927, %v772
    %v1929 = vpop.permute.xlu0 %1928
    %1931 = vset.pattern.permute.xlu0 13
    %1932 = vperm.xlu0 %1931, %v773
    %v1933 = vpop.permute.xlu0 %1932
    %v1935 = vadd.f32 %v1915, %v1921
    %v1936 = vadd.f32 %v1916, %v1925
    %v1937 = vadd.f32 %v1917, %v1929
    %v1938 = vadd.f32 %v1918, %v1933
    %v1939 = vmul.f32 %v1935, 0.5
    %v1940 = vmul.f32 %v1936, 0.5
    %v1941 = vmul.f32 %v1937, 0.5
    %v1942 = vmul.f32 %v1938, 0.5
    %v1943 = vtanh.pop %v1939
    %v1944 = vtanh.pop %v1940
    %v1945 = vtanh.pop %v1941
    %v1946 = vtanh.pop %v1942
    %v1947 = vmul.f32 %v1943, 0.5
    %v1948 = vmul.f32 %v1944, 0.5
    %v1949 = vmul.f32 %v1945, 0.5
    %v1950 = vmul.f32 %v1946, 0.5
    %v1951 = vadd.f32 %v1947, 0.5
    %v1952 = vadd.f32 %v1948, 0.5
    %v1953 = vadd.f32 %v1949, 0.5
    %v1954 = vadd.f32 %v1950, 0.5
    %1955 = vset.pattern.permute.xlu0 13
    %1956 = vperm.xlu0 %1955, %v774
    %v1957 = vpop.permute.xlu0 %1956
    %1959 = vset.pattern.permute.xlu0 13
    %1960 = vperm.xlu0 %1959, %v775
    %v1961 = vpop.permute.xlu0 %1960
    %1963 = vset.pattern.permute.xlu0 13
    %1964 = vperm.xlu0 %1963, %v776
    %v1965 = vpop.permute.xlu0 %1964
    %1967 = vset.pattern.permute.xlu0 13
    %1968 = vperm.xlu0 %1967, %v777
    %v1969 = vpop.permute.xlu0 %1968
    %v1971 = vmul.f32 %v1951, %v1957
    %v1972 = vmul.f32 %v1952, %v1961
    %v1973 = vmul.f32 %v1953, %v1965
    %v1974 = vmul.f32 %v1954, %v1969
    %v1975 = vadd.f32 %v1890, %v1971
    %v1976 = vadd.f32 %v1891, %v1972
    %v1977 = vadd.f32 %v1892, %v1973
    %v1978 = vadd.f32 %v1893, %v1974
    %v1979 = vld [vmem:[%s1 + $0xe] sm:$0x1]
    %v1980 = vlaneseq
    %v1981 = vshrl.u32 %v1980, 7
    %v1982 = vsub.s32 0, %v1981
    %v1983 = vrot.slane %v1979, %v1982
    %1984 = vset.pattern.permute.xlu0 14
    %1985 = vperm.xlu0 %1984, %v766
    %v1986 = vpop.permute.xlu0 %1985
    %1988 = vset.pattern.permute.xlu0 14
    %1989 = vperm.xlu0 %1988, %v767
    %v1990 = vpop.permute.xlu0 %1989
    %1992 = vset.pattern.permute.xlu0 14
    %1993 = vperm.xlu0 %1992, %v768
    %v1994 = vpop.permute.xlu0 %1993
    %1996 = vset.pattern.permute.xlu0 14
    %1997 = vperm.xlu0 %1996, %v769
    %v1998 = vpop.permute.xlu0 %1997
    %v2000 = vmul.f32 %v1983, %v1986
    %v2001 = vmul.f32 %v1983, %v1990
    %v2002 = vmul.f32 %v1983, %v1994
    %v2003 = vmul.f32 %v1983, %v1998
    %2004 = vset.pattern.permute.xlu0 14
    %2005 = vperm.xlu0 %2004, %v770
    %v2006 = vpop.permute.xlu0 %2005
    %2008 = vset.pattern.permute.xlu0 14
    %2009 = vperm.xlu0 %2008, %v771
    %v2010 = vpop.permute.xlu0 %2009
    %2012 = vset.pattern.permute.xlu0 14
    %2013 = vperm.xlu0 %2012, %v772
    %v2014 = vpop.permute.xlu0 %2013
    %2016 = vset.pattern.permute.xlu0 14
    %2017 = vperm.xlu0 %2016, %v773
    %v2018 = vpop.permute.xlu0 %2017
    %v2020 = vadd.f32 %v2000, %v2006
    %v2021 = vadd.f32 %v2001, %v2010
    %v2022 = vadd.f32 %v2002, %v2014
    %v2023 = vadd.f32 %v2003, %v2018
    %v2024 = vmul.f32 %v2020, 0.5
    %v2025 = vmul.f32 %v2021, 0.5
    %v2026 = vmul.f32 %v2022, 0.5
    %v2027 = vmul.f32 %v2023, 0.5
    %v2028 = vtanh.pop %v2024
    %v2029 = vtanh.pop %v2025
    %v2030 = vtanh.pop %v2026
    %v2031 = vtanh.pop %v2027
    %v2032 = vmul.f32 %v2028, 0.5
    %v2033 = vmul.f32 %v2029, 0.5
    %v2034 = vmul.f32 %v2030, 0.5
    %v2035 = vmul.f32 %v2031, 0.5
    %v2036 = vadd.f32 %v2032, 0.5
    %v2037 = vadd.f32 %v2033, 0.5
    %v2038 = vadd.f32 %v2034, 0.5
    %v2039 = vadd.f32 %v2035, 0.5
    %2040 = vset.pattern.permute.xlu0 14
    %2041 = vperm.xlu0 %2040, %v774
    %v2042 = vpop.permute.xlu0 %2041
    %2044 = vset.pattern.permute.xlu0 14
    %2045 = vperm.xlu0 %2044, %v775
    %v2046 = vpop.permute.xlu0 %2045
    %2048 = vset.pattern.permute.xlu0 14
    %2049 = vperm.xlu0 %2048, %v776
    %v2050 = vpop.permute.xlu0 %2049
    %2052 = vset.pattern.permute.xlu0 14
    %2053 = vperm.xlu0 %2052, %v777
    %v2054 = vpop.permute.xlu0 %2053
    %v2056 = vmul.f32 %v2036, %v2042
    %v2057 = vmul.f32 %v2037, %v2046
    %v2058 = vmul.f32 %v2038, %v2050
    %v2059 = vmul.f32 %v2039, %v2054
    %v2060 = vadd.f32 %v1975, %v2056
    %v2061 = vadd.f32 %v1976, %v2057
    %v2062 = vadd.f32 %v1977, %v2058
    %v2063 = vadd.f32 %v1978, %v2059
    %v2064 = vld [vmem:[%s1 + $0xf] sm:$0x1]
    %v2065 = vlaneseq
    %v2066 = vshrl.u32 %v2065, 7
    %v2067 = vsub.s32 0, %v2066
    %v2068 = vrot.slane %v2064, %v2067
    %2069 = vset.pattern.permute.xlu0 15
    %2070 = vperm.xlu0 %2069, %v766
    %v2071 = vpop.permute.xlu0 %2070
    %2073 = vset.pattern.permute.xlu0 15
    %2074 = vperm.xlu0 %2073, %v767
    %v2075 = vpop.permute.xlu0 %2074
    %2077 = vset.pattern.permute.xlu0 15
    %2078 = vperm.xlu0 %2077, %v768
    %v2079 = vpop.permute.xlu0 %2078
    %2081 = vset.pattern.permute.xlu0 15
    %2082 = vperm.xlu0 %2081, %v769
    %v2083 = vpop.permute.xlu0 %2082
    %v2085 = vmul.f32 %v2068, %v2071
    %v2086 = vmul.f32 %v2068, %v2075
    %v2087 = vmul.f32 %v2068, %v2079
    %v2088 = vmul.f32 %v2068, %v2083
    %2089 = vset.pattern.permute.xlu0 15
    %2090 = vperm.xlu0 %2089, %v770
    %v2091 = vpop.permute.xlu0 %2090
    %2093 = vset.pattern.permute.xlu0 15
    %2094 = vperm.xlu0 %2093, %v771
    %v2095 = vpop.permute.xlu0 %2094
    %2097 = vset.pattern.permute.xlu0 15
    %2098 = vperm.xlu0 %2097, %v772
    %v2099 = vpop.permute.xlu0 %2098
    %2101 = vset.pattern.permute.xlu0 15
    %2102 = vperm.xlu0 %2101, %v773
    %v2103 = vpop.permute.xlu0 %2102
    %v2105 = vadd.f32 %v2085, %v2091
    %v2106 = vadd.f32 %v2086, %v2095
    %v2107 = vadd.f32 %v2087, %v2099
    %v2108 = vadd.f32 %v2088, %v2103
    %v2109 = vmul.f32 %v2105, 0.5
    %v2110 = vmul.f32 %v2106, 0.5
    %v2111 = vmul.f32 %v2107, 0.5
    %v2112 = vmul.f32 %v2108, 0.5
    %v2113 = vtanh.pop %v2109
    %v2114 = vtanh.pop %v2110
    %v2115 = vtanh.pop %v2111
    %v2116 = vtanh.pop %v2112
    %v2117 = vmul.f32 %v2113, 0.5
    %v2118 = vmul.f32 %v2114, 0.5
    %v2119 = vmul.f32 %v2115, 0.5
    %v2120 = vmul.f32 %v2116, 0.5
    %v2121 = vadd.f32 %v2117, 0.5
    %v2122 = vadd.f32 %v2118, 0.5
    %v2123 = vadd.f32 %v2119, 0.5
    %v2124 = vadd.f32 %v2120, 0.5
    %2125 = vset.pattern.permute.xlu0 15
    %2126 = vperm.xlu0 %2125, %v774
    %v2127 = vpop.permute.xlu0 %2126
    %2129 = vset.pattern.permute.xlu0 15
    %2130 = vperm.xlu0 %2129, %v775
    %v2131 = vpop.permute.xlu0 %2130
    %2133 = vset.pattern.permute.xlu0 15
    %2134 = vperm.xlu0 %2133, %v776
    %v2135 = vpop.permute.xlu0 %2134
    %2137 = vset.pattern.permute.xlu0 15
    %2138 = vperm.xlu0 %2137, %v777
    %v2139 = vpop.permute.xlu0 %2138
    %v2141 = vmul.f32 %v2121, %v2127
    %v2142 = vmul.f32 %v2122, %v2131
    %v2143 = vmul.f32 %v2123, %v2135
    %v2144 = vmul.f32 %v2124, %v2139
    %v2145 = vadd.f32 %v2060, %v2141
    %v2146 = vadd.f32 %v2061, %v2142
    %v2147 = vadd.f32 %v2062, %v2143
    %v2148 = vadd.f32 %v2063, %v2144
    %v2149 = vld [vmem:[%s1 + $0x10] sm:$0x1]
    %v2150 = vlaneseq
    %v2151 = vshrl.u32 %v2150, 7
    %v2152 = vsub.s32 0, %v2151
    %v2153 = vrot.slane %v2149, %v2152
    %2154 = vset.pattern.permute.xlu0 16
    %2155 = vperm.xlu0 %2154, %v766
    %v2156 = vpop.permute.xlu0 %2155
    %2158 = vset.pattern.permute.xlu0 16
    %2159 = vperm.xlu0 %2158, %v767
    %v2160 = vpop.permute.xlu0 %2159
    %2162 = vset.pattern.permute.xlu0 16
    %2163 = vperm.xlu0 %2162, %v768
    %v2164 = vpop.permute.xlu0 %2163
    %2166 = vset.pattern.permute.xlu0 16
    %2167 = vperm.xlu0 %2166, %v769
    %v2168 = vpop.permute.xlu0 %2167
    %v2170 = vmul.f32 %v2153, %v2156
    %v2171 = vmul.f32 %v2153, %v2160
    %v2172 = vmul.f32 %v2153, %v2164
    %v2173 = vmul.f32 %v2153, %v2168
    %2174 = vset.pattern.permute.xlu0 16
    %2175 = vperm.xlu0 %2174, %v770
    %v2176 = vpop.permute.xlu0 %2175
    %2178 = vset.pattern.permute.xlu0 16
    %2179 = vperm.xlu0 %2178, %v771
    %v2180 = vpop.permute.xlu0 %2179
    %2182 = vset.pattern.permute.xlu0 16
    %2183 = vperm.xlu0 %2182, %v772
    %v2184 = vpop.permute.xlu0 %2183
    %2186 = vset.pattern.permute.xlu0 16
    %2187 = vperm.xlu0 %2186, %v773
    %v2188 = vpop.permute.xlu0 %2187
    %v2190 = vadd.f32 %v2170, %v2176
    %v2191 = vadd.f32 %v2171, %v2180
    %v2192 = vadd.f32 %v2172, %v2184
    %v2193 = vadd.f32 %v2173, %v2188
    %v2194 = vmul.f32 %v2190, 0.5
    %v2195 = vmul.f32 %v2191, 0.5
    %v2196 = vmul.f32 %v2192, 0.5
    %v2197 = vmul.f32 %v2193, 0.5
    %v2198 = vtanh.pop %v2194
    %v2199 = vtanh.pop %v2195
    %v2200 = vtanh.pop %v2196
    %v2201 = vtanh.pop %v2197
    %v2202 = vmul.f32 %v2198, 0.5
    %v2203 = vmul.f32 %v2199, 0.5
    %v2204 = vmul.f32 %v2200, 0.5
    %v2205 = vmul.f32 %v2201, 0.5
    %v2206 = vadd.f32 %v2202, 0.5
    %v2207 = vadd.f32 %v2203, 0.5
    %v2208 = vadd.f32 %v2204, 0.5
    %v2209 = vadd.f32 %v2205, 0.5
    %2210 = vset.pattern.permute.xlu0 16
    %2211 = vperm.xlu0 %2210, %v774
    %v2212 = vpop.permute.xlu0 %2211
    %2214 = vset.pattern.permute.xlu0 16
    %2215 = vperm.xlu0 %2214, %v775
    %v2216 = vpop.permute.xlu0 %2215
    %2218 = vset.pattern.permute.xlu0 16
    %2219 = vperm.xlu0 %2218, %v776
    %v2220 = vpop.permute.xlu0 %2219
    %2222 = vset.pattern.permute.xlu0 16
    %2223 = vperm.xlu0 %2222, %v777
    %v2224 = vpop.permute.xlu0 %2223
    %v2226 = vmul.f32 %v2206, %v2212
    %v2227 = vmul.f32 %v2207, %v2216
    %v2228 = vmul.f32 %v2208, %v2220
    %v2229 = vmul.f32 %v2209, %v2224
    %v2230 = vadd.f32 %v2145, %v2226
    %v2231 = vadd.f32 %v2146, %v2227
    %v2232 = vadd.f32 %v2147, %v2228
    %v2233 = vadd.f32 %v2148, %v2229
    %v2234 = vld [vmem:[%s1 + $0x11] sm:$0x1]
    %v2235 = vlaneseq
    %v2236 = vshrl.u32 %v2235, 7
    %v2237 = vsub.s32 0, %v2236
    %v2238 = vrot.slane %v2234, %v2237
    %2239 = vset.pattern.permute.xlu0 17
    %2240 = vperm.xlu0 %2239, %v766
    %v2241 = vpop.permute.xlu0 %2240
    %2243 = vset.pattern.permute.xlu0 17
    %2244 = vperm.xlu0 %2243, %v767
    %v2245 = vpop.permute.xlu0 %2244
    %2247 = vset.pattern.permute.xlu0 17
    %2248 = vperm.xlu0 %2247, %v768
    %v2249 = vpop.permute.xlu0 %2248
    %2251 = vset.pattern.permute.xlu0 17
    %2252 = vperm.xlu0 %2251, %v769
    %v2253 = vpop.permute.xlu0 %2252
    %v2255 = vmul.f32 %v2238, %v2241
    %v2256 = vmul.f32 %v2238, %v2245
    %v2257 = vmul.f32 %v2238, %v2249
    %v2258 = vmul.f32 %v2238, %v2253
    %2259 = vset.pattern.permute.xlu0 17
    %2260 = vperm.xlu0 %2259, %v770
    %v2261 = vpop.permute.xlu0 %2260
    %2263 = vset.pattern.permute.xlu0 17
    %2264 = vperm.xlu0 %2263, %v771
    %v2265 = vpop.permute.xlu0 %2264
    %2267 = vset.pattern.permute.xlu0 17
    %2268 = vperm.xlu0 %2267, %v772
    %v2269 = vpop.permute.xlu0 %2268
    %2271 = vset.pattern.permute.xlu0 17
    %2272 = vperm.xlu0 %2271, %v773
    %v2273 = vpop.permute.xlu0 %2272
    %v2275 = vadd.f32 %v2255, %v2261
    %v2276 = vadd.f32 %v2256, %v2265
    %v2277 = vadd.f32 %v2257, %v2269
    %v2278 = vadd.f32 %v2258, %v2273
    %v2279 = vmul.f32 %v2275, 0.5
    %v2280 = vmul.f32 %v2276, 0.5
    %v2281 = vmul.f32 %v2277, 0.5
    %v2282 = vmul.f32 %v2278, 0.5
    %v2283 = vtanh.pop %v2279
    %v2284 = vtanh.pop %v2280
    %v2285 = vtanh.pop %v2281
    %v2286 = vtanh.pop %v2282
    %v2287 = vmul.f32 %v2283, 0.5
    %v2288 = vmul.f32 %v2284, 0.5
    %v2289 = vmul.f32 %v2285, 0.5
    %v2290 = vmul.f32 %v2286, 0.5
    %v2291 = vadd.f32 %v2287, 0.5
    %v2292 = vadd.f32 %v2288, 0.5
    %v2293 = vadd.f32 %v2289, 0.5
    %v2294 = vadd.f32 %v2290, 0.5
    %2295 = vset.pattern.permute.xlu0 17
    %2296 = vperm.xlu0 %2295, %v774
    %v2297 = vpop.permute.xlu0 %2296
    %2299 = vset.pattern.permute.xlu0 17
    %2300 = vperm.xlu0 %2299, %v775
    %v2301 = vpop.permute.xlu0 %2300
    %2303 = vset.pattern.permute.xlu0 17
    %2304 = vperm.xlu0 %2303, %v776
    %v2305 = vpop.permute.xlu0 %2304
    %2307 = vset.pattern.permute.xlu0 17
    %2308 = vperm.xlu0 %2307, %v777
    %v2309 = vpop.permute.xlu0 %2308
    %v2311 = vmul.f32 %v2291, %v2297
    %v2312 = vmul.f32 %v2292, %v2301
    %v2313 = vmul.f32 %v2293, %v2305
    %v2314 = vmul.f32 %v2294, %v2309
    %v2315 = vadd.f32 %v2230, %v2311
    %v2316 = vadd.f32 %v2231, %v2312
    %v2317 = vadd.f32 %v2232, %v2313
    %v2318 = vadd.f32 %v2233, %v2314
    %v2319 = vld [vmem:[%s1 + $0x12] sm:$0x1]
    %v2320 = vlaneseq
    %v2321 = vshrl.u32 %v2320, 7
    %v2322 = vsub.s32 0, %v2321
    %v2323 = vrot.slane %v2319, %v2322
    %2324 = vset.pattern.permute.xlu0 18
    %2325 = vperm.xlu0 %2324, %v766
    %v2326 = vpop.permute.xlu0 %2325
    %2328 = vset.pattern.permute.xlu0 18
    %2329 = vperm.xlu0 %2328, %v767
    %v2330 = vpop.permute.xlu0 %2329
    %2332 = vset.pattern.permute.xlu0 18
    %2333 = vperm.xlu0 %2332, %v768
    %v2334 = vpop.permute.xlu0 %2333
    %2336 = vset.pattern.permute.xlu0 18
    %2337 = vperm.xlu0 %2336, %v769
    %v2338 = vpop.permute.xlu0 %2337
    %v2340 = vmul.f32 %v2323, %v2326
    %v2341 = vmul.f32 %v2323, %v2330
    %v2342 = vmul.f32 %v2323, %v2334
    %v2343 = vmul.f32 %v2323, %v2338
    %2344 = vset.pattern.permute.xlu0 18
    %2345 = vperm.xlu0 %2344, %v770
    %v2346 = vpop.permute.xlu0 %2345
    %2348 = vset.pattern.permute.xlu0 18
    %2349 = vperm.xlu0 %2348, %v771
    %v2350 = vpop.permute.xlu0 %2349
    %2352 = vset.pattern.permute.xlu0 18
    %2353 = vperm.xlu0 %2352, %v772
    %v2354 = vpop.permute.xlu0 %2353
    %2356 = vset.pattern.permute.xlu0 18
    %2357 = vperm.xlu0 %2356, %v773
    %v2358 = vpop.permute.xlu0 %2357
    %v2360 = vadd.f32 %v2340, %v2346
    %v2361 = vadd.f32 %v2341, %v2350
    %v2362 = vadd.f32 %v2342, %v2354
    %v2363 = vadd.f32 %v2343, %v2358
    %v2364 = vmul.f32 %v2360, 0.5
    %v2365 = vmul.f32 %v2361, 0.5
    %v2366 = vmul.f32 %v2362, 0.5
    %v2367 = vmul.f32 %v2363, 0.5
    %v2368 = vtanh.pop %v2364
    %v2369 = vtanh.pop %v2365
    %v2370 = vtanh.pop %v2366
    %v2371 = vtanh.pop %v2367
    %v2372 = vmul.f32 %v2368, 0.5
    %v2373 = vmul.f32 %v2369, 0.5
    %v2374 = vmul.f32 %v2370, 0.5
    %v2375 = vmul.f32 %v2371, 0.5
    %v2376 = vadd.f32 %v2372, 0.5
    %v2377 = vadd.f32 %v2373, 0.5
    %v2378 = vadd.f32 %v2374, 0.5
    %v2379 = vadd.f32 %v2375, 0.5
    %2380 = vset.pattern.permute.xlu0 18
    %2381 = vperm.xlu0 %2380, %v774
    %v2382 = vpop.permute.xlu0 %2381
    %2384 = vset.pattern.permute.xlu0 18
    %2385 = vperm.xlu0 %2384, %v775
    %v2386 = vpop.permute.xlu0 %2385
    %2388 = vset.pattern.permute.xlu0 18
    %2389 = vperm.xlu0 %2388, %v776
    %v2390 = vpop.permute.xlu0 %2389
    %2392 = vset.pattern.permute.xlu0 18
    %2393 = vperm.xlu0 %2392, %v777
    %v2394 = vpop.permute.xlu0 %2393
    %v2396 = vmul.f32 %v2376, %v2382
    %v2397 = vmul.f32 %v2377, %v2386
    %v2398 = vmul.f32 %v2378, %v2390
    %v2399 = vmul.f32 %v2379, %v2394
    %v2400 = vadd.f32 %v2315, %v2396
    %v2401 = vadd.f32 %v2316, %v2397
    %v2402 = vadd.f32 %v2317, %v2398
    %v2403 = vadd.f32 %v2318, %v2399
    %v2404 = vld [vmem:[%s1 + $0x13] sm:$0x1]
    %v2405 = vlaneseq
    %v2406 = vshrl.u32 %v2405, 7
    %v2407 = vsub.s32 0, %v2406
    %v2408 = vrot.slane %v2404, %v2407
    %2409 = vset.pattern.permute.xlu0 19
    %2410 = vperm.xlu0 %2409, %v766
    %v2411 = vpop.permute.xlu0 %2410
    %2413 = vset.pattern.permute.xlu0 19
    %2414 = vperm.xlu0 %2413, %v767
    %v2415 = vpop.permute.xlu0 %2414
    %2417 = vset.pattern.permute.xlu0 19
    %2418 = vperm.xlu0 %2417, %v768
    %v2419 = vpop.permute.xlu0 %2418
    %2421 = vset.pattern.permute.xlu0 19
    %2422 = vperm.xlu0 %2421, %v769
    %v2423 = vpop.permute.xlu0 %2422
    %v2425 = vmul.f32 %v2408, %v2411
    %v2426 = vmul.f32 %v2408, %v2415
    %v2427 = vmul.f32 %v2408, %v2419
    %v2428 = vmul.f32 %v2408, %v2423
    %2429 = vset.pattern.permute.xlu0 19
    %2430 = vperm.xlu0 %2429, %v770
    %v2431 = vpop.permute.xlu0 %2430
    %2433 = vset.pattern.permute.xlu0 19
    %2434 = vperm.xlu0 %2433, %v771
    %v2435 = vpop.permute.xlu0 %2434
    %2437 = vset.pattern.permute.xlu0 19
    %2438 = vperm.xlu0 %2437, %v772
    %v2439 = vpop.permute.xlu0 %2438
    %2441 = vset.pattern.permute.xlu0 19
    %2442 = vperm.xlu0 %2441, %v773
    %v2443 = vpop.permute.xlu0 %2442
    %v2445 = vadd.f32 %v2425, %v2431
    %v2446 = vadd.f32 %v2426, %v2435
    %v2447 = vadd.f32 %v2427, %v2439
    %v2448 = vadd.f32 %v2428, %v2443
    %v2449 = vmul.f32 %v2445, 0.5
    %v2450 = vmul.f32 %v2446, 0.5
    %v2451 = vmul.f32 %v2447, 0.5
    %v2452 = vmul.f32 %v2448, 0.5
    %v2453 = vtanh.pop %v2449
    %v2454 = vtanh.pop %v2450
    %v2455 = vtanh.pop %v2451
    %v2456 = vtanh.pop %v2452
    %v2457 = vmul.f32 %v2453, 0.5
    %v2458 = vmul.f32 %v2454, 0.5
    %v2459 = vmul.f32 %v2455, 0.5
    %v2460 = vmul.f32 %v2456, 0.5
    %v2461 = vadd.f32 %v2457, 0.5
    %v2462 = vadd.f32 %v2458, 0.5
    %v2463 = vadd.f32 %v2459, 0.5
    %v2464 = vadd.f32 %v2460, 0.5
    %2465 = vset.pattern.permute.xlu0 19
    %2466 = vperm.xlu0 %2465, %v774
    %v2467 = vpop.permute.xlu0 %2466
    %2469 = vset.pattern.permute.xlu0 19
    %2470 = vperm.xlu0 %2469, %v775
    %v2471 = vpop.permute.xlu0 %2470
    %2473 = vset.pattern.permute.xlu0 19
    %2474 = vperm.xlu0 %2473, %v776
    %v2475 = vpop.permute.xlu0 %2474
    %2477 = vset.pattern.permute.xlu0 19
    %2478 = vperm.xlu0 %2477, %v777
    %v2479 = vpop.permute.xlu0 %2478
    %v2481 = vmul.f32 %v2461, %v2467
    %v2482 = vmul.f32 %v2462, %v2471
    %v2483 = vmul.f32 %v2463, %v2475
    %v2484 = vmul.f32 %v2464, %v2479
    %v2485 = vadd.f32 %v2400, %v2481
    %v2486 = vadd.f32 %v2401, %v2482
    %v2487 = vadd.f32 %v2402, %v2483
    %v2488 = vadd.f32 %v2403, %v2484
    %v2489 = vld [vmem:[%s1 + $0x14] sm:$0x1]
    %v2490 = vlaneseq
    %v2491 = vshrl.u32 %v2490, 7
    %v2492 = vsub.s32 0, %v2491
    %v2493 = vrot.slane %v2489, %v2492
    %2494 = vset.pattern.permute.xlu0 20
    %2495 = vperm.xlu0 %2494, %v766
    %v2496 = vpop.permute.xlu0 %2495
    %2498 = vset.pattern.permute.xlu0 20
    %2499 = vperm.xlu0 %2498, %v767
    %v2500 = vpop.permute.xlu0 %2499
    %2502 = vset.pattern.permute.xlu0 20
    %2503 = vperm.xlu0 %2502, %v768
    %v2504 = vpop.permute.xlu0 %2503
    %2506 = vset.pattern.permute.xlu0 20
    %2507 = vperm.xlu0 %2506, %v769
    %v2508 = vpop.permute.xlu0 %2507
    %v2510 = vmul.f32 %v2493, %v2496
    %v2511 = vmul.f32 %v2493, %v2500
    %v2512 = vmul.f32 %v2493, %v2504
    %v2513 = vmul.f32 %v2493, %v2508
    %2514 = vset.pattern.permute.xlu0 20
    %2515 = vperm.xlu0 %2514, %v770
    %v2516 = vpop.permute.xlu0 %2515
    %2518 = vset.pattern.permute.xlu0 20
    %2519 = vperm.xlu0 %2518, %v771
    %v2520 = vpop.permute.xlu0 %2519
    %2522 = vset.pattern.permute.xlu0 20
    %2523 = vperm.xlu0 %2522, %v772
    %v2524 = vpop.permute.xlu0 %2523
    %2526 = vset.pattern.permute.xlu0 20
    %2527 = vperm.xlu0 %2526, %v773
    %v2528 = vpop.permute.xlu0 %2527
    %v2530 = vadd.f32 %v2510, %v2516
    %v2531 = vadd.f32 %v2511, %v2520
    %v2532 = vadd.f32 %v2512, %v2524
    %v2533 = vadd.f32 %v2513, %v2528
    %v2534 = vmul.f32 %v2530, 0.5
    %v2535 = vmul.f32 %v2531, 0.5
    %v2536 = vmul.f32 %v2532, 0.5
    %v2537 = vmul.f32 %v2533, 0.5
    %v2538 = vtanh.pop %v2534
    %v2539 = vtanh.pop %v2535
    %v2540 = vtanh.pop %v2536
    %v2541 = vtanh.pop %v2537
    %v2542 = vmul.f32 %v2538, 0.5
    %v2543 = vmul.f32 %v2539, 0.5
    %v2544 = vmul.f32 %v2540, 0.5
    %v2545 = vmul.f32 %v2541, 0.5
    %v2546 = vadd.f32 %v2542, 0.5
    %v2547 = vadd.f32 %v2543, 0.5
    %v2548 = vadd.f32 %v2544, 0.5
    %v2549 = vadd.f32 %v2545, 0.5
    %2550 = vset.pattern.permute.xlu0 20
    %2551 = vperm.xlu0 %2550, %v774
    %v2552 = vpop.permute.xlu0 %2551
    %2554 = vset.pattern.permute.xlu0 20
    %2555 = vperm.xlu0 %2554, %v775
    %v2556 = vpop.permute.xlu0 %2555
    %2558 = vset.pattern.permute.xlu0 20
    %2559 = vperm.xlu0 %2558, %v776
    %v2560 = vpop.permute.xlu0 %2559
    %2562 = vset.pattern.permute.xlu0 20
    %2563 = vperm.xlu0 %2562, %v777
    %v2564 = vpop.permute.xlu0 %2563
    %v2566 = vmul.f32 %v2546, %v2552
    %v2567 = vmul.f32 %v2547, %v2556
    %v2568 = vmul.f32 %v2548, %v2560
    %v2569 = vmul.f32 %v2549, %v2564
    %v2570 = vadd.f32 %v2485, %v2566
    %v2571 = vadd.f32 %v2486, %v2567
    %v2572 = vadd.f32 %v2487, %v2568
    %v2573 = vadd.f32 %v2488, %v2569
    %v2574 = vld [vmem:[%s1 + $0x15] sm:$0x1]
    %v2575 = vlaneseq
    %v2576 = vshrl.u32 %v2575, 7
    %v2577 = vsub.s32 0, %v2576
    %v2578 = vrot.slane %v2574, %v2577
    %2579 = vset.pattern.permute.xlu0 21
    %2580 = vperm.xlu0 %2579, %v766
    %v2581 = vpop.permute.xlu0 %2580
    %2583 = vset.pattern.permute.xlu0 21
    %2584 = vperm.xlu0 %2583, %v767
    %v2585 = vpop.permute.xlu0 %2584
    %2587 = vset.pattern.permute.xlu0 21
    %2588 = vperm.xlu0 %2587, %v768
    %v2589 = vpop.permute.xlu0 %2588
    %2591 = vset.pattern.permute.xlu0 21
    %2592 = vperm.xlu0 %2591, %v769
    %v2593 = vpop.permute.xlu0 %2592
    %v2595 = vmul.f32 %v2578, %v2581
    %v2596 = vmul.f32 %v2578, %v2585
    %v2597 = vmul.f32 %v2578, %v2589
    %v2598 = vmul.f32 %v2578, %v2593
    %2599 = vset.pattern.permute.xlu0 21
    %2600 = vperm.xlu0 %2599, %v770
    %v2601 = vpop.permute.xlu0 %2600
    %2603 = vset.pattern.permute.xlu0 21
    %2604 = vperm.xlu0 %2603, %v771
    %v2605 = vpop.permute.xlu0 %2604
    %2607 = vset.pattern.permute.xlu0 21
    %2608 = vperm.xlu0 %2607, %v772
    %v2609 = vpop.permute.xlu0 %2608
    %2611 = vset.pattern.permute.xlu0 21
    %2612 = vperm.xlu0 %2611, %v773
    %v2613 = vpop.permute.xlu0 %2612
    %v2615 = vadd.f32 %v2595, %v2601
    %v2616 = vadd.f32 %v2596, %v2605
    %v2617 = vadd.f32 %v2597, %v2609
    %v2618 = vadd.f32 %v2598, %v2613
    %v2619 = vmul.f32 %v2615, 0.5
    %v2620 = vmul.f32 %v2616, 0.5
    %v2621 = vmul.f32 %v2617, 0.5
    %v2622 = vmul.f32 %v2618, 0.5
    %v2623 = vtanh.pop %v2619
    %v2624 = vtanh.pop %v2620
    %v2625 = vtanh.pop %v2621
    %v2626 = vtanh.pop %v2622
    %v2627 = vmul.f32 %v2623, 0.5
    %v2628 = vmul.f32 %v2624, 0.5
    %v2629 = vmul.f32 %v2625, 0.5
    %v2630 = vmul.f32 %v2626, 0.5
    %v2631 = vadd.f32 %v2627, 0.5
    %v2632 = vadd.f32 %v2628, 0.5
    %v2633 = vadd.f32 %v2629, 0.5
    %v2634 = vadd.f32 %v2630, 0.5
    %2635 = vset.pattern.permute.xlu0 21
    %2636 = vperm.xlu0 %2635, %v774
    %v2637 = vpop.permute.xlu0 %2636
    %2639 = vset.pattern.permute.xlu0 21
    %2640 = vperm.xlu0 %2639, %v775
    %v2641 = vpop.permute.xlu0 %2640
    %2643 = vset.pattern.permute.xlu0 21
    %2644 = vperm.xlu0 %2643, %v776
    %v2645 = vpop.permute.xlu0 %2644
    %2647 = vset.pattern.permute.xlu0 21
    %2648 = vperm.xlu0 %2647, %v777
    %v2649 = vpop.permute.xlu0 %2648
    %v2651 = vmul.f32 %v2631, %v2637
    %v2652 = vmul.f32 %v2632, %v2641
    %v2653 = vmul.f32 %v2633, %v2645
    %v2654 = vmul.f32 %v2634, %v2649
    %v2655 = vadd.f32 %v2570, %v2651
    %v2656 = vadd.f32 %v2571, %v2652
    %v2657 = vadd.f32 %v2572, %v2653
    %v2658 = vadd.f32 %v2573, %v2654
    %v2659 = vld [vmem:[%s1 + $0x16] sm:$0x1]
    %v2660 = vlaneseq
    %v2661 = vshrl.u32 %v2660, 7
    %v2662 = vsub.s32 0, %v2661
    %v2663 = vrot.slane %v2659, %v2662
    %2664 = vset.pattern.permute.xlu0 22
    %2665 = vperm.xlu0 %2664, %v766
    %v2666 = vpop.permute.xlu0 %2665
    %2668 = vset.pattern.permute.xlu0 22
    %2669 = vperm.xlu0 %2668, %v767
    %v2670 = vpop.permute.xlu0 %2669
    %2672 = vset.pattern.permute.xlu0 22
    %2673 = vperm.xlu0 %2672, %v768
    %v2674 = vpop.permute.xlu0 %2673
    %2676 = vset.pattern.permute.xlu0 22
    %2677 = vperm.xlu0 %2676, %v769
    %v2678 = vpop.permute.xlu0 %2677
    %v2680 = vmul.f32 %v2663, %v2666
    %v2681 = vmul.f32 %v2663, %v2670
    %v2682 = vmul.f32 %v2663, %v2674
    %v2683 = vmul.f32 %v2663, %v2678
    %2684 = vset.pattern.permute.xlu0 22
    %2685 = vperm.xlu0 %2684, %v770
    %v2686 = vpop.permute.xlu0 %2685
    %2688 = vset.pattern.permute.xlu0 22
    %2689 = vperm.xlu0 %2688, %v771
    %v2690 = vpop.permute.xlu0 %2689
    %2692 = vset.pattern.permute.xlu0 22
    %2693 = vperm.xlu0 %2692, %v772
    %v2694 = vpop.permute.xlu0 %2693
    %2696 = vset.pattern.permute.xlu0 22
    %2697 = vperm.xlu0 %2696, %v773
    %v2698 = vpop.permute.xlu0 %2697
    %v2700 = vadd.f32 %v2680, %v2686
    %v2701 = vadd.f32 %v2681, %v2690
    %v2702 = vadd.f32 %v2682, %v2694
    %v2703 = vadd.f32 %v2683, %v2698
    %v2704 = vmul.f32 %v2700, 0.5
    %v2705 = vmul.f32 %v2701, 0.5
    %v2706 = vmul.f32 %v2702, 0.5
    %v2707 = vmul.f32 %v2703, 0.5
    %v2708 = vtanh.pop %v2704
    %v2709 = vtanh.pop %v2705
    %v2710 = vtanh.pop %v2706
    %v2711 = vtanh.pop %v2707
    %v2712 = vmul.f32 %v2708, 0.5
    %v2713 = vmul.f32 %v2709, 0.5
    %v2714 = vmul.f32 %v2710, 0.5
    %v2715 = vmul.f32 %v2711, 0.5
    %v2716 = vadd.f32 %v2712, 0.5
    %v2717 = vadd.f32 %v2713, 0.5
    %v2718 = vadd.f32 %v2714, 0.5
    %v2719 = vadd.f32 %v2715, 0.5
    %2720 = vset.pattern.permute.xlu0 22
    %2721 = vperm.xlu0 %2720, %v774
    %v2722 = vpop.permute.xlu0 %2721
    %2724 = vset.pattern.permute.xlu0 22
    %2725 = vperm.xlu0 %2724, %v775
    %v2726 = vpop.permute.xlu0 %2725
    %2728 = vset.pattern.permute.xlu0 22
    %2729 = vperm.xlu0 %2728, %v776
    %v2730 = vpop.permute.xlu0 %2729
    %2732 = vset.pattern.permute.xlu0 22
    %2733 = vperm.xlu0 %2732, %v777
    %v2734 = vpop.permute.xlu0 %2733
    %v2736 = vmul.f32 %v2716, %v2722
    %v2737 = vmul.f32 %v2717, %v2726
    %v2738 = vmul.f32 %v2718, %v2730
    %v2739 = vmul.f32 %v2719, %v2734
    %v2740 = vadd.f32 %v2655, %v2736
    %v2741 = vadd.f32 %v2656, %v2737
    %v2742 = vadd.f32 %v2657, %v2738
    %v2743 = vadd.f32 %v2658, %v2739
    %v2744 = vld [vmem:[%s1 + $0x17] sm:$0x1]
    %v2745 = vlaneseq
    %v2746 = vshrl.u32 %v2745, 7
    %v2747 = vsub.s32 0, %v2746
    %v2748 = vrot.slane %v2744, %v2747
    %2749 = vset.pattern.permute.xlu0 23
    %2750 = vperm.xlu0 %2749, %v766
    %v2751 = vpop.permute.xlu0 %2750
    %2753 = vset.pattern.permute.xlu0 23
    %2754 = vperm.xlu0 %2753, %v767
    %v2755 = vpop.permute.xlu0 %2754
    %2757 = vset.pattern.permute.xlu0 23
    %2758 = vperm.xlu0 %2757, %v768
    %v2759 = vpop.permute.xlu0 %2758
    %2761 = vset.pattern.permute.xlu0 23
    %2762 = vperm.xlu0 %2761, %v769
    %v2763 = vpop.permute.xlu0 %2762
    %v2765 = vmul.f32 %v2748, %v2751
    %v2766 = vmul.f32 %v2748, %v2755
    %v2767 = vmul.f32 %v2748, %v2759
    %v2768 = vmul.f32 %v2748, %v2763
    %2769 = vset.pattern.permute.xlu0 23
    %2770 = vperm.xlu0 %2769, %v770
    %v2771 = vpop.permute.xlu0 %2770
    %2773 = vset.pattern.permute.xlu0 23
    %2774 = vperm.xlu0 %2773, %v771
    %v2775 = vpop.permute.xlu0 %2774
    %2777 = vset.pattern.permute.xlu0 23
    %2778 = vperm.xlu0 %2777, %v772
    %v2779 = vpop.permute.xlu0 %2778
    %2781 = vset.pattern.permute.xlu0 23
    %2782 = vperm.xlu0 %2781, %v773
    %v2783 = vpop.permute.xlu0 %2782
    %v2785 = vadd.f32 %v2765, %v2771
    %v2786 = vadd.f32 %v2766, %v2775
    %v2787 = vadd.f32 %v2767, %v2779
    %v2788 = vadd.f32 %v2768, %v2783
    %v2789 = vmul.f32 %v2785, 0.5
    %v2790 = vmul.f32 %v2786, 0.5
    %v2791 = vmul.f32 %v2787, 0.5
    %v2792 = vmul.f32 %v2788, 0.5
    %v2793 = vtanh.pop %v2789
    %v2794 = vtanh.pop %v2790
    %v2795 = vtanh.pop %v2791
    %v2796 = vtanh.pop %v2792
    %v2797 = vmul.f32 %v2793, 0.5
    %v2798 = vmul.f32 %v2794, 0.5
    %v2799 = vmul.f32 %v2795, 0.5
    %v2800 = vmul.f32 %v2796, 0.5
    %v2801 = vadd.f32 %v2797, 0.5
    %v2802 = vadd.f32 %v2798, 0.5
    %v2803 = vadd.f32 %v2799, 0.5
    %v2804 = vadd.f32 %v2800, 0.5
    %2805 = vset.pattern.permute.xlu0 23
    %2806 = vperm.xlu0 %2805, %v774
    %v2807 = vpop.permute.xlu0 %2806
    %2809 = vset.pattern.permute.xlu0 23
    %2810 = vperm.xlu0 %2809, %v775
    %v2811 = vpop.permute.xlu0 %2810
    %2813 = vset.pattern.permute.xlu0 23
    %2814 = vperm.xlu0 %2813, %v776
    %v2815 = vpop.permute.xlu0 %2814
    %2817 = vset.pattern.permute.xlu0 23
    %2818 = vperm.xlu0 %2817, %v777
    %v2819 = vpop.permute.xlu0 %2818
    %v2821 = vmul.f32 %v2801, %v2807
    %v2822 = vmul.f32 %v2802, %v2811
    %v2823 = vmul.f32 %v2803, %v2815
    %v2824 = vmul.f32 %v2804, %v2819
    %v2825 = vadd.f32 %v2740, %v2821
    %v2826 = vadd.f32 %v2741, %v2822
    %v2827 = vadd.f32 %v2742, %v2823
    %v2828 = vadd.f32 %v2743, %v2824
    %v2829 = vld [vmem:[%s1 + $0x18] sm:$0x1]
    %v2830 = vlaneseq
    %v2831 = vshrl.u32 %v2830, 7
    %v2832 = vsub.s32 0, %v2831
    %v2833 = vrot.slane %v2829, %v2832
    %2834 = vset.pattern.permute.xlu0 24
    %2835 = vperm.xlu0 %2834, %v766
    %v2836 = vpop.permute.xlu0 %2835
    %2838 = vset.pattern.permute.xlu0 24
    %2839 = vperm.xlu0 %2838, %v767
    %v2840 = vpop.permute.xlu0 %2839
    %2842 = vset.pattern.permute.xlu0 24
    %2843 = vperm.xlu0 %2842, %v768
    %v2844 = vpop.permute.xlu0 %2843
    %2846 = vset.pattern.permute.xlu0 24
    %2847 = vperm.xlu0 %2846, %v769
    %v2848 = vpop.permute.xlu0 %2847
    %v2850 = vmul.f32 %v2833, %v2836
    %v2851 = vmul.f32 %v2833, %v2840
    %v2852 = vmul.f32 %v2833, %v2844
    %v2853 = vmul.f32 %v2833, %v2848
    %2854 = vset.pattern.permute.xlu0 24
    %2855 = vperm.xlu0 %2854, %v770
    %v2856 = vpop.permute.xlu0 %2855
    %2858 = vset.pattern.permute.xlu0 24
    %2859 = vperm.xlu0 %2858, %v771
    %v2860 = vpop.permute.xlu0 %2859
    %2862 = vset.pattern.permute.xlu0 24
    %2863 = vperm.xlu0 %2862, %v772
    %v2864 = vpop.permute.xlu0 %2863
    %2866 = vset.pattern.permute.xlu0 24
    %2867 = vperm.xlu0 %2866, %v773
    %v2868 = vpop.permute.xlu0 %2867
    %v2870 = vadd.f32 %v2850, %v2856
    %v2871 = vadd.f32 %v2851, %v2860
    %v2872 = vadd.f32 %v2852, %v2864
    %v2873 = vadd.f32 %v2853, %v2868
    %v2874 = vmul.f32 %v2870, 0.5
    %v2875 = vmul.f32 %v2871, 0.5
    %v2876 = vmul.f32 %v2872, 0.5
    %v2877 = vmul.f32 %v2873, 0.5
    %v2878 = vtanh.pop %v2874
    %v2879 = vtanh.pop %v2875
    %v2880 = vtanh.pop %v2876
    %v2881 = vtanh.pop %v2877
    %v2882 = vmul.f32 %v2878, 0.5
    %v2883 = vmul.f32 %v2879, 0.5
    %v2884 = vmul.f32 %v2880, 0.5
    %v2885 = vmul.f32 %v2881, 0.5
    %v2886 = vadd.f32 %v2882, 0.5
    %v2887 = vadd.f32 %v2883, 0.5
    %v2888 = vadd.f32 %v2884, 0.5
    %v2889 = vadd.f32 %v2885, 0.5
    %2890 = vset.pattern.permute.xlu0 24
    %2891 = vperm.xlu0 %2890, %v774
    %v2892 = vpop.permute.xlu0 %2891
    %2894 = vset.pattern.permute.xlu0 24
    %2895 = vperm.xlu0 %2894, %v775
    %v2896 = vpop.permute.xlu0 %2895
    %2898 = vset.pattern.permute.xlu0 24
    %2899 = vperm.xlu0 %2898, %v776
    %v2900 = vpop.permute.xlu0 %2899
    %2902 = vset.pattern.permute.xlu0 24
    %2903 = vperm.xlu0 %2902, %v777
    %v2904 = vpop.permute.xlu0 %2903
    %v2906 = vmul.f32 %v2886, %v2892
    %v2907 = vmul.f32 %v2887, %v2896
    %v2908 = vmul.f32 %v2888, %v2900
    %v2909 = vmul.f32 %v2889, %v2904
    %v2910 = vadd.f32 %v2825, %v2906
    %v2911 = vadd.f32 %v2826, %v2907
    %v2912 = vadd.f32 %v2827, %v2908
    %v2913 = vadd.f32 %v2828, %v2909
    %v2914 = vld [vmem:[%s1 + $0x19] sm:$0x1]
    %v2915 = vlaneseq
    %v2916 = vshrl.u32 %v2915, 7
    %v2917 = vsub.s32 0, %v2916
    %v2918 = vrot.slane %v2914, %v2917
    %2919 = vset.pattern.permute.xlu0 25
    %2920 = vperm.xlu0 %2919, %v766
    %v2921 = vpop.permute.xlu0 %2920
    %2923 = vset.pattern.permute.xlu0 25
    %2924 = vperm.xlu0 %2923, %v767
    %v2925 = vpop.permute.xlu0 %2924
    %2927 = vset.pattern.permute.xlu0 25
    %2928 = vperm.xlu0 %2927, %v768
    %v2929 = vpop.permute.xlu0 %2928
    %2931 = vset.pattern.permute.xlu0 25
    %2932 = vperm.xlu0 %2931, %v769
    %v2933 = vpop.permute.xlu0 %2932
    %v2935 = vmul.f32 %v2918, %v2921
    %v2936 = vmul.f32 %v2918, %v2925
    %v2937 = vmul.f32 %v2918, %v2929
    %v2938 = vmul.f32 %v2918, %v2933
    %2939 = vset.pattern.permute.xlu0 25
    %2940 = vperm.xlu0 %2939, %v770
    %v2941 = vpop.permute.xlu0 %2940
    %2943 = vset.pattern.permute.xlu0 25
    %2944 = vperm.xlu0 %2943, %v771
    %v2945 = vpop.permute.xlu0 %2944
    %2947 = vset.pattern.permute.xlu0 25
    %2948 = vperm.xlu0 %2947, %v772
    %v2949 = vpop.permute.xlu0 %2948
    %2951 = vset.pattern.permute.xlu0 25
    %2952 = vperm.xlu0 %2951, %v773
    %v2953 = vpop.permute.xlu0 %2952
    %v2955 = vadd.f32 %v2935, %v2941
    %v2956 = vadd.f32 %v2936, %v2945
    %v2957 = vadd.f32 %v2937, %v2949
    %v2958 = vadd.f32 %v2938, %v2953
    %v2959 = vmul.f32 %v2955, 0.5
    %v2960 = vmul.f32 %v2956, 0.5
    %v2961 = vmul.f32 %v2957, 0.5
    %v2962 = vmul.f32 %v2958, 0.5
    %v2963 = vtanh.pop %v2959
    %v2964 = vtanh.pop %v2960
    %v2965 = vtanh.pop %v2961
    %v2966 = vtanh.pop %v2962
    %v2967 = vmul.f32 %v2963, 0.5
    %v2968 = vmul.f32 %v2964, 0.5
    %v2969 = vmul.f32 %v2965, 0.5
    %v2970 = vmul.f32 %v2966, 0.5
    %v2971 = vadd.f32 %v2967, 0.5
    %v2972 = vadd.f32 %v2968, 0.5
    %v2973 = vadd.f32 %v2969, 0.5
    %v2974 = vadd.f32 %v2970, 0.5
    %2975 = vset.pattern.permute.xlu0 25
    %2976 = vperm.xlu0 %2975, %v774
    %v2977 = vpop.permute.xlu0 %2976
    %2979 = vset.pattern.permute.xlu0 25
    %2980 = vperm.xlu0 %2979, %v775
    %v2981 = vpop.permute.xlu0 %2980
    %2983 = vset.pattern.permute.xlu0 25
    %2984 = vperm.xlu0 %2983, %v776
    %v2985 = vpop.permute.xlu0 %2984
    %2987 = vset.pattern.permute.xlu0 25
    %2988 = vperm.xlu0 %2987, %v777
    %v2989 = vpop.permute.xlu0 %2988
    %v2991 = vmul.f32 %v2971, %v2977
    %v2992 = vmul.f32 %v2972, %v2981
    %v2993 = vmul.f32 %v2973, %v2985
    %v2994 = vmul.f32 %v2974, %v2989
    %v2995 = vadd.f32 %v2910, %v2991
    %v2996 = vadd.f32 %v2911, %v2992
    %v2997 = vadd.f32 %v2912, %v2993
    %v2998 = vadd.f32 %v2913, %v2994
    %v2999 = vld [vmem:[%s1 + $0x1a] sm:$0x1]
    %v3000 = vlaneseq
    %v3001 = vshrl.u32 %v3000, 7
    %v3002 = vsub.s32 0, %v3001
    %v3003 = vrot.slane %v2999, %v3002
    %3004 = vset.pattern.permute.xlu0 26
    %3005 = vperm.xlu0 %3004, %v766
    %v3006 = vpop.permute.xlu0 %3005
    %3008 = vset.pattern.permute.xlu0 26
    %3009 = vperm.xlu0 %3008, %v767
    %v3010 = vpop.permute.xlu0 %3009
    %3012 = vset.pattern.permute.xlu0 26
    %3013 = vperm.xlu0 %3012, %v768
    %v3014 = vpop.permute.xlu0 %3013
    %3016 = vset.pattern.permute.xlu0 26
    %3017 = vperm.xlu0 %3016, %v769
    %v3018 = vpop.permute.xlu0 %3017
    %v3020 = vmul.f32 %v3003, %v3006
    %v3021 = vmul.f32 %v3003, %v3010
    %v3022 = vmul.f32 %v3003, %v3014
    %v3023 = vmul.f32 %v3003, %v3018
    %3024 = vset.pattern.permute.xlu0 26
    %3025 = vperm.xlu0 %3024, %v770
    %v3026 = vpop.permute.xlu0 %3025
    %3028 = vset.pattern.permute.xlu0 26
    %3029 = vperm.xlu0 %3028, %v771
    %v3030 = vpop.permute.xlu0 %3029
    %3032 = vset.pattern.permute.xlu0 26
    %3033 = vperm.xlu0 %3032, %v772
    %v3034 = vpop.permute.xlu0 %3033
    %3036 = vset.pattern.permute.xlu0 26
    %3037 = vperm.xlu0 %3036, %v773
    %v3038 = vpop.permute.xlu0 %3037
    %v3040 = vadd.f32 %v3020, %v3026
    %v3041 = vadd.f32 %v3021, %v3030
    %v3042 = vadd.f32 %v3022, %v3034
    %v3043 = vadd.f32 %v3023, %v3038
    %v3044 = vmul.f32 %v3040, 0.5
    %v3045 = vmul.f32 %v3041, 0.5
    %v3046 = vmul.f32 %v3042, 0.5
    %v3047 = vmul.f32 %v3043, 0.5
    %v3048 = vtanh.pop %v3044
    %v3049 = vtanh.pop %v3045
    %v3050 = vtanh.pop %v3046
    %v3051 = vtanh.pop %v3047
    %v3052 = vmul.f32 %v3048, 0.5
    %v3053 = vmul.f32 %v3049, 0.5
    %v3054 = vmul.f32 %v3050, 0.5
    %v3055 = vmul.f32 %v3051, 0.5
    %v3056 = vadd.f32 %v3052, 0.5
    %v3057 = vadd.f32 %v3053, 0.5
    %v3058 = vadd.f32 %v3054, 0.5
    %v3059 = vadd.f32 %v3055, 0.5
    %3060 = vset.pattern.permute.xlu0 26
    %3061 = vperm.xlu0 %3060, %v774
    %v3062 = vpop.permute.xlu0 %3061
    %3064 = vset.pattern.permute.xlu0 26
    %3065 = vperm.xlu0 %3064, %v775
    %v3066 = vpop.permute.xlu0 %3065
    %3068 = vset.pattern.permute.xlu0 26
    %3069 = vperm.xlu0 %3068, %v776
    %v3070 = vpop.permute.xlu0 %3069
    %3072 = vset.pattern.permute.xlu0 26
    %3073 = vperm.xlu0 %3072, %v777
    %v3074 = vpop.permute.xlu0 %3073
    %v3076 = vmul.f32 %v3056, %v3062
    %v3077 = vmul.f32 %v3057, %v3066
    %v3078 = vmul.f32 %v3058, %v3070
    %v3079 = vmul.f32 %v3059, %v3074
    %v3080 = vadd.f32 %v2995, %v3076
    %v3081 = vadd.f32 %v2996, %v3077
    %v3082 = vadd.f32 %v2997, %v3078
    %v3083 = vadd.f32 %v2998, %v3079
    %v3084 = vld [vmem:[%s1 + $0x1b] sm:$0x1]
    %v3085 = vlaneseq
    %v3086 = vshrl.u32 %v3085, 7
    %v3087 = vsub.s32 0, %v3086
    %v3088 = vrot.slane %v3084, %v3087
    %3089 = vset.pattern.permute.xlu0 27
    %3090 = vperm.xlu0 %3089, %v766
    %v3091 = vpop.permute.xlu0 %3090
    %3093 = vset.pattern.permute.xlu0 27
    %3094 = vperm.xlu0 %3093, %v767
    %v3095 = vpop.permute.xlu0 %3094
    %3097 = vset.pattern.permute.xlu0 27
    %3098 = vperm.xlu0 %3097, %v768
    %v3099 = vpop.permute.xlu0 %3098
    %3101 = vset.pattern.permute.xlu0 27
    %3102 = vperm.xlu0 %3101, %v769
    %v3103 = vpop.permute.xlu0 %3102
    %v3105 = vmul.f32 %v3088, %v3091
    %v3106 = vmul.f32 %v3088, %v3095
    %v3107 = vmul.f32 %v3088, %v3099
    %v3108 = vmul.f32 %v3088, %v3103
    %3109 = vset.pattern.permute.xlu0 27
    %3110 = vperm.xlu0 %3109, %v770
    %v3111 = vpop.permute.xlu0 %3110
    %3113 = vset.pattern.permute.xlu0 27
    %3114 = vperm.xlu0 %3113, %v771
    %v3115 = vpop.permute.xlu0 %3114
    %3117 = vset.pattern.permute.xlu0 27
    %3118 = vperm.xlu0 %3117, %v772
    %v3119 = vpop.permute.xlu0 %3118
    %3121 = vset.pattern.permute.xlu0 27
    %3122 = vperm.xlu0 %3121, %v773
    %v3123 = vpop.permute.xlu0 %3122
    %v3125 = vadd.f32 %v3105, %v3111
    %v3126 = vadd.f32 %v3106, %v3115
    %v3127 = vadd.f32 %v3107, %v3119
    %v3128 = vadd.f32 %v3108, %v3123
    %v3129 = vmul.f32 %v3125, 0.5
    %v3130 = vmul.f32 %v3126, 0.5
    %v3131 = vmul.f32 %v3127, 0.5
    %v3132 = vmul.f32 %v3128, 0.5
    %v3133 = vtanh.pop %v3129
    %v3134 = vtanh.pop %v3130
    %v3135 = vtanh.pop %v3131
    %v3136 = vtanh.pop %v3132
    %v3137 = vmul.f32 %v3133, 0.5
    %v3138 = vmul.f32 %v3134, 0.5
    %v3139 = vmul.f32 %v3135, 0.5
    %v3140 = vmul.f32 %v3136, 0.5
    %v3141 = vadd.f32 %v3137, 0.5
    %v3142 = vadd.f32 %v3138, 0.5
    %v3143 = vadd.f32 %v3139, 0.5
    %v3144 = vadd.f32 %v3140, 0.5
    %3145 = vset.pattern.permute.xlu0 27
    %3146 = vperm.xlu0 %3145, %v774
    %v3147 = vpop.permute.xlu0 %3146
    %3149 = vset.pattern.permute.xlu0 27
    %3150 = vperm.xlu0 %3149, %v775
    %v3151 = vpop.permute.xlu0 %3150
    %3153 = vset.pattern.permute.xlu0 27
    %3154 = vperm.xlu0 %3153, %v776
    %v3155 = vpop.permute.xlu0 %3154
    %3157 = vset.pattern.permute.xlu0 27
    %3158 = vperm.xlu0 %3157, %v777
    %v3159 = vpop.permute.xlu0 %3158
    %v3161 = vmul.f32 %v3141, %v3147
    %v3162 = vmul.f32 %v3142, %v3151
    %v3163 = vmul.f32 %v3143, %v3155
    %v3164 = vmul.f32 %v3144, %v3159
    %v3165 = vadd.f32 %v3080, %v3161
    %v3166 = vadd.f32 %v3081, %v3162
    %v3167 = vadd.f32 %v3082, %v3163
    %v3168 = vadd.f32 %v3083, %v3164
    %v3169 = vld [vmem:[%s1 + $0x1c] sm:$0x1]
    %v3170 = vlaneseq
    %v3171 = vshrl.u32 %v3170, 7
    %v3172 = vsub.s32 0, %v3171
    %v3173 = vrot.slane %v3169, %v3172
    %3174 = vset.pattern.permute.xlu0 28
    %3175 = vperm.xlu0 %3174, %v766
    %v3176 = vpop.permute.xlu0 %3175
    %3178 = vset.pattern.permute.xlu0 28
    %3179 = vperm.xlu0 %3178, %v767
    %v3180 = vpop.permute.xlu0 %3179
    %3182 = vset.pattern.permute.xlu0 28
    %3183 = vperm.xlu0 %3182, %v768
    %v3184 = vpop.permute.xlu0 %3183
    %3186 = vset.pattern.permute.xlu0 28
    %3187 = vperm.xlu0 %3186, %v769
    %v3188 = vpop.permute.xlu0 %3187
    %v3190 = vmul.f32 %v3173, %v3176
    %v3191 = vmul.f32 %v3173, %v3180
    %v3192 = vmul.f32 %v3173, %v3184
    %v3193 = vmul.f32 %v3173, %v3188
    %3194 = vset.pattern.permute.xlu0 28
    %3195 = vperm.xlu0 %3194, %v770
    %v3196 = vpop.permute.xlu0 %3195
    %3198 = vset.pattern.permute.xlu0 28
    %3199 = vperm.xlu0 %3198, %v771
    %v3200 = vpop.permute.xlu0 %3199
    %3202 = vset.pattern.permute.xlu0 28
    %3203 = vperm.xlu0 %3202, %v772
    %v3204 = vpop.permute.xlu0 %3203
    %3206 = vset.pattern.permute.xlu0 28
    %3207 = vperm.xlu0 %3206, %v773
    %v3208 = vpop.permute.xlu0 %3207
    %v3210 = vadd.f32 %v3190, %v3196
    %v3211 = vadd.f32 %v3191, %v3200
    %v3212 = vadd.f32 %v3192, %v3204
    %v3213 = vadd.f32 %v3193, %v3208
    %v3214 = vmul.f32 %v3210, 0.5
    %v3215 = vmul.f32 %v3211, 0.5
    %v3216 = vmul.f32 %v3212, 0.5
    %v3217 = vmul.f32 %v3213, 0.5
    %v3218 = vtanh.pop %v3214
    %v3219 = vtanh.pop %v3215
    %v3220 = vtanh.pop %v3216
    %v3221 = vtanh.pop %v3217
    %v3222 = vmul.f32 %v3218, 0.5
    %v3223 = vmul.f32 %v3219, 0.5
    %v3224 = vmul.f32 %v3220, 0.5
    %v3225 = vmul.f32 %v3221, 0.5
    %v3226 = vadd.f32 %v3222, 0.5
    %v3227 = vadd.f32 %v3223, 0.5
    %v3228 = vadd.f32 %v3224, 0.5
    %v3229 = vadd.f32 %v3225, 0.5
    %3230 = vset.pattern.permute.xlu0 28
    %3231 = vperm.xlu0 %3230, %v774
    %v3232 = vpop.permute.xlu0 %3231
    %3234 = vset.pattern.permute.xlu0 28
    %3235 = vperm.xlu0 %3234, %v775
    %v3236 = vpop.permute.xlu0 %3235
    %3238 = vset.pattern.permute.xlu0 28
    %3239 = vperm.xlu0 %3238, %v776
    %v3240 = vpop.permute.xlu0 %3239
    %3242 = vset.pattern.permute.xlu0 28
    %3243 = vperm.xlu0 %3242, %v777
    %v3244 = vpop.permute.xlu0 %3243
    %v3246 = vmul.f32 %v3226, %v3232
    %v3247 = vmul.f32 %v3227, %v3236
    %v3248 = vmul.f32 %v3228, %v3240
    %v3249 = vmul.f32 %v3229, %v3244
    %v3250 = vadd.f32 %v3165, %v3246
    %v3251 = vadd.f32 %v3166, %v3247
    %v3252 = vadd.f32 %v3167, %v3248
    %v3253 = vadd.f32 %v3168, %v3249
    %v3254 = vld [vmem:[%s1 + $0x1d] sm:$0x1]
    %v3255 = vlaneseq
    %v3256 = vshrl.u32 %v3255, 7
    %v3257 = vsub.s32 0, %v3256
    %v3258 = vrot.slane %v3254, %v3257
    %3259 = vset.pattern.permute.xlu0 29
    %3260 = vperm.xlu0 %3259, %v766
    %v3261 = vpop.permute.xlu0 %3260
    %3263 = vset.pattern.permute.xlu0 29
    %3264 = vperm.xlu0 %3263, %v767
    %v3265 = vpop.permute.xlu0 %3264
    %3267 = vset.pattern.permute.xlu0 29
    %3268 = vperm.xlu0 %3267, %v768
    %v3269 = vpop.permute.xlu0 %3268
    %3271 = vset.pattern.permute.xlu0 29
    %3272 = vperm.xlu0 %3271, %v769
    %v3273 = vpop.permute.xlu0 %3272
    %v3275 = vmul.f32 %v3258, %v3261
    %v3276 = vmul.f32 %v3258, %v3265
    %v3277 = vmul.f32 %v3258, %v3269
    %v3278 = vmul.f32 %v3258, %v3273
    %3279 = vset.pattern.permute.xlu0 29
    %3280 = vperm.xlu0 %3279, %v770
    %v3281 = vpop.permute.xlu0 %3280
    %3283 = vset.pattern.permute.xlu0 29
    %3284 = vperm.xlu0 %3283, %v771
    %v3285 = vpop.permute.xlu0 %3284
    %3287 = vset.pattern.permute.xlu0 29
    %3288 = vperm.xlu0 %3287, %v772
    %v3289 = vpop.permute.xlu0 %3288
    %3291 = vset.pattern.permute.xlu0 29
    %3292 = vperm.xlu0 %3291, %v773
    %v3293 = vpop.permute.xlu0 %3292
    %v3295 = vadd.f32 %v3275, %v3281
    %v3296 = vadd.f32 %v3276, %v3285
    %v3297 = vadd.f32 %v3277, %v3289
    %v3298 = vadd.f32 %v3278, %v3293
    %v3299 = vmul.f32 %v3295, 0.5
    %v3300 = vmul.f32 %v3296, 0.5
    %v3301 = vmul.f32 %v3297, 0.5
    %v3302 = vmul.f32 %v3298, 0.5
    %v3303 = vtanh.pop %v3299
    %v3304 = vtanh.pop %v3300
    %v3305 = vtanh.pop %v3301
    %v3306 = vtanh.pop %v3302
    %v3307 = vmul.f32 %v3303, 0.5
    %v3308 = vmul.f32 %v3304, 0.5
    %v3309 = vmul.f32 %v3305, 0.5
    %v3310 = vmul.f32 %v3306, 0.5
    %v3311 = vadd.f32 %v3307, 0.5
    %v3312 = vadd.f32 %v3308, 0.5
    %v3313 = vadd.f32 %v3309, 0.5
    %v3314 = vadd.f32 %v3310, 0.5
    %3315 = vset.pattern.permute.xlu0 29
    %3316 = vperm.xlu0 %3315, %v774
    %v3317 = vpop.permute.xlu0 %3316
    %3319 = vset.pattern.permute.xlu0 29
    %3320 = vperm.xlu0 %3319, %v775
    %v3321 = vpop.permute.xlu0 %3320
    %3323 = vset.pattern.permute.xlu0 29
    %3324 = vperm.xlu0 %3323, %v776
    %v3325 = vpop.permute.xlu0 %3324
    %3327 = vset.pattern.permute.xlu0 29
    %3328 = vperm.xlu0 %3327, %v777
    %v3329 = vpop.permute.xlu0 %3328
    %v3331 = vmul.f32 %v3311, %v3317
    %v3332 = vmul.f32 %v3312, %v3321
    %v3333 = vmul.f32 %v3313, %v3325
    %v3334 = vmul.f32 %v3314, %v3329
    %v3335 = vadd.f32 %v3250, %v3331
    %v3336 = vadd.f32 %v3251, %v3332
    %v3337 = vadd.f32 %v3252, %v3333
    %v3338 = vadd.f32 %v3253, %v3334
    %v3339 = vld [vmem:[%s1 + $0x1e] sm:$0x1]
    %v3340 = vlaneseq
    %v3341 = vshrl.u32 %v3340, 7
    %v3342 = vsub.s32 0, %v3341
    %v3343 = vrot.slane %v3339, %v3342
    %3344 = vset.pattern.permute.xlu0 30
    %3345 = vperm.xlu0 %3344, %v766
    %v3346 = vpop.permute.xlu0 %3345
    %3348 = vset.pattern.permute.xlu0 30
    %3349 = vperm.xlu0 %3348, %v767
    %v3350 = vpop.permute.xlu0 %3349
    %3352 = vset.pattern.permute.xlu0 30
    %3353 = vperm.xlu0 %3352, %v768
    %v3354 = vpop.permute.xlu0 %3353
    %3356 = vset.pattern.permute.xlu0 30
    %3357 = vperm.xlu0 %3356, %v769
    %v3358 = vpop.permute.xlu0 %3357
    %v3360 = vmul.f32 %v3343, %v3346
    %v3361 = vmul.f32 %v3343, %v3350
    %v3362 = vmul.f32 %v3343, %v3354
    %v3363 = vmul.f32 %v3343, %v3358
    %3364 = vset.pattern.permute.xlu0 30
    %3365 = vperm.xlu0 %3364, %v770
    %v3366 = vpop.permute.xlu0 %3365
    %3368 = vset.pattern.permute.xlu0 30
    %3369 = vperm.xlu0 %3368, %v771
    %v3370 = vpop.permute.xlu0 %3369
    %3372 = vset.pattern.permute.xlu0 30
    %3373 = vperm.xlu0 %3372, %v772
    %v3374 = vpop.permute.xlu0 %3373
    %3376 = vset.pattern.permute.xlu0 30
    %3377 = vperm.xlu0 %3376, %v773
    %v3378 = vpop.permute.xlu0 %3377
    %v3380 = vadd.f32 %v3360, %v3366
    %v3381 = vadd.f32 %v3361, %v3370
    %v3382 = vadd.f32 %v3362, %v3374
    %v3383 = vadd.f32 %v3363, %v3378
    %v3384 = vmul.f32 %v3380, 0.5
    %v3385 = vmul.f32 %v3381, 0.5
    %v3386 = vmul.f32 %v3382, 0.5
    %v3387 = vmul.f32 %v3383, 0.5
    %v3388 = vtanh.pop %v3384
    %v3389 = vtanh.pop %v3385
    %v3390 = vtanh.pop %v3386
    %v3391 = vtanh.pop %v3387
    %v3392 = vmul.f32 %v3388, 0.5
    %v3393 = vmul.f32 %v3389, 0.5
    %v3394 = vmul.f32 %v3390, 0.5
    %v3395 = vmul.f32 %v3391, 0.5
    %v3396 = vadd.f32 %v3392, 0.5
    %v3397 = vadd.f32 %v3393, 0.5
    %v3398 = vadd.f32 %v3394, 0.5
    %v3399 = vadd.f32 %v3395, 0.5
    %3400 = vset.pattern.permute.xlu0 30
    %3401 = vperm.xlu0 %3400, %v774
    %v3402 = vpop.permute.xlu0 %3401
    %3404 = vset.pattern.permute.xlu0 30
    %3405 = vperm.xlu0 %3404, %v775
    %v3406 = vpop.permute.xlu0 %3405
    %3408 = vset.pattern.permute.xlu0 30
    %3409 = vperm.xlu0 %3408, %v776
    %v3410 = vpop.permute.xlu0 %3409
    %3412 = vset.pattern.permute.xlu0 30
    %3413 = vperm.xlu0 %3412, %v777
    %v3414 = vpop.permute.xlu0 %3413
    %v3416 = vmul.f32 %v3396, %v3402
    %v3417 = vmul.f32 %v3397, %v3406
    %v3418 = vmul.f32 %v3398, %v3410
    %v3419 = vmul.f32 %v3399, %v3414
    %v3420 = vadd.f32 %v3335, %v3416
    %v3421 = vadd.f32 %v3336, %v3417
    %v3422 = vadd.f32 %v3337, %v3418
    %v3423 = vadd.f32 %v3338, %v3419
    %v3424 = vld [vmem:[%s1 + $0x1f] sm:$0x1]
    %v3425 = vlaneseq
    %v3426 = vshrl.u32 %v3425, 7
    %v3427 = vsub.s32 0, %v3426
    %v3428 = vrot.slane %v3424, %v3427
    %3429 = vset.pattern.permute.xlu0 31
    %3430 = vperm.xlu0 %3429, %v766
    %v3431 = vpop.permute.xlu0 %3430
    %3433 = vset.pattern.permute.xlu0 31
    %3434 = vperm.xlu0 %3433, %v767
    %v3435 = vpop.permute.xlu0 %3434
    %3437 = vset.pattern.permute.xlu0 31
    %3438 = vperm.xlu0 %3437, %v768
    %v3439 = vpop.permute.xlu0 %3438
    %3441 = vset.pattern.permute.xlu0 31
    %3442 = vperm.xlu0 %3441, %v769
    %v3443 = vpop.permute.xlu0 %3442
    %v3445 = vmul.f32 %v3428, %v3431
    %v3446 = vmul.f32 %v3428, %v3435
    %v3447 = vmul.f32 %v3428, %v3439
    %v3448 = vmul.f32 %v3428, %v3443
    %3449 = vset.pattern.permute.xlu0 31
    %3450 = vperm.xlu0 %3449, %v770
    %v3451 = vpop.permute.xlu0 %3450
    %3453 = vset.pattern.permute.xlu0 31
    %3454 = vperm.xlu0 %3453, %v771
    %v3455 = vpop.permute.xlu0 %3454
    %3457 = vset.pattern.permute.xlu0 31
    %3458 = vperm.xlu0 %3457, %v772
    %v3459 = vpop.permute.xlu0 %3458
    %3461 = vset.pattern.permute.xlu0 31
    %3462 = vperm.xlu0 %3461, %v773
    %v3463 = vpop.permute.xlu0 %3462
    %v3465 = vadd.f32 %v3445, %v3451
    %v3466 = vadd.f32 %v3446, %v3455
    %v3467 = vadd.f32 %v3447, %v3459
    %v3468 = vadd.f32 %v3448, %v3463
    %v3469 = vmul.f32 %v3465, 0.5
    %v3470 = vmul.f32 %v3466, 0.5
    %v3471 = vmul.f32 %v3467, 0.5
    %v3472 = vmul.f32 %v3468, 0.5
    %v3473 = vtanh.pop %v3469
    %v3474 = vtanh.pop %v3470
    %v3475 = vtanh.pop %v3471
    %v3476 = vtanh.pop %v3472
    %v3477 = vmul.f32 %v3473, 0.5
    %v3478 = vmul.f32 %v3474, 0.5
    %v3479 = vmul.f32 %v3475, 0.5
    %v3480 = vmul.f32 %v3476, 0.5
    %v3481 = vadd.f32 %v3477, 0.5
    %v3482 = vadd.f32 %v3478, 0.5
    %v3483 = vadd.f32 %v3479, 0.5
    %v3484 = vadd.f32 %v3480, 0.5
    %3485 = vset.pattern.permute.xlu0 31
    %3486 = vperm.xlu0 %3485, %v774
    %v3487 = vpop.permute.xlu0 %3486
    %3489 = vset.pattern.permute.xlu0 31
    %3490 = vperm.xlu0 %3489, %v775
    %v3491 = vpop.permute.xlu0 %3490
    %3493 = vset.pattern.permute.xlu0 31
    %3494 = vperm.xlu0 %3493, %v776
    %v3495 = vpop.permute.xlu0 %3494
    %3497 = vset.pattern.permute.xlu0 31
    %3498 = vperm.xlu0 %3497, %v777
    %v3499 = vpop.permute.xlu0 %3498
    %v3501 = vmul.f32 %v3481, %v3487
    %v3502 = vmul.f32 %v3482, %v3491
    %v3503 = vmul.f32 %v3483, %v3495
    %v3504 = vmul.f32 %v3484, %v3499
    %v3505 = vadd.f32 %v3420, %v3501
    %v3506 = vadd.f32 %v3421, %v3502
    %v3507 = vadd.f32 %v3422, %v3503
    %v3508 = vadd.f32 %v3423, %v3504
    %v3509 = vmul.f32 %v3505, 0.16666667
    %v3510 = vmul.f32 %v3506, 0.16666667
    %v3511 = vmul.f32 %v3507, 0.16666667
    %v3512 = vmul.f32 %v3508, 0.16666667
    %v3513 = vadd.f32 %v33, %v3509
    %v3514 = vadd.f32 %v34, %v3510
    %v3515 = vadd.f32 %v35, %v3511
    %v3516 = vadd.f32 %v36, %v3512
    %3517 = vst [vmem:[#allocation2] sm:$0xff] %v3513
    %3518 = vst [vmem:[#allocation2 + $0x8] sm:$0xff] %v3514
    %3519 = vst [vmem:[#allocation2 + $0x10] sm:$0xff] %v3515
    %3520 = vst [vmem:[#allocation2 + $0x18] sm:$0xff] %v3516
    // Predicated region
    $region38: #{tpu_custom_call.1} parent=1 // pred_check
      _
    $region39: #{tpu_custom_call.1} parent=1 // pred_check_branch
      %3522 = sbr.rel (0) target = $region41
    $region40: #{tpu_custom_call.1} parent=1 // pred_region
      %s3524 = ssub.s32 512, 512
      %3525 = vsyncadd [#allocation3], %s3524
      %s3526 = sshll.u32 [#allocation2], 4
      %s3527 = int_to_ptr.vmem [resolvable:$true] %s3526
      %3532 = dma.vmem_to_hbm [thread:$0]  %s3527, 512, %s9, [#allocation3], 128, 128, 8
    $region41: #{tpu_custom_call.1} parent=1 // pred_fallthru
      _
    // Predicated region
    $region42: #{tpu_custom_call.1} parent=1 // pred_check
      _
    $region43: #{tpu_custom_call.1} parent=1 // pred_check_branch
      %3534 = sbr.rel (0) target = $region45
    $region44: #{tpu_custom_call.1} parent=1 // pred_region
      %3535 = dma.done [#allocation3], 512
    $region45: #{tpu_custom_call.1} parent=1 // pred_fallthru
      _
    %3536 = vsyncpa [#allocation3], 1

</llo_original>
